<compile_context>
chip_gen: v7x
topology: tpu7x:2x2x1
jax: 0.10.0
libtpu: 0.0.40
codegen_flags: <defaults>
</compile_context>

<pallas_src>
import jax
import jax.numpy as jnp
from jax.experimental import pallas as pl
from jax.experimental.pallas import tpu as pltpu


# ---------------------------------------------------------------------------
# Fused SPADE kernel (one grid step == one sample).
# ---------------------------------------------------------------------------
def _spade_fused_kernel(x_ref, segc_ref, w_sh_ref, b_sh_ref, w_gb_ref, b_gb_ref,
                        o_ref, actv_scr):
    Hp, Wp, nh = actv_scr.shape            # padded spatial, nhidden (=128)
    H, W = Hp - 2, Wp - 2
    HW = H * W
    cn2 = w_gb_ref.shape[3]                # 2 * norm_nc (gamma | beta merged)
    cn = cn2 // 2

    # ---- shared 3x3 conv (label_nc -> nhidden): single im2col matmul + bias + ReLU.
    # segc_ref holds the pre-gathered (HW, 9*label_nc) patches in bf16; one MXU dot
    # with K=9*label_nc and a lane-dense N=128 output.
    patches = segc_ref[0]                                           # (HW, Kp) bf16
    actv = jnp.dot(patches, w_sh_ref[...],
                   preferred_element_type=jnp.float32)              # (HW, nh) f32
    actv = jnp.maximum(actv + b_sh_ref[...], 0.0)

    # ---- keep the zero-padded actv in VMEM only (no HBM round trip, no jnp.pad).
    actv_scr[...] = jnp.zeros_like(actv_scr)
    actv_scr[1:H + 1, 1:W + 1, :] = actv.reshape(H, W, nh)

    # ---- merged gamma|beta 3x3 conv: 9 taps, one dot per tap (Cout = 2*norm_nc),
    #      single f32 accumulator.
    acc = jnp.zeros((HW, cn2), jnp.float32)
    for dh in range(3):
        for dw in range(3):
            patch = actv_scr[dh:dh + H, dw:dw + W, :].reshape(HW, nh)
            acc = acc + jnp.dot(patch.astype(jnp.bfloat16), w_gb_ref[dh, dw],
                                preferred_element_type=jnp.float32)
    # One tiny transpose to channel-major (lane-dense over HW); bias (with the
    # "+1" already folded into the gamma half) is added in the cheap layout.
    gb = jnp.transpose(acc) + b_gb_ref[...]                          # (2*cn, HW)
    gamma1 = gb[:cn, :]                                              # == 1 + gamma
    beta = gb[cn:, :]

    # ---- single-pass instance norm (biased var, eps=1e-5) + SPADE modulation,
    #      all in (C, HW) layout: lane-dense loads/stores, lane-axis reductions.
    x = x_ref[0]                                                     # (cn, HW) f32
    mean = jnp.mean(x, axis=1, keepdims=True)
    ex2 = jnp.mean(x * x, axis=1, keepdims=True)
    rstd = jax.lax.rsqrt(ex2 - mean * mean + 1e-5)
    o_ref[0] = ((x - mean) * rstd * gamma1 + beta).astype(o_ref.dtype)


def _spade_fused(x_flat, seg_cols, w_sh, b_sh, w_gb, b_gb, H, W):
    N, Cn, HW = x_flat.shape
    Kp = seg_cols.shape[-1]
    nh = w_sh.shape[1]
    cn2 = w_gb.shape[-1]
    return pl.pallas_call(
        _spade_fused_kernel,
        out_shape=jax.ShapeDtypeStruct((N, Cn, HW), x_flat.dtype),
        grid=(N,),
        in_specs=[
            pl.BlockSpec((1, Cn, HW), lambda n: (n, 0, 0)),          # x (N, C, H*W)
            pl.BlockSpec((1, HW, Kp), lambda n: (n, 0, 0)),          # seg im2col patches
            pl.BlockSpec((Kp, nh), lambda n: (0, 0)),                # shared conv weights
            pl.BlockSpec((1, nh), lambda n: (0, 0)),                 # shared conv bias
            pl.BlockSpec((3, 3, nh, cn2), lambda n: (0, 0, 0, 0)),   # gamma|beta weights
            pl.BlockSpec((cn2, 1), lambda n: (0, 0)),                # gamma|beta bias (C-major)
        ],
        out_specs=pl.BlockSpec((1, Cn, HW), lambda n: (n, 0, 0)),
        scratch_shapes=[pltpu.VMEM((H + 2, W + 2, nh), jnp.float32)],
        compiler_params=pltpu.CompilerParams(
            dimension_semantics=("parallel",),        # independent samples -> 2 TCs on v7x
            vmem_limit_bytes=32 * 1024 * 1024,
        ),
    )(x_flat, seg_cols, w_sh, b_sh, w_gb, b_gb)


# ---------------------------------------------------------------------------
# Wrapper-side layout plumbing (XLA glue on the tiny segmap only).
# ---------------------------------------------------------------------------
def _im2col_3x3(x_pad):
    """(N, H+2, W+2, C) -> (N, H*W, 9*C); order matches w.reshape(9*C, Cout)."""
    N, Hp, Wp, C = x_pad.shape
    H, W = Hp - 2, Wp - 2
    cols = [x_pad[:, dh:dh + H, dw:dw + W, :] for dh in range(3) for dw in range(3)]
    return jnp.concatenate(cols, axis=-1).reshape(N, H * W, 9 * C)


class SpadePallas:
    """SPADE('spadeinstance3x3', norm_nc, label_nc) with nhidden=128."""

    def __init__(self, norm_nc, label_nc, key, nhidden=128):
        ks = 3
        k0, k1, k2, k3, k4, k5 = jax.random.split(key, 6)
        self.norm_nc, self.label_nc, self.nhidden = norm_nc, label_nc, nhidden
        # Reference-precision (f32) parameters, HWIO layout.
        self.w_shared = 0.05 * jax.random.normal(k0, (ks, ks, label_nc, nhidden), jnp.float32)
        self.b_shared = 0.10 * jax.random.normal(k1, (nhidden,), jnp.float32)
        self.w_gamma = 0.05 * jax.random.normal(k2, (ks, ks, nhidden, norm_nc), jnp.float32)
        self.b_gamma = 0.10 * jax.random.normal(k3, (norm_nc,), jnp.float32)
        self.w_beta = 0.05 * jax.random.normal(k4, (ks, ks, nhidden, norm_nc), jnp.float32)
        self.b_beta = 0.10 * jax.random.normal(k5, (norm_nc,), jnp.float32)
        # TODO(synk): spectral_norm is imported but unused in SPADE.forward; not applied.

        # Kernel-side packed parameters.
        k_raw = ks * ks * label_nc
        self.k_pad = ((k_raw + 7) // 8) * 8                      # align K for the MXU
        w_sh = self.w_shared.reshape(k_raw, nhidden)
        self.w_sh_mat = jnp.pad(w_sh, ((0, self.k_pad - k_raw), (0, 0))).astype(jnp.bfloat16)
        self.b_sh = self.b_shared.reshape(1, nhidden)
        # gamma|beta merged along Cout -> one matmul per tap.
        self.w_gb = jnp.concatenate([self.w_gamma, self.w_beta], axis=-1).astype(jnp.bfloat16)
        # Fold the "+1" of (1 + gamma) into the gamma bias; store channel-major (2*cn, 1).
        self.b_gb = jnp.concatenate([self.b_gamma + 1.0, self.b_beta]).reshape(2 * norm_nc, 1)

    @staticmethod
    def _nearest_resize_nhwc(seg, H, W):
        # Matches torch F.interpolate(mode='nearest'): src = floor(dst * in / out).
        _, Hin, Win, _ = seg.shape
        src_h = (jnp.arange(H) * Hin) // H
        src_w = (jnp.arange(W) * Win) // W
        return seg[:, src_h][:, :, src_w]

    def __call__(self, x_nchw, segmap_nchw):
        N, Cn, H, W = x_nchw.shape
        # x stays in native NCHW order -> pure reshape, no transpose of the feature map.
        x_flat = x_nchw.astype(jnp.float32).reshape(N, Cn, H * W)
        seg = jnp.transpose(segmap_nchw.astype(jnp.float32), (0, 2, 3, 1))
        seg_up = self._nearest_resize_nhwc(seg, H, W)
        # Only the tiny label_nc-channel segmap is padded / im2col'd outside the kernel.
        seg_pad = jnp.pad(seg_up, ((0, 0), (1, 1), (1, 1), (0, 0)))
        seg_cols = _im2col_3x3(seg_pad)
        k_raw = seg_cols.shape[-1]
        seg_cols = jnp.pad(seg_cols, ((0, 0), (0, 0), (0, self.k_pad - k_raw)))
        seg_cols = seg_cols.astype(jnp.bfloat16)

        out_flat = _spade_fused(x_flat, seg_cols, self.w_sh_mat, self.b_sh,
                                self.w_gb, self.b_gb, H, W)
        return out_flat.reshape(N, Cn, H, W)                     # NCHW


# ---------------------------------------------------------------------------
# Pure-JAX f32 reference (sanity check against the Pallas path).
# ---------------------------------------------------------------------------
def _ref_conv_nhwc(x, w, b):
    y = jax.lax.conv_general_dilated(
        x, w, window_strides=(1, 1), padding="SAME",
        dimension_numbers=("NHWC", "HWIO", "NHWC"))
    return y + b.reshape(1, 1, 1, -1)


def spade_reference(mod, x_nchw, segmap_nchw):
    x = jnp.transpose(x_nchw, (0, 2, 3, 1)).astype(jnp.float32)
    seg = jnp.transpose(segmap_nchw, (0, 2, 3, 1)).astype(jnp.float32)
    _, H, W, _ = x.shape
    mean = jnp.mean(x, axis=(1, 2), keepdims=True)
    var = jnp.mean((x - mean) ** 2, axis=(1, 2), keepdims=True)
    normalized = (x - mean) * jax.lax.rsqrt(var + 1e-5)
    seg_up = SpadePallas._nearest_resize_nhwc(seg, H, W)
    actv = jax.nn.relu(_ref_conv_nhwc(seg_up, mod.w_shared, mod.b_shared))
    gamma = _ref_conv_nhwc(actv, mod.w_gamma, mod.b_gamma)
    beta = _ref_conv_nhwc(actv, mod.w_beta, mod.b_beta)
    out = normalized * (1.0 + gamma) + beta
    return jnp.transpose(out, (0, 3, 1, 2))


if __name__ == "__main__":
    key = jax.random.PRNGKey(0)
    k_param, k_x, k_seg = jax.random.split(key, 3)

    norm_nc, label_nc = 4, 3
    N, H, W = 2, 16, 16

    mod = SpadePallas(norm_nc, label_nc, k_param)

    x = jax.random.normal(k_x, (N, norm_nc, H, W), jnp.float32)          # NCHW
    segmap = jax.random.normal(k_seg, (N, label_nc, 8, 8), jnp.float32)  # NCHW, smaller spatial

    out = jax.jit(mod.__call__)(x, segmap)
    out = jax.block_until_ready(out)

    ref = spade_reference(mod, x, segmap)
    assert out.shape == (N, norm_nc, H, W)
    max_err = float(jnp.max(jnp.abs(out - ref)))
    mean_err = float(jnp.mean(jnp.abs(out - ref)))
    assert max_err < 5e-2, f"max mismatch vs reference: {max_err}"
    assert mean_err < 1e-2, f"mean mismatch vs reference: {mean_err}"

    print("KERNEL_OK")
</pallas_src>

<mosaic_0001>
module attributes {stable_mosaic.version = 11 : i64} {
  func.func @_spade_fused_kernel(%arg0: i32, %arg1: memref<1x4x256xf32, #tpu.memory_space<vmem>>, %arg2: memref<1x256x32xbf16, #tpu.memory_space<vmem>>, %arg3: memref<32x128xbf16, #tpu.memory_space<vmem>>, %arg4: memref<1x128xf32, #tpu.memory_space<vmem>>, %arg5: memref<3x3x128x8xbf16, #tpu.memory_space<vmem>>, %arg6: memref<8x1xf32, #tpu.memory_space<vmem>>, %arg7: memref<1x4x256xf32, #tpu.memory_space<vmem>>, %arg8: memref<18x18x128xf32, #tpu.memory_space<vmem>>) attributes {dimension_semantics = [#tpu.dimension_semantics<parallel>], iteration_bounds = array<i64: 2>, scalar_prefetch = 0 : i64, scratch_operands = 1 : i64, tpu.core_type = #tpu.core_type<tc>, window_params = [{transform_indices = @transform_0, window_bounds = array<i64: 1, 4, 256>}, {transform_indices = @transform_1, window_bounds = array<i64: 1, 256, 32>}, {pipeline_mode = #tpu.pipeline_mode<synchronous>, transform_indices = @transform_2, window_bounds = array<i64: 32, 128>}, {pipeline_mode = #tpu.pipeline_mode<synchronous>, transform_indices = @transform_3, window_bounds = array<i64: 1, 128>}, {pipeline_mode = #tpu.pipeline_mode<synchronous>, transform_indices = @transform_4, window_bounds = array<i64: 3, 3, 128, 8>}, {pipeline_mode = #tpu.pipeline_mode<synchronous>, transform_indices = @transform_5, window_bounds = array<i64: 8, 1>}, {transform_indices = @transform_6, window_bounds = array<i64: 1, 4, 256>}]} {
    %c0 = arith.constant 0 : index
    %c0_0 = arith.constant 0 : index
    %c0_1 = arith.constant 0 : index
    %0 = vector.load %arg2[%c0, %c0_0, %c0_1] : memref<1x256x32xbf16, #tpu.memory_space<vmem>>, vector<1x256x32xbf16>
    %1 = vector.shape_cast %0 : vector<1x256x32xbf16> to vector<256x32xbf16>
    %c0_2 = arith.constant 0 : index
    %c0_3 = arith.constant 0 : index
    %2 = vector.load %arg3[%c0_2, %c0_3] : memref<32x128xbf16, #tpu.memory_space<vmem>>, vector<32x128xbf16>
    %cst = arith.constant dense<0.000000e+00> : vector<256x128xf32>
    %3 = tpu.matmul %1, %2, %cst {dimension_numbers = #tpu.dot_dimension_numbers<[1], [0], [0], [1], [0, 0, 1, 1], [], []>} : vector<256x32xbf16>, vector<32x128xbf16>, vector<256x128xf32> -> vector<256x128xf32>
    %c0_4 = arith.constant 0 : index
    %c0_5 = arith.constant 0 : index
    %4 = vector.load %arg4[%c0_4, %c0_5] : memref<1x128xf32, #tpu.memory_space<vmem>>, vector<1x128xf32>
    %5 = vector.broadcast %4 : vector<1x128xf32> to vector<256x128xf32>
    %6 = arith.addf %3, %5 : vector<256x128xf32>
    %cst_6 = arith.constant 0.000000e+00 : f32
    %7 = vector.broadcast %cst_6 : f32 to vector<256x128xf32>
    %8 = arith.maximumf %6, %7 : vector<256x128xf32>
    %cst_7 = arith.constant 0.000000e+00 : f32
    %9 = vector.broadcast %cst_7 : f32 to vector<18x18x128xf32>
    %c0_8 = arith.constant 0 : index
    %c0_9 = arith.constant 0 : index
    %c0_10 = arith.constant 0 : index
    %10 = vector.load %arg8[%c0_8, %c0_9, %c0_10] : memref<18x18x128xf32, #tpu.memory_space<vmem>>, vector<18x18x128xf32>
    tpu.vector_store %arg8[%c0_8, %c0_9, %c0_10], %9 {strides = array<i32>} : memref<18x18x128xf32, #tpu.memory_space<vmem>>, vector<18x18x128xf32>,
    %11 = vector.shape_cast %8 : vector<256x128xf32> to vector<16x16x128xf32>
    %c1 = arith.constant 1 : index
    %c1_11 = arith.constant 1 : index
    %c0_12 = arith.constant 0 : index
    %12 = vector.load %arg8[%c1, %c1_11, %c0_12] : memref<18x18x128xf32, #tpu.memory_space<vmem>>, vector<16x16x128xf32>
    tpu.vector_store %arg8[%c1, %c1_11, %c0_12], %11 {strides = array<i32>} : memref<18x18x128xf32, #tpu.memory_space<vmem>>, vector<16x16x128xf32>,
    %cst_13 = arith.constant 0.000000e+00 : f32
    %13 = vector.broadcast %cst_13 : f32 to vector<256x8xf32>
    %c0_14 = arith.constant 0 : index
    %c0_15 = arith.constant 0 : index
    %c0_16 = arith.constant 0 : index
    %14 = vector.load %arg8[%c0_14, %c0_15, %c0_16] : memref<18x18x128xf32, #tpu.memory_space<vmem>>, vector<16x16x128xf32>
    %15 = vector.shape_cast %14 : vector<16x16x128xf32> to vector<256x128xf32>
    %16 = arith.truncf %15 : vector<256x128xf32> to vector<256x128xbf16>
    %c0_17 = arith.constant 0 : index
    %c0_18 = arith.constant 0 : index
    %c0_19 = arith.constant 0 : index
    %c0_20 = arith.constant 0 : index
    %17 = vector.load %arg5[%c0_17, %c0_18, %c0_19, %c0_20] : memref<3x3x128x8xbf16, #tpu.memory_space<vmem>>, vector<1x1x128x8xbf16>
    %18 = vector.shape_cast %17 : vector<1x1x128x8xbf16> to vector<128x8xbf16>
    %cst_21 = arith.constant dense<0.000000e+00> : vector<256x8xf32>
    %19 = tpu.matmul %16, %18, %cst_21 {dimension_numbers = #tpu.dot_dimension_numbers<[1], [0], [0], [1], [0, 0, 1, 1], [], []>} : vector<256x128xbf16>, vector<128x8xbf16>, vector<256x8xf32> -> vector<256x8xf32>
    %20 = arith.addf %13, %19 : vector<256x8xf32>
    %c0_22 = arith.constant 0 : index
    %c1_23 = arith.constant 1 : index
    %c0_24 = arith.constant 0 : index
    %21 = vector.load %arg8[%c0_22, %c1_23, %c0_24] : memref<18x18x128xf32, #tpu.memory_space<vmem>>, vector<16x16x128xf32>
    %22 = vector.shape_cast %21 : vector<16x16x128xf32> to vector<256x128xf32>
    %23 = arith.truncf %22 : vector<256x128xf32> to vector<256x128xbf16>
    %c0_25 = arith.constant 0 : index
    %c1_26 = arith.constant 1 : index
    %c0_27 = arith.constant 0 : index
    %c0_28 = arith.constant 0 : index
    %24 = vector.load %arg5[%c0_25, %c1_26, %c0_27, %c0_28] : memref<3x3x128x8xbf16, #tpu.memory_space<vmem>>, vector<1x1x128x8xbf16>
    %25 = vector.shape_cast %24 : vector<1x1x128x8xbf16> to vector<128x8xbf16>
    %cst_29 = arith.constant dense<0.000000e+00> : vector<256x8xf32>
    %26 = tpu.matmul %23, %25, %cst_29 {dimension_numbers = #tpu.dot_dimension_numbers<[1], [0], [0], [1], [0, 0, 1, 1], [], []>} : vector<256x128xbf16>, vector<128x8xbf16>, vector<256x8xf32> -> vector<256x8xf32>
    %27 = arith.addf %20, %26 : vector<256x8xf32>
    %c0_30 = arith.constant 0 : index
    %c2 = arith.constant 2 : index
    %c0_31 = arith.constant 0 : index
    %28 = vector.load %arg8[%c0_30, %c2, %c0_31] : memref<18x18x128xf32, #tpu.memory_space<vmem>>, vector<16x16x128xf32>
    %29 = vector.shape_cast %28 : vector<16x16x128xf32> to vector<256x128xf32>
    %30 = arith.truncf %29 : vector<256x128xf32> to vector<256x128xbf16>
    %c0_32 = arith.constant 0 : index
    %c2_33 = arith.constant 2 : index
    %c0_34 = arith.constant 0 : index
    %c0_35 = arith.constant 0 : index
    %31 = vector.load %arg5[%c0_32, %c2_33, %c0_34, %c0_35] : memref<3x3x128x8xbf16, #tpu.memory_space<vmem>>, vector<1x1x128x8xbf16>
    %32 = vector.shape_cast %31 : vector<1x1x128x8xbf16> to vector<128x8xbf16>
    %cst_36 = arith.constant dense<0.000000e+00> : vector<256x8xf32>
    %33 = tpu.matmul %30, %32, %cst_36 {dimension_numbers = #tpu.dot_dimension_numbers<[1], [0], [0], [1], [0, 0, 1, 1], [], []>} : vector<256x128xbf16>, vector<128x8xbf16>, vector<256x8xf32> -> vector<256x8xf32>
    %34 = arith.addf %27, %33 : vector<256x8xf32>
    %c1_37 = arith.constant 1 : index
    %c0_38 = arith.constant 0 : index
    %c0_39 = arith.constant 0 : index
    %35 = vector.load %arg8[%c1_37, %c0_38, %c0_39] : memref<18x18x128xf32, #tpu.memory_space<vmem>>, vector<16x16x128xf32>
    %36 = vector.shape_cast %35 : vector<16x16x128xf32> to vector<256x128xf32>
    %37 = arith.truncf %36 : vector<256x128xf32> to vector<256x128xbf16>
    %c1_40 = arith.constant 1 : index
    %c0_41 = arith.constant 0 : index
    %c0_42 = arith.constant 0 : index
    %c0_43 = arith.constant 0 : index
    %38 = vector.load %arg5[%c1_40, %c0_41, %c0_42, %c0_43] : memref<3x3x128x8xbf16, #tpu.memory_space<vmem>>, vector<1x1x128x8xbf16>
    %39 = vector.shape_cast %38 : vector<1x1x128x8xbf16> to vector<128x8xbf16>
    %cst_44 = arith.constant dense<0.000000e+00> : vector<256x8xf32>
    %40 = tpu.matmul %37, %39, %cst_44 {dimension_numbers = #tpu.dot_dimension_numbers<[1], [0], [0], [1], [0, 0, 1, 1], [], []>} : vector<256x128xbf16>, vector<128x8xbf16>, vector<256x8xf32> -> vector<256x8xf32>
    %41 = arith.addf %34, %40 : vector<256x8xf32>
    %c1_45 = arith.constant 1 : index
    %c1_46 = arith.constant 1 : index
    %c0_47 = arith.constant 0 : index
    %42 = vector.load %arg8[%c1_45, %c1_46, %c0_47] : memref<18x18x128xf32, #tpu.memory_space<vmem>>, vector<16x16x128xf32>
    %43 = vector.shape_cast %42 : vector<16x16x128xf32> to vector<256x128xf32>
    %44 = arith.truncf %43 : vector<256x128xf32> to vector<256x128xbf16>
    %c1_48 = arith.constant 1 : index
    %c1_49 = arith.constant 1 : index
    %c0_50 = arith.constant 0 : index
    %c0_51 = arith.constant 0 : index
    %45 = vector.load %arg5[%c1_48, %c1_49, %c0_50, %c0_51] : memref<3x3x128x8xbf16, #tpu.memory_space<vmem>>, vector<1x1x128x8xbf16>
    %46 = vector.shape_cast %45 : vector<1x1x128x8xbf16> to vector<128x8xbf16>
    %cst_52 = arith.constant dense<0.000000e+00> : vector<256x8xf32>
    %47 = tpu.matmul %44, %46, %cst_52 {dimension_numbers = #tpu.dot_dimension_numbers<[1], [0], [0], [1], [0, 0, 1, 1], [], []>} : vector<256x128xbf16>, vector<128x8xbf16>, vector<256x8xf32> -> vector<256x8xf32>
    %48 = arith.addf %41, %47 : vector<256x8xf32>
    %c1_53 = arith.constant 1 : index
    %c2_54 = arith.constant 2 : index
    %c0_55 = arith.constant 0 : index
    %49 = vector.load %arg8[%c1_53, %c2_54, %c0_55] : memref<18x18x128xf32, #tpu.memory_space<vmem>>, vector<16x16x128xf32>
    %50 = vector.shape_cast %49 : vector<16x16x128xf32> to vector<256x128xf32>
    %51 = arith.truncf %50 : vector<256x128xf32> to vector<256x128xbf16>
    %c1_56 = arith.constant 1 : index
    %c2_57 = arith.constant 2 : index
    %c0_58 = arith.constant 0 : index
    %c0_59 = arith.constant 0 : index
    %52 = vector.load %arg5[%c1_56, %c2_57, %c0_58, %c0_59] : memref<3x3x128x8xbf16, #tpu.memory_space<vmem>>, vector<1x1x128x8xbf16>
    %53 = vector.shape_cast %52 : vector<1x1x128x8xbf16> to vector<128x8xbf16>
    %cst_60 = arith.constant dense<0.000000e+00> : vector<256x8xf32>
    %54 = tpu.matmul %51, %53, %cst_60 {dimension_numbers = #tpu.dot_dimension_numbers<[1], [0], [0], [1], [0, 0, 1, 1], [], []>} : vector<256x128xbf16>, vector<128x8xbf16>, vector<256x8xf32> -> vector<256x8xf32>
    %55 = arith.addf %48, %54 : vector<256x8xf32>
    %c2_61 = arith.constant 2 : index
    %c0_62 = arith.constant 0 : index
    %c0_63 = arith.constant 0 : index
    %56 = vector.load %arg8[%c2_61, %c0_62, %c0_63] : memref<18x18x128xf32, #tpu.memory_space<vmem>>, vector<16x16x128xf32>
    %57 = vector.shape_cast %56 : vector<16x16x128xf32> to vector<256x128xf32>
    %58 = arith.truncf %57 : vector<256x128xf32> to vector<256x128xbf16>
    %c2_64 = arith.constant 2 : index
    %c0_65 = arith.constant 0 : index
    %c0_66 = arith.constant 0 : index
    %c0_67 = arith.constant 0 : index
    %59 = vector.load %arg5[%c2_64, %c0_65, %c0_66, %c0_67] : memref<3x3x128x8xbf16, #tpu.memory_space<vmem>>, vector<1x1x128x8xbf16>
    %60 = vector.shape_cast %59 : vector<1x1x128x8xbf16> to vector<128x8xbf16>
    %cst_68 = arith.constant dense<0.000000e+00> : vector<256x8xf32>
    %61 = tpu.matmul %58, %60, %cst_68 {dimension_numbers = #tpu.dot_dimension_numbers<[1], [0], [0], [1], [0, 0, 1, 1], [], []>} : vector<256x128xbf16>, vector<128x8xbf16>, vector<256x8xf32> -> vector<256x8xf32>
    %62 = arith.addf %55, %61 : vector<256x8xf32>
    %c2_69 = arith.constant 2 : index
    %c1_70 = arith.constant 1 : index
    %c0_71 = arith.constant 0 : index
    %63 = vector.load %arg8[%c2_69, %c1_70, %c0_71] : memref<18x18x128xf32, #tpu.memory_space<vmem>>, vector<16x16x128xf32>
    %64 = vector.shape_cast %63 : vector<16x16x128xf32> to vector<256x128xf32>
    %65 = arith.truncf %64 : vector<256x128xf32> to vector<256x128xbf16>
    %c2_72 = arith.constant 2 : index
    %c1_73 = arith.constant 1 : index
    %c0_74 = arith.constant 0 : index
    %c0_75 = arith.constant 0 : index
    %66 = vector.load %arg5[%c2_72, %c1_73, %c0_74, %c0_75] : memref<3x3x128x8xbf16, #tpu.memory_space<vmem>>, vector<1x1x128x8xbf16>
    %67 = vector.shape_cast %66 : vector<1x1x128x8xbf16> to vector<128x8xbf16>
    %cst_76 = arith.constant dense<0.000000e+00> : vector<256x8xf32>
    %68 = tpu.matmul %65, %67, %cst_76 {dimension_numbers = #tpu.dot_dimension_numbers<[1], [0], [0], [1], [0, 0, 1, 1], [], []>} : vector<256x128xbf16>, vector<128x8xbf16>, vector<256x8xf32> -> vector<256x8xf32>
    %69 = arith.addf %62, %68 : vector<256x8xf32>
    %c2_77 = arith.constant 2 : index
    %c2_78 = arith.constant 2 : index
    %c0_79 = arith.constant 0 : index
    %70 = vector.load %arg8[%c2_77, %c2_78, %c0_79] : memref<18x18x128xf32, #tpu.memory_space<vmem>>, vector<16x16x128xf32>
    %71 = vector.shape_cast %70 : vector<16x16x128xf32> to vector<256x128xf32>
    %72 = arith.truncf %71 : vector<256x128xf32> to vector<256x128xbf16>
    %c2_80 = arith.constant 2 : index
    %c2_81 = arith.constant 2 : index
    %c0_82 = arith.constant 0 : index
    %c0_83 = arith.constant 0 : index
    %73 = vector.load %arg5[%c2_80, %c2_81, %c0_82, %c0_83] : memref<3x3x128x8xbf16, #tpu.memory_space<vmem>>, vector<1x1x128x8xbf16>
    %74 = vector.shape_cast %73 : vector<1x1x128x8xbf16> to vector<128x8xbf16>
    %cst_84 = arith.constant dense<0.000000e+00> : vector<256x8xf32>
    %75 = tpu.matmul %72, %74, %cst_84 {dimension_numbers = #tpu.dot_dimension_numbers<[1], [0], [0], [1], [0, 0, 1, 1], [], []>} : vector<256x128xbf16>, vector<128x8xbf16>, vector<256x8xf32> -> vector<256x8xf32>
    %76 = arith.addf %69, %75 : vector<256x8xf32>
    %77 = tpu.transpose %76, [1, 0] : vector<256x8xf32> -> vector<8x256xf32>
    %c0_85 = arith.constant 0 : index
    %c0_86 = arith.constant 0 : index
    %78 = vector.load %arg6[%c0_85, %c0_86] : memref<8x1xf32, #tpu.memory_space<vmem>>, vector<8x1xf32>
    %79 = vector.broadcast %78 : vector<8x1xf32> to vector<8x256xf32>
    %80 = arith.addf %77, %79 : vector<8x256xf32>
    %81 = vector.extract_strided_slice %80 {offsets = [0, 0], sizes = [4, 256], strides = [1, 1]} : vector<8x256xf32> to vector<4x256xf32>
    %82 = vector.extract_strided_slice %80 {offsets = [4, 0], sizes = [4, 256], strides = [1, 1]} : vector<8x256xf32> to vector<4x256xf32>
    %c0_87 = arith.constant 0 : index
    %c0_88 = arith.constant 0 : index
    %c0_89 = arith.constant 0 : index
    %83 = vector.load %arg1[%c0_87, %c0_88, %c0_89] : memref<1x4x256xf32, #tpu.memory_space<vmem>>, vector<1x4x256xf32>
    %84 = vector.shape_cast %83 : vector<1x4x256xf32> to vector<4x256xf32>
    %cst_90 = arith.constant dense<0.000000e+00> : vector<4xf32>
    %85 = vector.multi_reduction <add>, %84, %cst_90 [1] : vector<4x256xf32> to vector<4xf32>
    %86 = vector.shape_cast %85 : vector<4xf32> to vector<4x1xf32>
    %cst_91 = arith.constant 2.560000e+02 : f32
    %87 = vector.broadcast %cst_91 : f32 to vector<4x1xf32>
    %88 = arith.divf %86, %87 : vector<4x1xf32>
    %89 = arith.mulf %84, %84 : vector<4x256xf32>
    %cst_92 = arith.constant dense<0.000000e+00> : vector<4xf32>
    %90 = vector.multi_reduction <add>, %89, %cst_92 [1] : vector<4x256xf32> to vector<4xf32>
    %91 = vector.shape_cast %90 : vector<4xf32> to vector<4x1xf32>
    %cst_93 = arith.constant 2.560000e+02 : f32
    %92 = vector.broadcast %cst_93 : f32 to vector<4x1xf32>
    %93 = arith.divf %91, %92 : vector<4x1xf32>
    %94 = arith.mulf %88, %88 : vector<4x1xf32>
    %95 = arith.subf %93, %94 : vector<4x1xf32>
    %cst_94 = arith.constant 9.99999974E-6 : f32
    %96 = vector.broadcast %cst_94 : f32 to vector<4x1xf32>
    %97 = arith.addf %95, %96 : vector<4x1xf32>
    %98 = math.rsqrt %97 : vector<4x1xf32>
    %99 = vector.broadcast %88 : vector<4x1xf32> to vector<4x256xf32>
    %100 = arith.subf %84, %99 : vector<4x256xf32>
    %101 = vector.broadcast %98 : vector<4x1xf32> to vector<4x256xf32>
    %102 = arith.mulf %100, %101 : vector<4x256xf32>
    %103 = arith.mulf %102, %81 : vector<4x256xf32>
    %104 = arith.addf %103, %82 : vector<4x256xf32>
    %c0_95 = arith.constant 0 : index
    %c0_96 = arith.constant 0 : index
    %c0_97 = arith.constant 0 : index
    %105 = vector.load %arg7[%c0_95, %c0_96, %c0_97] : memref<1x4x256xf32, #tpu.memory_space<vmem>>, vector<1x4x256xf32>
    %106 = vector.shape_cast %105 : vector<1x4x256xf32> to vector<4x256xf32>
    %107 = vector.shape_cast %104 : vector<4x256xf32> to vector<1x4x256xf32>
    tpu.vector_store %arg7[%c0_95, %c0_96, %c0_97], %107 {strides = array<i32>} : memref<1x4x256xf32, #tpu.memory_space<vmem>>, vector<1x4x256xf32>,
    return
  }
  func.func @transform_0(%arg0: i32) -> (i32, i32, i32) {
    %c0_i32 = arith.constant 0 : i32
    %c0_i32_0 = arith.constant 0 : i32
    %c0_i32_1 = arith.constant 0 : i32
    return %arg0, %c0_i32, %c0_i32_0 : i32, i32, i32
  }
  func.func @transform_1(%arg0: i32) -> (i32, i32, i32) {
    %c0_i32 = arith.constant 0 : i32
    %c0_i32_0 = arith.constant 0 : i32
    %c0_i32_1 = arith.constant 0 : i32
    return %arg0, %c0_i32, %c0_i32_0 : i32, i32, i32
  }
  func.func @transform_2(%arg0: i32) -> (i32, i32) {
    %c0_i32 = arith.constant 0 : i32
    %c0_i32_0 = arith.constant 0 : i32
    %c0_i32_1 = arith.constant 0 : i32
    return %c0_i32, %c0_i32_0 : i32, i32
  }
  func.func @transform_3(%arg0: i32) -> (i32, i32) {
    %c0_i32 = arith.constant 0 : i32
    %c0_i32_0 = arith.constant 0 : i32
    %c0_i32_1 = arith.constant 0 : i32
    return %c0_i32, %c0_i32_0 : i32, i32
  }
  func.func @transform_4(%arg0: i32) -> (i32, i32, i32, i32) {
    %c0_i32 = arith.constant 0 : i32
    %c0_i32_0 = arith.constant 0 : i32
    %c0_i32_1 = arith.constant 0 : i32
    %c0_i32_2 = arith.constant 0 : i32
    %c0_i32_3 = arith.constant 0 : i32
    return %c0_i32, %c0_i32_0, %c0_i32_1, %c0_i32_2 : i32, i32, i32, i32
  }
  func.func @transform_5(%arg0: i32) -> (i32, i32) {
    %c0_i32 = arith.constant 0 : i32
    %c0_i32_0 = arith.constant 0 : i32
    %c0_i32_1 = arith.constant 0 : i32
    return %c0_i32, %c0_i32_0 : i32, i32
  }
  func.func @transform_6(%arg0: i32) -> (i32, i32, i32) {
    %c0_i32 = arith.constant 0 : i32
    %c0_i32_0 = arith.constant 0 : i32
    %c0_i32_1 = arith.constant 0 : i32
    return %arg0, %c0_i32, %c0_i32_0 : i32, i32, i32
  }
}

</mosaic_0001>

<llo_original>
// kernel: a_call__.1
$region0: #{a_call__.1}
  #allocation0 [shape = 'u32[]', space=smem, size = 0x4, offset = 0x4, fixed_abs, tag = 'smem constant byte address 0x4 - core index']
  #allocation1 [shape = 'u32[144,128]{1,0:T(1,128)}', space=vmem, size = 0x12000, scoped, tag = 'internal scratch']
  #allocation2 [shape = 'f32[18,18,128]{2,1,0:T(8,128)}', space=vmem, size = 0x36000, scoped, tag = 'scratch operand']
  %s0 = inlined_call_operand.vmem [shape: f32[2,4,256], index: 0, kind: input, shape index: {}]
  %s1 = inlined_call_operand.vmem [shape: bf16[2,256,32], index: 1, kind: input, shape index: {}]
  %s2 = inlined_call_operand.vmem [shape: bf16[32,128], index: 2, kind: input, shape index: {}]
  %s3 = inlined_call_operand.vmem [shape: f32[1,128], index: 3, kind: input, shape index: {}]
  %s4 = inlined_call_operand.vmem [shape: bf16[3,3,128,8], index: 4, kind: input, shape index: {}]
  %s5 = inlined_call_operand.vmem [shape: f32[8,1], index: 5, kind: input, shape index: {}]
  %s6 = inlined_call_operand.vmem [shape: f32[2,4,256], index: 6, kind: output, shape index: {}]
  %s7 = sld [smem:[#allocation0]]
  $region57: #{a_call__.1} parent=0
    _
  %s9 = ssub.s32 1, %s7
  %s10 = scalar_select 0, %s9, %s7
  loop: start=0, step=1, limit=4
  $region2: #{a_call__.1} parent=0 // loop_pre_header
    _
  $region3: #{a_call__.1} parent=0 // loop_header
    %s12 = sphi 0, %s16
    %p13 = scmp.ge.s32.totalorder %s12, 4
    %s22 = sphi 0, %s24
    %s25 = sphi 0, %s22
    %s26 = sphi 0, %s25
    %s42 = sphi 0, %s26
    %s48 = sphi 0, %s50
    %s51 = sphi 0, %s48
    %s52 = sphi 0, %s51
    %s68 = sphi 0, %s52
    %s72 = sphi 0, %s72
    %s74 = sphi 0, %s72
    %s75 = sphi 0, %s74
    %s89 = sphi 0, %s75
    %s93 = sphi 0, %s93
    %s95 = sphi 0, %s93
    %s96 = sphi 0, %s95
    %s110 = sphi 0, %s96
    %s114 = sphi 0, %s114
    %s116 = sphi 0, %s114
    %s117 = sphi 0, %s116
    %s131 = sphi 0, %s117
    %s135 = sphi 0, %s135
    %s137 = sphi 0, %s135
    %s138 = sphi 0, %s137
    %s152 = sphi 0, %s138
    %s158 = sphi 0, %s160
    %s161 = sphi 0, %s158
    %s162 = sphi 0, %s161
    %s178 = sphi 0, %s162
  $region4: #{a_call__.1} parent=0 // loop_header_branch
    %15 = sbr.rel (%p13) target = $region8
  $region5: #{a_call__.1} parent=0 // loop_body
    %s17 = ssub.s32 %s12, 1
    %s18 = ssub.s32 %s12, 2
    %s19 = sadd.s32 %s12, 1
    %s20 = ssub.s32 %s12, %s19
    %p21 = scmp.eq.s32.totalorder %s20, 0
    %s23 = sadd.s32 %s22, 1
    %s24 = scalar_select %p21, %s22, %s23
    %p27 = pneg %p21
    %p28 = scmp.eq.s32.totalorder %s12, 1
    %p29 = por %p27, %p28
    %p30 = scmp.ne.s32.totalorder %s22, %s25
    %p31 = scmp.eq.s32.totalorder %s12, 0
    %p32 = por %p30, %p31
    %p33 = scmp.ne.s32.totalorder %s22, %s25
    %p34 = scmp.eq.s32.totalorder %s17, 1
    %p35 = por %p33, %p34
    %p36 = scmp.ne.s32.totalorder %s25, %s26
    %p37 = scmp.eq.s32.totalorder %s17, 0
    %p38 = por %p36, %p37
    %p39 = scmp.ne.s32.totalorder %s25, %s26
    %p40 = scmp.eq.s32.totalorder %s18, 1
    %p41 = por %p39, %p40
    %p43 = scmp.ne.s32.totalorder %s26, %s42
    %p44 = scmp.eq.s32.totalorder %s18, 0
    %p45 = por %p43, %p44
    %s46 = ssub.s32 %s12, %s19
    %p47 = scmp.eq.s32.totalorder %s46, 0
    %s49 = sadd.s32 %s48, 1
    %s50 = scalar_select %p47, %s48, %s49
    %p53 = pneg %p47
    %p54 = scmp.eq.s32.totalorder %s12, 1
    %p55 = por %p53, %p54
    %p56 = scmp.ne.s32.totalorder %s48, %s51
    %p57 = scmp.eq.s32.totalorder %s12, 0
    %p58 = por %p56, %p57
    %p59 = scmp.ne.s32.totalorder %s48, %s51
    %p60 = scmp.eq.s32.totalorder %s17, 1
    %p61 = por %p59, %p60
    %p62 = scmp.ne.s32.totalorder %s51, %s52
    %p63 = scmp.eq.s32.totalorder %s17, 0
    %p64 = por %p62, %p63
    %p65 = scmp.ne.s32.totalorder %s51, %s52
    %p66 = scmp.eq.s32.totalorder %s18, 1
    %p67 = por %p65, %p66
    %p69 = scmp.ne.s32.totalorder %s52, %s68
    %p70 = scmp.eq.s32.totalorder %s18, 0
    %p71 = por %p69, %p70
    %s73 = sadd.s32 %s72, 1
    %p76 = scmp.eq.s32.totalorder %s12, 1
    %p77 = scmp.ne.s32.totalorder %s72, %s74
    %p78 = scmp.eq.s32.totalorder %s12, 0
    %p79 = por %p77, %p78
    %p80 = scmp.ne.s32.totalorder %s72, %s74
    %p81 = scmp.eq.s32.totalorder %s17, 1
    %p82 = por %p80, %p81
    %p83 = scmp.ne.s32.totalorder %s74, %s75
    %p84 = scmp.eq.s32.totalorder %s17, 0
    %p85 = por %p83, %p84
    %p86 = scmp.ne.s32.totalorder %s74, %s75
    %p87 = scmp.eq.s32.totalorder %s18, 1
    %p88 = por %p86, %p87
    %p90 = scmp.ne.s32.totalorder %s75, %s89
    %p91 = scmp.eq.s32.totalorder %s18, 0
    %p92 = por %p90, %p91
    %s94 = sadd.s32 %s93, 1
    %p97 = scmp.eq.s32.totalorder %s12, 1
    %p98 = scmp.ne.s32.totalorder %s93, %s95
    %p99 = scmp.eq.s32.totalorder %s12, 0
    %p100 = por %p98, %p99
    %p101 = scmp.ne.s32.totalorder %s93, %s95
    %p102 = scmp.eq.s32.totalorder %s17, 1
    %p103 = por %p101, %p102
    %p104 = scmp.ne.s32.totalorder %s95, %s96
    %p105 = scmp.eq.s32.totalorder %s17, 0
    %p106 = por %p104, %p105
    %p107 = scmp.ne.s32.totalorder %s95, %s96
    %p108 = scmp.eq.s32.totalorder %s18, 1
    %p109 = por %p107, %p108
    %p111 = scmp.ne.s32.totalorder %s96, %s110
    %p112 = scmp.eq.s32.totalorder %s18, 0
    %p113 = por %p111, %p112
    %s115 = sadd.s32 %s114, 1
    %p118 = scmp.eq.s32.totalorder %s12, 1
    %p119 = scmp.ne.s32.totalorder %s114, %s116
    %p120 = scmp.eq.s32.totalorder %s12, 0
    %p121 = por %p119, %p120
    %p122 = scmp.ne.s32.totalorder %s114, %s116
    %p123 = scmp.eq.s32.totalorder %s17, 1
    %p124 = por %p122, %p123
    %p125 = scmp.ne.s32.totalorder %s116, %s117
    %p126 = scmp.eq.s32.totalorder %s17, 0
    %p127 = por %p125, %p126
    %p128 = scmp.ne.s32.totalorder %s116, %s117
    %p129 = scmp.eq.s32.totalorder %s18, 1
    %p130 = por %p128, %p129
    %p132 = scmp.ne.s32.totalorder %s117, %s131
    %p133 = scmp.eq.s32.totalorder %s18, 0
    %p134 = por %p132, %p133
    %s136 = sadd.s32 %s135, 1
    %p139 = scmp.eq.s32.totalorder %s12, 1
    %p140 = scmp.ne.s32.totalorder %s135, %s137
    %p141 = scmp.eq.s32.totalorder %s12, 0
    %p142 = por %p140, %p141
    %p143 = scmp.ne.s32.totalorder %s135, %s137
    %p144 = scmp.eq.s32.totalorder %s17, 1
    %p145 = por %p143, %p144
    %p146 = scmp.ne.s32.totalorder %s137, %s138
    %p147 = scmp.eq.s32.totalorder %s17, 0
    %p148 = por %p146, %p147
    %p149 = scmp.ne.s32.totalorder %s137, %s138
    %p150 = scmp.eq.s32.totalorder %s18, 1
    %p151 = por %p149, %p150
    %p153 = scmp.ne.s32.totalorder %s138, %s152
    %p154 = scmp.eq.s32.totalorder %s18, 0
    %p155 = por %p153, %p154
    %s156 = ssub.s32 %s12, %s19
    %p157 = scmp.eq.s32.totalorder %s156, 0
    %s159 = sadd.s32 %s158, 1
    %s160 = scalar_select %p157, %s158, %s159
    %p163 = pneg %p157
    %p164 = scmp.eq.s32.totalorder %s12, 1
    %p165 = por %p163, %p164
    %p166 = scmp.ne.s32.totalorder %s158, %s161
    %p167 = scmp.eq.s32.totalorder %s12, 0
    %p168 = por %p166, %p167
    %p169 = scmp.ne.s32.totalorder %s158, %s161
    %p170 = scmp.eq.s32.totalorder %s17, 1
    %p171 = por %p169, %p170
    %p172 = scmp.ne.s32.totalorder %s161, %s162
    %p173 = scmp.eq.s32.totalorder %s17, 0
    %p174 = por %p172, %p173
    %p175 = scmp.ne.s32.totalorder %s161, %s162
    %p176 = scmp.eq.s32.totalorder %s18, 1
    %p177 = por %p175, %p176
    %p179 = scmp.ne.s32.totalorder %s162, %s178
    %p180 = scmp.eq.s32.totalorder %s18, 0
    %p181 = por %p179, %p180
    %p182 = scmp.le.s32.totalorder 1, %s12
    %p183 = scmp.lt.s32.totalorder %s12, 3
    %p184 = pnand %p182, %p183
    %p185 = pneg %p184
    // Predicated region
    $region9: #{a_call__.1} parent=5 // pred_check
      _
    $region10: #{a_call__.1} parent=5 // pred_check_branch
      %187 = sbr.rel (%p184) target = $region12
    $region11: #{a_call__.1} parent=5 // pred_region
      %s188 = ssub.s32 %s12, 1
      // Predicated region
      $region13: #{a_call__.1} parent=11 // pred_check
        %p189 = pneg %p85
      $region14: #{a_call__.1} parent=11 // pred_check_branch
        %191 = sbr.rel (%p189) target = $region16
      $region15: #{a_call__.1} parent=11 // pred_region
        _
      $region16: #{a_call__.1} parent=11 // pred_fallthru
        _
      // Predicated region
      $region17: #{a_call__.1} parent=11 // pred_check
        %p192 = pneg %p106
      $region18: #{a_call__.1} parent=11 // pred_check_branch
        %194 = sbr.rel (%p192) target = $region20
      $region19: #{a_call__.1} parent=11 // pred_region
        _
      $region20: #{a_call__.1} parent=11 // pred_fallthru
        _
      // Predicated region
      $region21: #{a_call__.1} parent=11 // pred_check
        %p195 = pneg %p127
      $region22: #{a_call__.1} parent=11 // pred_check_branch
        %197 = sbr.rel (%p195) target = $region24
      $region23: #{a_call__.1} parent=11 // pred_region
        _
      $region24: #{a_call__.1} parent=11 // pred_fallthru
        _
      // Predicated region
      $region25: #{a_call__.1} parent=11 // pred_check
        %p198 = pneg %p148
      $region26: #{a_call__.1} parent=11 // pred_check_branch
        %200 = sbr.rel (%p198) target = $region28
      $region27: #{a_call__.1} parent=11 // pred_region
        _
      $region28: #{a_call__.1} parent=11 // pred_fallthru
        _
    $region12: #{a_call__.1} parent=5 // pred_fallthru
      _
    %p201 = scmp.lt.s32.totalorder %s12, 2
    // Predicated region
    $region29: #{a_call__.1} parent=5 // pred_check
      %p202 = pneg %p201
    $region30: #{a_call__.1} parent=5 // pred_check_branch
      %204 = sbr.rel (%p202) target = $region32
    $region31: #{a_call__.1} parent=5 // pred_region
      // Predicated region
      $region33: #{a_call__.1} parent=31 // pred_check
        %p205 = pneg %p32
      $region34: #{a_call__.1} parent=31 // pred_check_branch
        %207 = sbr.rel (%p205) target = $region36
      $region35: #{a_call__.1} parent=31 // pred_region
        %p208 = scmp.lt.s32.totalorder %s12, 1
        %s209 = scalar_select %p208, %s12, 1
        %s210 = smul.addr %s209, 2
        %s211 = smul.addr %s210, 4
        %s212 = scalar_lea.vmem %s0, %s211
      $region36: #{a_call__.1} parent=31 // pred_fallthru
        _
      // Predicated region
      $region37: #{a_call__.1} parent=31 // pred_check
        %p213 = pneg %p58
      $region38: #{a_call__.1} parent=31 // pred_check_branch
        %215 = sbr.rel (%p213) target = $region40
      $region39: #{a_call__.1} parent=31 // pred_region
        %p216 = scmp.lt.s32.totalorder %s12, 1
        %s217 = scalar_select %p216, %s12, 1
        %s218 = smul.addr %s217, 32
        %s219 = smul.addr %s218, 4
        %s220 = scalar_lea.vmem %s1, %s219
      $region40: #{a_call__.1} parent=31 // pred_fallthru
        _
    $region32: #{a_call__.1} parent=5 // pred_fallthru
      _
    %p221 = scmp.le.s32.totalorder 1, %s12
    %p222 = scmp.lt.s32.totalorder %s12, 3
    %p223 = pnand %p221, %p222
    %p224 = pneg %p223
    // Predicated region
    $region41: #{a_call__.1} parent=5 // pred_check
      _
    $region42: #{a_call__.1} parent=5 // pred_check_branch
      %226 = sbr.rel (%p223) target = $region44
    $region43: #{a_call__.1} parent=5 // pred_region
      %s227 = ssub.s32 %s12, 1
      %p228 = scmp.lt.s32.totalorder %s17, 1
      %s229 = scalar_select %p228, %s17, 1
      %s230 = smul.addr %s229, 2
      %s231 = smul.addr %s230, 4
      %s232 = scalar_lea.vmem %s0, %s231
      %p233 = pneg %p38
      %p234 = pneg %p35
      %p235 = scmp.lt.s32.totalorder %s17, 1
      %s236 = scalar_select %p235, %s17, 1
      %s237 = smul.addr %s236, 32
      %s238 = smul.addr %s237, 4
      %s239 = scalar_lea.vmem %s1, %s238
      %p240 = pneg %p64
      %p241 = pneg %p61
      %p242 = pneg %p85
      %p243 = pneg %p82
      %p244 = pneg %p106
      %p245 = pneg %p103
      %p246 = pneg %p127
      %p247 = pneg %p124
      %p248 = pneg %p148
      %p249 = pneg %p145
      %p250 = pneg %p174
      %p251 = pneg %p171
      %p252 = scmp.lt.s32.totalorder %s17, 1
      %s253 = scalar_select %p252, %s17, 1
      %s254 = smul.addr %s253, 2
      %s255 = smul.addr %s254, 4
      %s256 = scalar_lea.vmem %s6, %s255
      %p257 = scmp.lt.s32.totalorder %s17, 1
      %s258 = scalar_select %p257, %s17, 1
      %s259 = smul.addr %s258, 2
      %s260 = smul.addr %s259, 4
      %s261 = scalar_lea.vmem %s0, %s260
      %p262 = scmp.lt.s32.totalorder %s17, 1
      %s263 = scalar_select %p262, %s17, 1
      %s264 = smul.addr %s263, 32
      %s265 = smul.addr %s264, 4
      %s266 = scalar_lea.vmem %s1, %s265
      %p267 = scmp.lt.s32.totalorder %s17, 1
      %s268 = scalar_select %p267, %s17, 1
      %s269 = smul.addr %s268, 2
      %s270 = smul.addr %s269, 4
      %s271 = scalar_lea.vmem %s6, %s270
      %v273 = vld [vmem:[%s266] sm:$0xf]
      %v274 = vld [vmem:[%s266 + $0x4] sm:$0xf]
      %v275 = vld [vmem:[%s266 + $0x8] sm:$0xf]
      %v276 = vld [vmem:[%s266 + $0xc] sm:$0xf]
      %v277 = vld [vmem:[%s266 + $0x10] sm:$0xf]
      %v278 = vld [vmem:[%s266 + $0x14] sm:$0xf]
      %v279 = vld [vmem:[%s266 + $0x18] sm:$0xf]
      %v280 = vld [vmem:[%s266 + $0x1c] sm:$0xf]
      %v281 = vld [vmem:[%s266 + $0x20] sm:$0xf]
      %v282 = vld [vmem:[%s266 + $0x24] sm:$0xf]
      %v283 = vld [vmem:[%s266 + $0x28] sm:$0xf]
      %v284 = vld [vmem:[%s266 + $0x2c] sm:$0xf]
      %v285 = vld [vmem:[%s266 + $0x30] sm:$0xf]
      %v286 = vld [vmem:[%s266 + $0x34] sm:$0xf]
      %v287 = vld [vmem:[%s266 + $0x38] sm:$0xf]
      %v288 = vld [vmem:[%s266 + $0x3c] sm:$0xf]
      %v289 = vld [vmem:[%s266 + $0x40] sm:$0xf]
      %v290 = vld [vmem:[%s266 + $0x44] sm:$0xf]
      %v291 = vld [vmem:[%s266 + $0x48] sm:$0xf]
      %v292 = vld [vmem:[%s266 + $0x4c] sm:$0xf]
      %v293 = vld [vmem:[%s266 + $0x50] sm:$0xf]
      %v294 = vld [vmem:[%s266 + $0x54] sm:$0xf]
      %v295 = vld [vmem:[%s266 + $0x58] sm:$0xf]
      %v296 = vld [vmem:[%s266 + $0x5c] sm:$0xf]
      %v297 = vld [vmem:[%s266 + $0x60] sm:$0xf]
      %v298 = vld [vmem:[%s266 + $0x64] sm:$0xf]
      %v299 = vld [vmem:[%s266 + $0x68] sm:$0xf]
      %v300 = vld [vmem:[%s266 + $0x6c] sm:$0xf]
      %v301 = vld [vmem:[%s266 + $0x70] sm:$0xf]
      %v302 = vld [vmem:[%s266 + $0x74] sm:$0xf]
      %v303 = vld [vmem:[%s266 + $0x78] sm:$0xf]
      %v304 = vld [vmem:[%s266 + $0x7c] sm:$0xf]
      %v305 = vld [vmem:[%s2] sm:$0xf]
      %v306 = vld [vmem:[%s2 + $0x4] sm:$0xf]
      %v307 = vld [vmem:[%s2 + $0x8] sm:$0xf]
      %v308 = vld [vmem:[%s2 + $0xc] sm:$0xf]
      %v309 = vld [vmem:[%s3] sm:$0x1]
      %v311 = vlaneseq
      %v312 = vshrl.u32 %v311, 7
      %v313 = vsub.s32 0, %v312
      %v314 = vrot.slane %v309, %v313
      %v348 = vunpack.c.l.b16 %v273
      %v349 = vunpack.c.l.b16 %v274
      %v350 = vunpack.c.l.b16 %v275
      %v351 = vunpack.c.l.b16 %v276
      %v352 = vunpack.c.l.b16 %v277
      %v353 = vunpack.c.l.b16 %v278
      %v354 = vunpack.c.l.b16 %v279
      %v355 = vunpack.c.l.b16 %v280
      %v356 = vunpack.c.l.b16 %v281
      %v357 = vunpack.c.l.b16 %v282
      %v358 = vunpack.c.l.b16 %v283
      %v359 = vunpack.c.l.b16 %v284
      %v360 = vunpack.c.l.b16 %v285
      %v361 = vunpack.c.l.b16 %v286
      %v362 = vunpack.c.l.b16 %v287
      %v363 = vunpack.c.l.b16 %v288
      %v364 = vunpack.c.l.b16 %v289
      %v365 = vunpack.c.l.b16 %v290
      %v366 = vunpack.c.l.b16 %v291
      %v367 = vunpack.c.l.b16 %v292
      %v368 = vunpack.c.l.b16 %v293
      %v369 = vunpack.c.l.b16 %v294
      %v370 = vunpack.c.l.b16 %v295
      %v371 = vunpack.c.l.b16 %v296
      %v372 = vunpack.c.l.b16 %v297
      %v373 = vunpack.c.l.b16 %v298
      %v374 = vunpack.c.l.b16 %v299
      %v375 = vunpack.c.l.b16 %v300
      %v376 = vunpack.c.l.b16 %v301
      %v377 = vunpack.c.l.b16 %v302
      %v378 = vunpack.c.l.b16 %v303
      %v379 = vunpack.c.l.b16 %v304
      %v380 = vpack.c.b16 %v349, %v348
      %v381 = vpack.c.b16 %v351, %v350
      %v382 = vpack.c.b16 %v353, %v352
      %v383 = vpack.c.b16 %v355, %v354
      %v384 = vpack.c.b16 %v357, %v356
      %v385 = vpack.c.b16 %v359, %v358
      %v386 = vpack.c.b16 %v361, %v360
      %v387 = vpack.c.b16 %v363, %v362
      %v388 = vpack.c.b16 %v365, %v364
      %v389 = vpack.c.b16 %v367, %v366
      %v390 = vpack.c.b16 %v369, %v368
      %v391 = vpack.c.b16 %v371, %v370
      %v392 = vpack.c.b16 %v373, %v372
      %v393 = vpack.c.b16 %v375, %v374
      %v394 = vpack.c.b16 %v377, %v376
      %v395 = vpack.c.b16 %v379, %v378
      %v400 = vunpack.c.l.b16 %v305
      %v401 = vunpack.c.l.b16 %v306
      %v402 = vunpack.c.l.b16 %v307
      %v403 = vunpack.c.l.b16 %v308
      %v404 = vpack.c.b16 %v401, %v400
      %v405 = vpack.c.b16 %v403, %v402
      %vm408 = vcmask 261120
      %v410 = vsel %vm408, %v380, 0
      %v413 = vsel %vm408, %v381, 0
      %v416 = vsel %vm408, %v382, 0
      %v419 = vsel %vm408, %v383, 0
      %v422 = vsel %vm408, %v384, 0
      %v425 = vsel %vm408, %v385, 0
      %v428 = vsel %vm408, %v386, 0
      %v431 = vsel %vm408, %v387, 0
      %v434 = vsel %vm408, %v388, 0
      %v437 = vsel %vm408, %v389, 0
      %v440 = vsel %vm408, %v390, 0
      %v443 = vsel %vm408, %v391, 0
      %v446 = vsel %vm408, %v392, 0
      %v449 = vsel %vm408, %v393, 0
      %v452 = vsel %vm408, %v394, 0
      %v455 = vsel %vm408, %v395, 0
      %457 = vmatprep.subr.bf16.mxu0 0
      %458 = vmatpush1.bf16.msra.mxu0 %v404
      %459 = vmatprep.subr.bf16.mxu0 0
      %460 = vmatpush1.bf16.msra.mxu0 %v405
      %461 = vmatprep.subr.bf16.mxu0 0
      %462 = vmatpush1.bf16.msra.mxu0 0
      %463 = vmatprep.subr.bf16.mxu0 0
      %464 = vmatpush1.bf16.msra.mxu0 0
      %465 = vmatprep.subr.bf16.mxu0 0
      %466 = vmatpush1.bf16.msra.mxu0 0
      %467 = vmatprep.subr.bf16.mxu0 0
      %468 = vmatpush1.bf16.msra.mxu0 0
      %469 = vmatprep.subr.bf16.mxu0 0
      %470 = vmatpush1.bf16.msra.mxu0 0
      %471 = vmatprep.subr.bf16.mxu0 0
      %472 = vmatpush1.bf16.msra.mxu0 0
      %473 = vmatprep.subr.bf16.mxu0 0
      %474 = vmatpush1.bf16.msra.mxu0 0
      %475 = vmatprep.subr.bf16.mxu0 0
      %476 = vmatpush1.bf16.msra.mxu0 0
      %477 = vmatprep.subr.bf16.mxu0 0
      %478 = vmatpush1.bf16.msra.mxu0 0
      %479 = vmatprep.subr.bf16.mxu0 0
      %480 = vmatpush1.bf16.msra.mxu0 0
      %481 = vmatprep.subr.bf16.mxu0 0
      %482 = vmatpush1.bf16.msra.mxu0 0
      %483 = vmatprep.subr.bf16.mxu0 0
      %484 = vmatpush1.bf16.msra.mxu0 0
      %485 = vmatprep.subr.bf16.mxu0 0
      %486 = vmatpush1.bf16.msra.mxu0 0
      %487 = vmatprep.subr.bf16.mxu0 0
      %488 = vmatpush1.bf16.msra.mxu0 0
      %489 = vmatprep.mubr.bf16.mxu0 0
      %490 = vmatmul.mubr.bf16.gmra.mrb[0].mxu0 %v410
      %v491 = vpop.f32.mrb[0].mxu0
      %v492 = vadd.f32 %v314, %v491
      %v493 = vpop.f32.mrb[0].mxu0
      %v494 = vpop.f32.mrb[0].mxu0
      %v495 = vadd.f32 %v314, %v494
      %v496 = vpop.f32.mrb[0].mxu0
      %497 = vmatprep.mubr.bf16.mxu0 0
      %498 = vmatmul.mubr.bf16.gmra.mrb[0].mxu0 %v413
      %v499 = vpop.f32.mrb[0].mxu0
      %v500 = vadd.f32 %v314, %v499
      %v501 = vpop.f32.mrb[0].mxu0
      %v502 = vpop.f32.mrb[0].mxu0
      %v503 = vadd.f32 %v314, %v502
      %v504 = vpop.f32.mrb[0].mxu0
      %505 = vmatprep.mubr.bf16.mxu0 0
      %506 = vmatmul.mubr.bf16.gmra.mrb[0].mxu0 %v416
      %v507 = vpop.f32.mrb[0].mxu0
      %v508 = vadd.f32 %v314, %v507
      %v509 = vpop.f32.mrb[0].mxu0
      %v510 = vpop.f32.mrb[0].mxu0
      %v511 = vadd.f32 %v314, %v510
      %v512 = vpop.f32.mrb[0].mxu0
      %513 = vmatprep.mubr.bf16.mxu0 0
      %514 = vmatmul.mubr.bf16.gmra.mrb[0].mxu0 %v419
      %v515 = vpop.f32.mrb[0].mxu0
      %v516 = vadd.f32 %v314, %v515
      %v517 = vpop.f32.mrb[0].mxu0
      %v518 = vpop.f32.mrb[0].mxu0
      %v519 = vadd.f32 %v314, %v518
      %v520 = vpop.f32.mrb[0].mxu0
      %521 = vmatprep.mubr.bf16.mxu0 0
      %522 = vmatmul.mubr.bf16.gmra.mrb[0].mxu0 %v422
      %v523 = vpop.f32.mrb[0].mxu0
      %v524 = vadd.f32 %v314, %v523
      %v525 = vpop.f32.mrb[0].mxu0
      %v526 = vpop.f32.mrb[0].mxu0
      %v527 = vadd.f32 %v314, %v526
      %v528 = vpop.f32.mrb[0].mxu0
      %529 = vmatprep.mubr.bf16.mxu0 0
      %530 = vmatmul.mubr.bf16.gmra.mrb[0].mxu0 %v425
      %v531 = vpop.f32.mrb[0].mxu0
      %v532 = vadd.f32 %v314, %v531
      %v533 = vpop.f32.mrb[0].mxu0
      %v534 = vpop.f32.mrb[0].mxu0
      %v535 = vadd.f32 %v314, %v534
      %v536 = vpop.f32.mrb[0].mxu0
      %537 = vmatprep.mubr.bf16.mxu0 0
      %538 = vmatmul.mubr.bf16.gmra.mrb[0].mxu0 %v428
      %v539 = vpop.f32.mrb[0].mxu0
      %v540 = vadd.f32 %v314, %v539
      %v541 = vpop.f32.mrb[0].mxu0
      %v542 = vpop.f32.mrb[0].mxu0
      %v543 = vadd.f32 %v314, %v542
      %v544 = vpop.f32.mrb[0].mxu0
      %545 = vmatprep.mubr.bf16.mxu0 0
      %546 = vmatmul.mubr.bf16.gmra.mrb[0].mxu0 %v431
      %v547 = vpop.f32.mrb[0].mxu0
      %v548 = vadd.f32 %v314, %v547
      %v549 = vpop.f32.mrb[0].mxu0
      %v550 = vpop.f32.mrb[0].mxu0
      %v551 = vadd.f32 %v314, %v550
      %v552 = vpop.f32.mrb[0].mxu0
      %553 = vmatprep.mubr.bf16.mxu0 0
      %554 = vmatmul.mubr.bf16.gmra.mrb[0].mxu0 %v434
      %v555 = vpop.f32.mrb[0].mxu0
      %v556 = vadd.f32 %v314, %v555
      %v557 = vpop.f32.mrb[0].mxu0
      %v558 = vpop.f32.mrb[0].mxu0
      %v559 = vadd.f32 %v314, %v558
      %v560 = vpop.f32.mrb[0].mxu0
      %561 = vmatprep.mubr.bf16.mxu0 0
      %562 = vmatmul.mubr.bf16.gmra.mrb[0].mxu0 %v437
      %v563 = vpop.f32.mrb[0].mxu0
      %v564 = vadd.f32 %v314, %v563
      %v565 = vpop.f32.mrb[0].mxu0
      %v566 = vpop.f32.mrb[0].mxu0
      %v567 = vadd.f32 %v314, %v566
      %v568 = vpop.f32.mrb[0].mxu0
      %569 = vmatprep.mubr.bf16.mxu0 0
      %570 = vmatmul.mubr.bf16.gmra.mrb[0].mxu0 %v440
      %v571 = vpop.f32.mrb[0].mxu0
      %v572 = vadd.f32 %v314, %v571
      %v573 = vpop.f32.mrb[0].mxu0
      %v574 = vpop.f32.mrb[0].mxu0
      %v575 = vadd.f32 %v314, %v574
      %v576 = vpop.f32.mrb[0].mxu0
      %577 = vmatprep.mubr.bf16.mxu0 0
      %578 = vmatmul.mubr.bf16.gmra.mrb[0].mxu0 %v443
      %v579 = vpop.f32.mrb[0].mxu0
      %v580 = vadd.f32 %v314, %v579
      %v581 = vpop.f32.mrb[0].mxu0
      %v582 = vpop.f32.mrb[0].mxu0
      %v583 = vadd.f32 %v314, %v582
      %v584 = vpop.f32.mrb[0].mxu0
      %585 = vmatprep.mubr.bf16.mxu0 0
      %586 = vmatmul.mubr.bf16.gmra.mrb[0].mxu0 %v446
      %v587 = vpop.f32.mrb[0].mxu0
      %v588 = vadd.f32 %v314, %v587
      %v589 = vpop.f32.mrb[0].mxu0
      %v590 = vpop.f32.mrb[0].mxu0
      %v591 = vadd.f32 %v314, %v590
      %v592 = vpop.f32.mrb[0].mxu0
      %593 = vmatprep.mubr.bf16.mxu0 0
      %594 = vmatmul.mubr.bf16.gmra.mrb[0].mxu0 %v449
      %v595 = vpop.f32.mrb[0].mxu0
      %v596 = vadd.f32 %v314, %v595
      %v597 = vpop.f32.mrb[0].mxu0
      %v598 = vpop.f32.mrb[0].mxu0
      %v599 = vadd.f32 %v314, %v598
      %v600 = vpop.f32.mrb[0].mxu0
      %601 = vmatprep.mubr.bf16.mxu0 0
      %602 = vmatmul.mubr.bf16.gmra.mrb[0].mxu0 %v452
      %v603 = vpop.f32.mrb[0].mxu0
      %v604 = vadd.f32 %v314, %v603
      %v605 = vpop.f32.mrb[0].mxu0
      %v606 = vpop.f32.mrb[0].mxu0
      %v607 = vadd.f32 %v314, %v606
      %v608 = vpop.f32.mrb[0].mxu0
      %609 = vmatprep.mubr.bf16.mxu0 0
      %610 = vmatmul.mubr.bf16.gmra.mrb[0].mxu0 %v455
      %v611 = vpop.f32.mrb[0].mxu0
      %v612 = vadd.f32 %v314, %v611
      %v613 = vpop.f32.mrb[0].mxu0
      %v614 = vpop.f32.mrb[0].mxu0
      %v615 = vadd.f32 %v314, %v614
      %v616 = vpop.f32.mrb[0].mxu0
      %617 = vdwg.mxu0
      %v618 = vmax.f32 %v492, 0.0
      %v619 = vmax.f32 %v495, 0.0
      %v620 = vmax.f32 %v500, 0.0
      %v621 = vmax.f32 %v503, 0.0
      %v622 = vmax.f32 %v508, 0.0
      %v623 = vmax.f32 %v511, 0.0
      %v624 = vmax.f32 %v516, 0.0
      %v625 = vmax.f32 %v519, 0.0
      %v626 = vmax.f32 %v524, 0.0
      %v627 = vmax.f32 %v527, 0.0
      %v628 = vmax.f32 %v532, 0.0
      %v629 = vmax.f32 %v535, 0.0
      %v630 = vmax.f32 %v540, 0.0
      %v631 = vmax.f32 %v543, 0.0
      %v632 = vmax.f32 %v548, 0.0
      %v633 = vmax.f32 %v551, 0.0
      %v634 = vmax.f32 %v556, 0.0
      %v635 = vmax.f32 %v559, 0.0
      %v636 = vmax.f32 %v564, 0.0
      %v637 = vmax.f32 %v567, 0.0
      %v638 = vmax.f32 %v572, 0.0
      %v639 = vmax.f32 %v575, 0.0
      %v640 = vmax.f32 %v580, 0.0
      %v641 = vmax.f32 %v583, 0.0
      %v642 = vmax.f32 %v588, 0.0
      %v643 = vmax.f32 %v591, 0.0
      %v644 = vmax.f32 %v596, 0.0
      %v645 = vmax.f32 %v599, 0.0
      %v646 = vmax.f32 %v604, 0.0
      %v647 = vmax.f32 %v607, 0.0
      %v648 = vmax.f32 %v612, 0.0
      %v649 = vmax.f32 %v615, 0.0
      %650 = vst [vmem:[#allocation2] sm:$0xff] 0.0
      %651 = vst [vmem:[#allocation2 + $0x8] sm:$0xff] 0.0
      %652 = vst [vmem:[#allocation2 + $0x10] sm:$0x3] 0.0
      %653 = vst [vmem:[#allocation2 + $0x18] sm:$0xff] 0.0
      %654 = vst [vmem:[#allocation2 + $0x20] sm:$0xff] 0.0
      %655 = vst [vmem:[#allocation2 + $0x28] sm:$0x3] 0.0
      %656 = vst [vmem:[#allocation2 + $0x30] sm:$0xff] 0.0
      %657 = vst [vmem:[#allocation2 + $0x38] sm:$0xff] 0.0
      %658 = vst [vmem:[#allocation2 + $0x40] sm:$0x3] 0.0
      %659 = vst [vmem:[#allocation2 + $0x48] sm:$0xff] 0.0
      %660 = vst [vmem:[#allocation2 + $0x50] sm:$0xff] 0.0
      %661 = vst [vmem:[#allocation2 + $0x58] sm:$0x3] 0.0
      %662 = vst [vmem:[#allocation2 + $0x60] sm:$0xff] 0.0
      %663 = vst [vmem:[#allocation2 + $0x68] sm:$0xff] 0.0
      %664 = vst [vmem:[#allocation2 + $0x70] sm:$0x3] 0.0
      %665 = vst [vmem:[#allocation2 + $0x78] sm:$0xff] 0.0
      %666 = vst [vmem:[#allocation2 + $0x80] sm:$0xff] 0.0
      %667 = vst [vmem:[#allocation2 + $0x88] sm:$0x3] 0.0
      %668 = vst [vmem:[#allocation2 + $0x90] sm:$0xff] 0.0
      %669 = vst [vmem:[#allocation2 + $0x98] sm:$0xff] 0.0
      %670 = vst [vmem:[#allocation2 + $0xa0] sm:$0x3] 0.0
      %671 = vst [vmem:[#allocation2 + $0xa8] sm:$0xff] 0.0
      %672 = vst [vmem:[#allocation2 + $0xb0] sm:$0xff] 0.0
      %673 = vst [vmem:[#allocation2 + $0xb8] sm:$0x3] 0.0
      %674 = vst [vmem:[#allocation2 + $0xc0] sm:$0xff] 0.0
      %675 = vst [vmem:[#allocation2 + $0xc8] sm:$0xff] 0.0
      %676 = vst [vmem:[#allocation2 + $0xd0] sm:$0x3] 0.0
      %677 = vst [vmem:[#allocation2 + $0xd8] sm:$0xff] 0.0
      %678 = vst [vmem:[#allocation2 + $0xe0] sm:$0xff] 0.0
      %679 = vst [vmem:[#allocation2 + $0xe8] sm:$0x3] 0.0
      %680 = vst [vmem:[#allocation2 + $0xf0] sm:$0xff] 0.0
      %681 = vst [vmem:[#allocation2 + $0xf8] sm:$0xff] 0.0
      %682 = vst [vmem:[#allocation2 + $0x100] sm:$0x3] 0.0
      %683 = vst [vmem:[#allocation2 + $0x108] sm:$0xff] 0.0
      %684 = vst [vmem:[#allocation2 + $0x110] sm:$0xff] 0.0
      %685 = vst [vmem:[#allocation2 + $0x118] sm:$0x3] 0.0
      %686 = vst [vmem:[#allocation2 + $0x120] sm:$0xff] 0.0
      %687 = vst [vmem:[#allocation2 + $0x128] sm:$0xff] 0.0
      %688 = vst [vmem:[#allocation2 + $0x130] sm:$0x3] 0.0
      %689 = vst [vmem:[#allocation2 + $0x138] sm:$0xff] 0.0
      %690 = vst [vmem:[#allocation2 + $0x140] sm:$0xff] 0.0
      %691 = vst [vmem:[#allocation2 + $0x148] sm:$0x3] 0.0
      %692 = vst [vmem:[#allocation2 + $0x150] sm:$0xff] 0.0
      %693 = vst [vmem:[#allocation2 + $0x158] sm:$0xff] 0.0
      %694 = vst [vmem:[#allocation2 + $0x160] sm:$0x3] 0.0
      %695 = vst [vmem:[#allocation2 + $0x168] sm:$0xff] 0.0
      %696 = vst [vmem:[#allocation2 + $0x170] sm:$0xff] 0.0
      %697 = vst [vmem:[#allocation2 + $0x178] sm:$0x3] 0.0
      %698 = vst [vmem:[#allocation2 + $0x180] sm:$0xff] 0.0
      %699 = vst [vmem:[#allocation2 + $0x188] sm:$0xff] 0.0
      %700 = vst [vmem:[#allocation2 + $0x190] sm:$0x3] 0.0
      %701 = vst [vmem:[#allocation2 + $0x198] sm:$0xff] 0.0
      %702 = vst [vmem:[#allocation2 + $0x1a0] sm:$0xff] 0.0
      %703 = vst [vmem:[#allocation2 + $0x1a8] sm:$0x3] 0.0
      %s704 = scalar_lea.vmem [#allocation2], 24
      %705 = vst [vmem:[%s704 + $0x1] sm:$0xff] %v618
      %706 = vst [vmem:[%s704 + $0x9] sm:$0xff] %v619
      %707 = vst [vmem:[%s704 + $0x19] sm:$0xff] %v620
      %708 = vst [vmem:[%s704 + $0x21] sm:$0xff] %v621
      %709 = vst [vmem:[%s704 + $0x31] sm:$0xff] %v622
      %710 = vst [vmem:[%s704 + $0x39] sm:$0xff] %v623
      %711 = vst [vmem:[%s704 + $0x49] sm:$0xff] %v624
      %712 = vst [vmem:[%s704 + $0x51] sm:$0xff] %v625
      %713 = vst [vmem:[%s704 + $0x61] sm:$0xff] %v626
      %714 = vst [vmem:[%s704 + $0x69] sm:$0xff] %v627
      %715 = vst [vmem:[%s704 + $0x79] sm:$0xff] %v628
      %716 = vst [vmem:[%s704 + $0x81] sm:$0xff] %v629
      %717 = vst [vmem:[%s704 + $0x91] sm:$0xff] %v630
      %718 = vst [vmem:[%s704 + $0x99] sm:$0xff] %v631
      %719 = vst [vmem:[%s704 + $0xa9] sm:$0xff] %v632
      %720 = vst [vmem:[%s704 + $0xb1] sm:$0xff] %v633
      %721 = vst [vmem:[%s704 + $0xc1] sm:$0xff] %v634
      %722 = vst [vmem:[%s704 + $0xc9] sm:$0xff] %v635
      %723 = vst [vmem:[%s704 + $0xd9] sm:$0xff] %v636
      %724 = vst [vmem:[%s704 + $0xe1] sm:$0xff] %v637
      %725 = vst [vmem:[%s704 + $0xf1] sm:$0xff] %v638
      %726 = vst [vmem:[%s704 + $0xf9] sm:$0xff] %v639
      %727 = vst [vmem:[%s704 + $0x109] sm:$0xff] %v640
      %728 = vst [vmem:[%s704 + $0x111] sm:$0xff] %v641
      %729 = vst [vmem:[%s704 + $0x121] sm:$0xff] %v642
      %730 = vst [vmem:[%s704 + $0x129] sm:$0xff] %v643
      %731 = vst [vmem:[%s704 + $0x139] sm:$0xff] %v644
      %732 = vst [vmem:[%s704 + $0x141] sm:$0xff] %v645
      %733 = vst [vmem:[%s704 + $0x151] sm:$0xff] %v646
      %734 = vst [vmem:[%s704 + $0x159] sm:$0xff] %v647
      %735 = vst [vmem:[%s704 + $0x169] sm:$0xff] %v648
      %736 = vst [vmem:[%s704 + $0x171] sm:$0xff] %v649
      %v737 = vld [vmem:[#allocation2] sm:$0xff]
      %v738 = vld [vmem:[#allocation2 + $0x8] sm:$0xff]
      %v739 = vld [vmem:[#allocation2 + $0x18] sm:$0xff]
      %v740 = vld [vmem:[#allocation2 + $0x20] sm:$0xff]
      %v741 = vld [vmem:[#allocation2 + $0x30] sm:$0xff]
      %v742 = vld [vmem:[#allocation2 + $0x38] sm:$0xff]
      %v743 = vld [vmem:[#allocation2 + $0x48] sm:$0xff]
      %v744 = vld [vmem:[#allocation2 + $0x50] sm:$0xff]
      %v745 = vld [vmem:[#allocation2 + $0x60] sm:$0xff]
      %v746 = vld [vmem:[#allocation2 + $0x68] sm:$0xff]
      %v747 = vld [vmem:[#allocation2 + $0x78] sm:$0xff]
      %v748 = vld [vmem:[#allocation2 + $0x80] sm:$0xff]
      %v749 = vld [vmem:[#allocation2 + $0x90] sm:$0xff]
      %v750 = vld [vmem:[#allocation2 + $0x98] sm:$0xff]
      %v751 = vld [vmem:[#allocation2 + $0xa8] sm:$0xff]
      %v752 = vld [vmem:[#allocation2 + $0xb0] sm:$0xff]
      %v753 = vld [vmem:[#allocation2 + $0xc0] sm:$0xff]
      %v754 = vld [vmem:[#allocation2 + $0xc8] sm:$0xff]
      %v755 = vld [vmem:[#allocation2 + $0xd8] sm:$0xff]
      %v756 = vld [vmem:[#allocation2 + $0xe0] sm:$0xff]
      %v757 = vld [vmem:[#allocation2 + $0xf0] sm:$0xff]
      %v758 = vld [vmem:[#allocation2 + $0xf8] sm:$0xff]
      %v759 = vld [vmem:[#allocation2 + $0x108] sm:$0xff]
      %v760 = vld [vmem:[#allocation2 + $0x110] sm:$0xff]
      %v761 = vld [vmem:[#allocation2 + $0x120] sm:$0xff]
      %v762 = vld [vmem:[#allocation2 + $0x128] sm:$0xff]
      %v763 = vld [vmem:[#allocation2 + $0x138] sm:$0xff]
      %v764 = vld [vmem:[#allocation2 + $0x140] sm:$0xff]
      %v765 = vld [vmem:[#allocation2 + $0x150] sm:$0xff]
      %v766 = vld [vmem:[#allocation2 + $0x158] sm:$0xff]
      %v767 = vld [vmem:[#allocation2 + $0x168] sm:$0xff]
      %v768 = vld [vmem:[#allocation2 + $0x170] sm:$0xff]
      %v769 = vpack.c.bf16 %v738, %v737
      %v770 = vpack.c.bf16 %v740, %v739
      %v771 = vpack.c.bf16 %v742, %v741
      %v772 = vpack.c.bf16 %v744, %v743
      %v773 = vpack.c.bf16 %v746, %v745
      %v774 = vpack.c.bf16 %v748, %v747
      %v775 = vpack.c.bf16 %v750, %v749
      %v776 = vpack.c.bf16 %v752, %v751
      %v777 = vpack.c.bf16 %v754, %v753
      %v778 = vpack.c.bf16 %v756, %v755
      %v779 = vpack.c.bf16 %v758, %v757
      %v780 = vpack.c.bf16 %v760, %v759
      %v781 = vpack.c.bf16 %v762, %v761
      %v782 = vpack.c.bf16 %v764, %v763
      %v783 = vpack.c.bf16 %v766, %v765
      %v784 = vpack.c.bf16 %v768, %v767
      %v785 = vld [vmem:[%s4] sm:$0xf]
      %v786 = vld [vmem:[%s4 + $0x4] sm:$0xf]
      %v787 = vld [vmem:[%s4 + $0x8] sm:$0xf]
      %v788 = vld [vmem:[%s4 + $0xc] sm:$0xf]
      %v789 = vld [vmem:[%s4 + $0x10] sm:$0xf]
      %v790 = vld [vmem:[%s4 + $0x14] sm:$0xf]
      %v791 = vld [vmem:[%s4 + $0x18] sm:$0xf]
      %v792 = vld [vmem:[%s4 + $0x1c] sm:$0xf]
      %v793 = vld [vmem:[%s4 + $0x20] sm:$0xf]
      %v794 = vld [vmem:[%s4 + $0x24] sm:$0xf]
      %v795 = vld [vmem:[%s4 + $0x28] sm:$0xf]
      %v796 = vld [vmem:[%s4 + $0x2c] sm:$0xf]
      %v797 = vld [vmem:[%s4 + $0x30] sm:$0xf]
      %v798 = vld [vmem:[%s4 + $0x34] sm:$0xf]
      %v799 = vld [vmem:[%s4 + $0x38] sm:$0xf]
      %v800 = vld [vmem:[%s4 + $0x3c] sm:$0xf]
      %v801 = vld [vmem:[#allocation2 + $0x1] sm:$0xff]
      %v802 = vld [vmem:[#allocation2 + $0x9] sm:$0xff]
      %v803 = vld [vmem:[#allocation2 + $0x19] sm:$0xff]
      %v804 = vld [vmem:[#allocation2 + $0x21] sm:$0xff]
      %v805 = vld [vmem:[#allocation2 + $0x31] sm:$0xff]
      %v806 = vld [vmem:[#allocation2 + $0x39] sm:$0xff]
      %v807 = vld [vmem:[#allocation2 + $0x49] sm:$0xff]
      %v808 = vld [vmem:[#allocation2 + $0x51] sm:$0xff]
      %v809 = vld [vmem:[#allocation2 + $0x61] sm:$0xff]
      %v810 = vld [vmem:[#allocation2 + $0x69] sm:$0xff]
      %v811 = vld [vmem:[#allocation2 + $0x79] sm:$0xff]
      %v812 = vld [vmem:[#allocation2 + $0x81] sm:$0xff]
      %v813 = vld [vmem:[#allocation2 + $0x91] sm:$0xff]
      %v814 = vld [vmem:[#allocation2 + $0x99] sm:$0xff]
      %v815 = vld [vmem:[#allocation2 + $0xa9] sm:$0xff]
      %v816 = vld [vmem:[#allocation2 + $0xb1] sm:$0xff]
      %v817 = vld [vmem:[#allocation2 + $0xc1] sm:$0xff]
      %v818 = vld [vmem:[#allocation2 + $0xc9] sm:$0xff]
      %v819 = vld [vmem:[#allocation2 + $0xd9] sm:$0xff]
      %v820 = vld [vmem:[#allocation2 + $0xe1] sm:$0xff]
      %v821 = vld [vmem:[#allocation2 + $0xf1] sm:$0xff]
      %v822 = vld [vmem:[#allocation2 + $0xf9] sm:$0xff]
      %v823 = vld [vmem:[#allocation2 + $0x109] sm:$0xff]
      %v824 = vld [vmem:[#allocation2 + $0x111] sm:$0xff]
      %v825 = vld [vmem:[#allocation2 + $0x121] sm:$0xff]
      %v826 = vld [vmem:[#allocation2 + $0x129] sm:$0xff]
      %v827 = vld [vmem:[#allocation2 + $0x139] sm:$0xff]
      %v828 = vld [vmem:[#allocation2 + $0x141] sm:$0xff]
      %v829 = vld [vmem:[#allocation2 + $0x151] sm:$0xff]
      %v830 = vld [vmem:[#allocation2 + $0x159] sm:$0xff]
      %v831 = vld [vmem:[#allocation2 + $0x169] sm:$0xff]
      %v832 = vld [vmem:[#allocation2 + $0x171] sm:$0xff]
      %v833 = vpack.c.bf16 %v802, %v801
      %v834 = vpack.c.bf16 %v804, %v803
      %v835 = vpack.c.bf16 %v806, %v805
      %v836 = vpack.c.bf16 %v808, %v807
      %v837 = vpack.c.bf16 %v810, %v809
      %v838 = vpack.c.bf16 %v812, %v811
      %v839 = vpack.c.bf16 %v814, %v813
      %v840 = vpack.c.bf16 %v816, %v815
      %v841 = vpack.c.bf16 %v818, %v817
      %v842 = vpack.c.bf16 %v820, %v819
      %v843 = vpack.c.bf16 %v822, %v821
      %v844 = vpack.c.bf16 %v824, %v823
      %v845 = vpack.c.bf16 %v826, %v825
      %v846 = vpack.c.bf16 %v828, %v827
      %v847 = vpack.c.bf16 %v830, %v829
      %v848 = vpack.c.bf16 %v832, %v831
      %s849 = scalar_lea.vmem %s4, 64
      %v850 = vld [vmem:[%s849] sm:$0xf]
      %v851 = vld [vmem:[%s849 + $0x4] sm:$0xf]
      %v852 = vld [vmem:[%s849 + $0x8] sm:$0xf]
      %v853 = vld [vmem:[%s849 + $0xc] sm:$0xf]
      %v854 = vld [vmem:[%s849 + $0x10] sm:$0xf]
      %v855 = vld [vmem:[%s849 + $0x14] sm:$0xf]
      %v856 = vld [vmem:[%s849 + $0x18] sm:$0xf]
      %v857 = vld [vmem:[%s849 + $0x1c] sm:$0xf]
      %v858 = vld [vmem:[%s849 + $0x20] sm:$0xf]
      %v859 = vld [vmem:[%s849 + $0x24] sm:$0xf]
      %v860 = vld [vmem:[%s849 + $0x28] sm:$0xf]
      %v861 = vld [vmem:[%s849 + $0x2c] sm:$0xf]
      %v862 = vld [vmem:[%s849 + $0x30] sm:$0xf]
      %v863 = vld [vmem:[%s849 + $0x34] sm:$0xf]
      %v864 = vld [vmem:[%s849 + $0x38] sm:$0xf]
      %v865 = vld [vmem:[%s849 + $0x3c] sm:$0xf]
      %v882 = vunpack.c.l.b16 %v850
      %v883 = vunpack.c.l.b16 %v851
      %v884 = vunpack.c.l.b16 %v852
      %v885 = vunpack.c.l.b16 %v853
      %v886 = vunpack.c.l.b16 %v854
      %v887 = vunpack.c.l.b16 %v855
      %v888 = vunpack.c.l.b16 %v856
      %v889 = vunpack.c.l.b16 %v857
      %v890 = vunpack.c.l.b16 %v858
      %v891 = vunpack.c.l.b16 %v859
      %v892 = vunpack.c.l.b16 %v860
      %v893 = vunpack.c.l.b16 %v861
      %v894 = vunpack.c.l.b16 %v862
      %v895 = vunpack.c.l.b16 %v863
      %v896 = vunpack.c.l.b16 %v864
      %v897 = vunpack.c.l.b16 %v865
      %v898 = vpack.c.b16 %v883, %v882
      %v899 = vpack.c.b16 %v885, %v884
      %v900 = vpack.c.b16 %v887, %v886
      %v901 = vpack.c.b16 %v889, %v888
      %v902 = vpack.c.b16 %v891, %v890
      %v903 = vpack.c.b16 %v893, %v892
      %v904 = vpack.c.b16 %v895, %v894
      %v905 = vpack.c.b16 %v897, %v896
      %914 = vmatprep.subr.bf16.mxu0 0
      %915 = vmatpush1.bf16.msra.mxu0 %v898
      %916 = vmatprep.subr.bf16.mxu0 0
      %917 = vmatpush1.bf16.msra.mxu0 %v899
      %918 = vmatprep.subr.bf16.mxu0 0
      %919 = vmatpush1.bf16.msra.mxu0 %v900
      %920 = vmatprep.subr.bf16.mxu0 0
      %921 = vmatpush1.bf16.msra.mxu0 %v901
      %922 = vmatprep.subr.bf16.mxu0 0
      %923 = vmatpush1.bf16.msra.mxu0 %v902
      %924 = vmatprep.subr.bf16.mxu0 0
      %925 = vmatpush1.bf16.msra.mxu0 %v903
      %926 = vmatprep.subr.bf16.mxu0 0
      %927 = vmatpush1.bf16.msra.mxu0 %v904
      %928 = vmatprep.subr.bf16.mxu0 0
      %929 = vmatpush1.bf16.msra.mxu0 %v905
      %930 = vmatprep.subr.bf16.mxu0 0
      %931 = vmatpush1.bf16.msra.mxu0 0
      %932 = vmatprep.subr.bf16.mxu0 0
      %933 = vmatpush1.bf16.msra.mxu0 0
      %934 = vmatprep.subr.bf16.mxu0 0
      %935 = vmatpush1.bf16.msra.mxu0 0
      %936 = vmatprep.subr.bf16.mxu0 0
      %937 = vmatpush1.bf16.msra.mxu0 0
      %938 = vmatprep.subr.bf16.mxu0 0
      %939 = vmatpush1.bf16.msra.mxu0 0
      %940 = vmatprep.subr.bf16.mxu0 0
      %941 = vmatpush1.bf16.msra.mxu0 0
      %942 = vmatprep.subr.bf16.mxu0 0
      %943 = vmatpush1.bf16.msra.mxu0 0
      %944 = vmatprep.subr.bf16.mxu0 0
      %945 = vmatpush1.bf16.msra.mxu0 0
      %946 = vmatprep.mubr.bf16.mxu0 0
      %947 = vmatmul.mubr.bf16.gmra.mrb[0].mxu0 %v833
      %v948 = vpop.f32.mrb[0].mxu0
      %v949 = vadd.f32 0.0, %v948
      %v950 = vpop.f32.mrb[0].mxu0
      %v951 = vpop.f32.mrb[0].mxu0
      %v952 = vadd.f32 0.0, %v951
      %v953 = vpop.f32.mrb[0].mxu0
      %954 = vmatprep.mubr.bf16.mxu0 0
      %955 = vmatmul.mubr.bf16.gmra.mrb[0].mxu0 %v834
      %v956 = vpop.f32.mrb[0].mxu0
      %v957 = vadd.f32 0.0, %v956
      %v958 = vpop.f32.mrb[0].mxu0
      %v959 = vpop.f32.mrb[0].mxu0
      %v960 = vadd.f32 0.0, %v959
      %v961 = vpop.f32.mrb[0].mxu0
      %962 = vmatprep.mubr.bf16.mxu0 0
      %963 = vmatmul.mubr.bf16.gmra.mrb[0].mxu0 %v835
      %v964 = vpop.f32.mrb[0].mxu0
      %v965 = vadd.f32 0.0, %v964
      %v966 = vpop.f32.mrb[0].mxu0
      %v967 = vpop.f32.mrb[0].mxu0
      %v968 = vadd.f32 0.0, %v967
      %v969 = vpop.f32.mrb[0].mxu0
      %970 = vmatprep.mubr.bf16.mxu0 0
      %971 = vmatmul.mubr.bf16.gmra.mrb[0].mxu0 %v836
      %v972 = vpop.f32.mrb[0].mxu0
      %v973 = vadd.f32 0.0, %v972
      %v974 = vpop.f32.mrb[0].mxu0
      %v975 = vpop.f32.mrb[0].mxu0
      %v976 = vadd.f32 0.0, %v975
      %v977 = vpop.f32.mrb[0].mxu0
      %978 = vmatprep.mubr.bf16.mxu0 0
      %979 = vmatmul.mubr.bf16.gmra.mrb[0].mxu0 %v837
      %v980 = vpop.f32.mrb[0].mxu0
      %v981 = vadd.f32 0.0, %v980
      %v982 = vpop.f32.mrb[0].mxu0
      %v983 = vpop.f32.mrb[0].mxu0
      %v984 = vadd.f32 0.0, %v983
      %v985 = vpop.f32.mrb[0].mxu0
      %986 = vmatprep.mubr.bf16.mxu0 0
      %987 = vmatmul.mubr.bf16.gmra.mrb[0].mxu0 %v838
      %v988 = vpop.f32.mrb[0].mxu0
      %v989 = vadd.f32 0.0, %v988
      %v990 = vpop.f32.mrb[0].mxu0
      %v991 = vpop.f32.mrb[0].mxu0
      %v992 = vadd.f32 0.0, %v991
      %v993 = vpop.f32.mrb[0].mxu0
      %994 = vmatprep.mubr.bf16.mxu0 0
      %995 = vmatmul.mubr.bf16.gmra.mrb[0].mxu0 %v839
      %v996 = vpop.f32.mrb[0].mxu0
      %v997 = vadd.f32 0.0, %v996
      %v998 = vpop.f32.mrb[0].mxu0
      %v999 = vpop.f32.mrb[0].mxu0
      %v1000 = vadd.f32 0.0, %v999
      %v1001 = vpop.f32.mrb[0].mxu0
      %1002 = vmatprep.mubr.bf16.mxu0 0
      %1003 = vmatmul.mubr.bf16.gmra.mrb[0].mxu0 %v840
      %v1004 = vpop.f32.mrb[0].mxu0
      %v1005 = vadd.f32 0.0, %v1004
      %v1006 = vpop.f32.mrb[0].mxu0
      %v1007 = vpop.f32.mrb[0].mxu0
      %v1008 = vadd.f32 0.0, %v1007
      %v1009 = vpop.f32.mrb[0].mxu0
      %1010 = vmatprep.mubr.bf16.mxu0 0
      %1011 = vmatmul.mubr.bf16.gmra.mrb[0].mxu0 %v841
      %v1012 = vpop.f32.mrb[0].mxu0
      %v1013 = vadd.f32 0.0, %v1012
      %v1014 = vpop.f32.mrb[0].mxu0
      %v1015 = vpop.f32.mrb[0].mxu0
      %v1016 = vadd.f32 0.0, %v1015
      %v1017 = vpop.f32.mrb[0].mxu0
      %1018 = vmatprep.mubr.bf16.mxu0 0
      %1019 = vmatmul.mubr.bf16.gmra.mrb[0].mxu0 %v842
      %v1020 = vpop.f32.mrb[0].mxu0
      %v1021 = vadd.f32 0.0, %v1020
      %v1022 = vpop.f32.mrb[0].mxu0
      %v1023 = vpop.f32.mrb[0].mxu0
      %v1024 = vadd.f32 0.0, %v1023
      %v1025 = vpop.f32.mrb[0].mxu0
      %1026 = vmatprep.mubr.bf16.mxu0 0
      %1027 = vmatmul.mubr.bf16.gmra.mrb[0].mxu0 %v843
      %v1028 = vpop.f32.mrb[0].mxu0
      %v1029 = vadd.f32 0.0, %v1028
      %v1030 = vpop.f32.mrb[0].mxu0
      %v1031 = vpop.f32.mrb[0].mxu0
      %v1032 = vadd.f32 0.0, %v1031
      %v1033 = vpop.f32.mrb[0].mxu0
      %1034 = vmatprep.mubr.bf16.mxu0 0
      %1035 = vmatmul.mubr.bf16.gmra.mrb[0].mxu0 %v844
      %v1036 = vpop.f32.mrb[0].mxu0
      %v1037 = vadd.f32 0.0, %v1036
      %v1038 = vpop.f32.mrb[0].mxu0
      %v1039 = vpop.f32.mrb[0].mxu0
      %v1040 = vadd.f32 0.0, %v1039
      %v1041 = vpop.f32.mrb[0].mxu0
      %1042 = vmatprep.mubr.bf16.mxu0 0
      %1043 = vmatmul.mubr.bf16.gmra.mrb[0].mxu0 %v845
      %v1044 = vpop.f32.mrb[0].mxu0
      %v1045 = vadd.f32 0.0, %v1044
      %v1046 = vpop.f32.mrb[0].mxu0
      %v1047 = vpop.f32.mrb[0].mxu0
      %v1048 = vadd.f32 0.0, %v1047
      %v1049 = vpop.f32.mrb[0].mxu0
      %1050 = vmatprep.mubr.bf16.mxu0 0
      %1051 = vmatmul.mubr.bf16.gmra.mrb[0].mxu0 %v846
      %v1052 = vpop.f32.mrb[0].mxu0
      %v1053 = vadd.f32 0.0, %v1052
      %v1054 = vpop.f32.mrb[0].mxu0
      %v1055 = vpop.f32.mrb[0].mxu0
      %v1056 = vadd.f32 0.0, %v1055
      %v1057 = vpop.f32.mrb[0].mxu0
      %1058 = vmatprep.mubr.bf16.mxu0 0
      %1059 = vmatmul.mubr.bf16.gmra.mrb[0].mxu0 %v847
      %v1060 = vpop.f32.mrb[0].mxu0
      %v1061 = vadd.f32 0.0, %v1060
      %v1062 = vpop.f32.mrb[0].mxu0
      %v1063 = vpop.f32.mrb[0].mxu0
      %v1064 = vadd.f32 0.0, %v1063
      %v1065 = vpop.f32.mrb[0].mxu0
      %1066 = vmatprep.mubr.bf16.mxu0 0
      %1067 = vmatmul.mubr.bf16.gmra.mrb[0].mxu0 %v848
      %v1068 = vpop.f32.mrb[0].mxu0
      %v1069 = vadd.f32 0.0, %v1068
      %v1070 = vpop.f32.mrb[0].mxu0
      %v1071 = vpop.f32.mrb[0].mxu0
      %v1072 = vadd.f32 0.0, %v1071
      %v1073 = vpop.f32.mrb[0].mxu0
      %1074 = vdwg.mxu0
      %v1091 = vunpack.c.l.b16 %v785
      %v1092 = vunpack.c.l.b16 %v786
      %v1093 = vunpack.c.l.b16 %v787
      %v1094 = vunpack.c.l.b16 %v788
      %v1095 = vunpack.c.l.b16 %v789
      %v1096 = vunpack.c.l.b16 %v790
      %v1097 = vunpack.c.l.b16 %v791
      %v1098 = vunpack.c.l.b16 %v792
      %v1099 = vunpack.c.l.b16 %v793
      %v1100 = vunpack.c.l.b16 %v794
      %v1101 = vunpack.c.l.b16 %v795
      %v1102 = vunpack.c.l.b16 %v796
      %v1103 = vunpack.c.l.b16 %v797
      %v1104 = vunpack.c.l.b16 %v798
      %v1105 = vunpack.c.l.b16 %v799
      %v1106 = vunpack.c.l.b16 %v800
      %v1107 = vpack.c.b16 %v1092, %v1091
      %v1108 = vpack.c.b16 %v1094, %v1093
      %v1109 = vpack.c.b16 %v1096, %v1095
      %v1110 = vpack.c.b16 %v1098, %v1097
      %v1111 = vpack.c.b16 %v1100, %v1099
      %v1112 = vpack.c.b16 %v1102, %v1101
      %v1113 = vpack.c.b16 %v1104, %v1103
      %v1114 = vpack.c.b16 %v1106, %v1105
      %1123 = vmatprep.subr.bf16.mxu0 0
      %1124 = vmatpush1.bf16.msra.mxu0 %v1107
      %1125 = vmatprep.subr.bf16.mxu0 0
      %1126 = vmatpush1.bf16.msra.mxu0 %v1108
      %1127 = vmatprep.subr.bf16.mxu0 0
      %1128 = vmatpush1.bf16.msra.mxu0 %v1109
      %1129 = vmatprep.subr.bf16.mxu0 0
      %1130 = vmatpush1.bf16.msra.mxu0 %v1110
      %1131 = vmatprep.subr.bf16.mxu0 0
      %1132 = vmatpush1.bf16.msra.mxu0 %v1111
      %1133 = vmatprep.subr.bf16.mxu0 0
      %1134 = vmatpush1.bf16.msra.mxu0 %v1112
      %1135 = vmatprep.subr.bf16.mxu0 0
      %1136 = vmatpush1.bf16.msra.mxu0 %v1113
      %1137 = vmatprep.subr.bf16.mxu0 0
      %1138 = vmatpush1.bf16.msra.mxu0 %v1114
      %1139 = vmatprep.subr.bf16.mxu0 0
      %1140 = vmatpush1.bf16.msra.mxu0 0
      %1141 = vmatprep.subr.bf16.mxu0 0
      %1142 = vmatpush1.bf16.msra.mxu0 0
      %1143 = vmatprep.subr.bf16.mxu0 0
      %1144 = vmatpush1.bf16.msra.mxu0 0
      %1145 = vmatprep.subr.bf16.mxu0 0
      %1146 = vmatpush1.bf16.msra.mxu0 0
      %1147 = vmatprep.subr.bf16.mxu0 0
      %1148 = vmatpush1.bf16.msra.mxu0 0
      %1149 = vmatprep.subr.bf16.mxu0 0
      %1150 = vmatpush1.bf16.msra.mxu0 0
      %1151 = vmatprep.subr.bf16.mxu0 0
      %1152 = vmatpush1.bf16.msra.mxu0 0
      %1153 = vmatprep.subr.bf16.mxu0 0
      %1154 = vmatpush1.bf16.msra.mxu0 0
      %1155 = vmatprep.mubr.bf16.mxu0 0
      %1156 = vmatmul.mubr.bf16.gmra.mrb[0].mxu0 %v769
      %v1157 = vpop.f32.mrb[0].mxu0
      %v1158 = vadd.f32 %v949, %v1157
      %v1159 = vpop.f32.mrb[0].mxu0
      %v1160 = vpop.f32.mrb[0].mxu0
      %v1161 = vadd.f32 %v952, %v1160
      %v1162 = vpop.f32.mrb[0].mxu0
      %1163 = vmatprep.mubr.bf16.mxu0 0
      %1164 = vmatmul.mubr.bf16.gmra.mrb[0].mxu0 %v770
      %v1165 = vpop.f32.mrb[0].mxu0
      %v1166 = vadd.f32 %v957, %v1165
      %v1167 = vpop.f32.mrb[0].mxu0
      %v1168 = vpop.f32.mrb[0].mxu0
      %v1169 = vadd.f32 %v960, %v1168
      %v1170 = vpop.f32.mrb[0].mxu0
      %1171 = vmatprep.mubr.bf16.mxu0 0
      %1172 = vmatmul.mubr.bf16.gmra.mrb[0].mxu0 %v771
      %v1173 = vpop.f32.mrb[0].mxu0
      %v1174 = vadd.f32 %v965, %v1173
      %v1175 = vpop.f32.mrb[0].mxu0
      %v1176 = vpop.f32.mrb[0].mxu0
      %v1177 = vadd.f32 %v968, %v1176
      %v1178 = vpop.f32.mrb[0].mxu0
      %1179 = vmatprep.mubr.bf16.mxu0 0
      %1180 = vmatmul.mubr.bf16.gmra.mrb[0].mxu0 %v772
      %v1181 = vpop.f32.mrb[0].mxu0
      %v1182 = vadd.f32 %v973, %v1181
      %v1183 = vpop.f32.mrb[0].mxu0
      %v1184 = vpop.f32.mrb[0].mxu0
      %v1185 = vadd.f32 %v976, %v1184
      %v1186 = vpop.f32.mrb[0].mxu0
      %1187 = vmatprep.mubr.bf16.mxu0 0
      %1188 = vmatmul.mubr.bf16.gmra.mrb[0].mxu0 %v773
      %v1189 = vpop.f32.mrb[0].mxu0
      %v1190 = vadd.f32 %v981, %v1189
      %v1191 = vpop.f32.mrb[0].mxu0
      %v1192 = vpop.f32.mrb[0].mxu0
      %v1193 = vadd.f32 %v984, %v1192
      %v1194 = vpop.f32.mrb[0].mxu0
      %1195 = vmatprep.mubr.bf16.mxu0 0
      %1196 = vmatmul.mubr.bf16.gmra.mrb[0].mxu0 %v774
      %v1197 = vpop.f32.mrb[0].mxu0
      %v1198 = vadd.f32 %v989, %v1197
      %v1199 = vpop.f32.mrb[0].mxu0
      %v1200 = vpop.f32.mrb[0].mxu0
      %v1201 = vadd.f32 %v992, %v1200
      %v1202 = vpop.f32.mrb[0].mxu0
      %1203 = vmatprep.mubr.bf16.mxu0 0
      %1204 = vmatmul.mubr.bf16.gmra.mrb[0].mxu0 %v775
      %v1205 = vpop.f32.mrb[0].mxu0
      %v1206 = vadd.f32 %v997, %v1205
      %v1207 = vpop.f32.mrb[0].mxu0
      %v1208 = vpop.f32.mrb[0].mxu0
      %v1209 = vadd.f32 %v1000, %v1208
      %v1210 = vpop.f32.mrb[0].mxu0
      %1211 = vmatprep.mubr.bf16.mxu0 0
      %1212 = vmatmul.mubr.bf16.gmra.mrb[0].mxu0 %v776
      %v1213 = vpop.f32.mrb[0].mxu0
      %v1214 = vadd.f32 %v1005, %v1213
      %v1215 = vpop.f32.mrb[0].mxu0
      %v1216 = vpop.f32.mrb[0].mxu0
      %v1217 = vadd.f32 %v1008, %v1216
      %v1218 = vpop.f32.mrb[0].mxu0
      %1219 = vmatprep.mubr.bf16.mxu0 0
      %1220 = vmatmul.mubr.bf16.gmra.mrb[0].mxu0 %v777
      %v1221 = vpop.f32.mrb[0].mxu0
      %v1222 = vadd.f32 %v1013, %v1221
      %v1223 = vpop.f32.mrb[0].mxu0
      %v1224 = vpop.f32.mrb[0].mxu0
      %v1225 = vadd.f32 %v1016, %v1224
      %v1226 = vpop.f32.mrb[0].mxu0
      %1227 = vmatprep.mubr.bf16.mxu0 0
      %1228 = vmatmul.mubr.bf16.gmra.mrb[0].mxu0 %v778
      %v1229 = vpop.f32.mrb[0].mxu0
      %v1230 = vadd.f32 %v1021, %v1229
      %v1231 = vpop.f32.mrb[0].mxu0
      %v1232 = vpop.f32.mrb[0].mxu0
      %v1233 = vadd.f32 %v1024, %v1232
      %v1234 = vpop.f32.mrb[0].mxu0
      %1235 = vmatprep.mubr.bf16.mxu0 0
      %1236 = vmatmul.mubr.bf16.gmra.mrb[0].mxu0 %v779
      %v1237 = vpop.f32.mrb[0].mxu0
      %v1238 = vadd.f32 %v1029, %v1237
      %v1239 = vpop.f32.mrb[0].mxu0
      %v1240 = vpop.f32.mrb[0].mxu0
      %v1241 = vadd.f32 %v1032, %v1240
      %v1242 = vpop.f32.mrb[0].mxu0
      %1243 = vmatprep.mubr.bf16.mxu0 0
      %1244 = vmatmul.mubr.bf16.gmra.mrb[0].mxu0 %v780
      %v1245 = vpop.f32.mrb[0].mxu0
      %v1246 = vadd.f32 %v1037, %v1245
      %v1247 = vpop.f32.mrb[0].mxu0
      %v1248 = vpop.f32.mrb[0].mxu0
      %v1249 = vadd.f32 %v1040, %v1248
      %v1250 = vpop.f32.mrb[0].mxu0
      %1251 = vmatprep.mubr.bf16.mxu0 0
      %1252 = vmatmul.mubr.bf16.gmra.mrb[0].mxu0 %v781
      %v1253 = vpop.f32.mrb[0].mxu0
      %v1254 = vadd.f32 %v1045, %v1253
      %v1255 = vpop.f32.mrb[0].mxu0
      %v1256 = vpop.f32.mrb[0].mxu0
      %v1257 = vadd.f32 %v1048, %v1256
      %v1258 = vpop.f32.mrb[0].mxu0
      %1259 = vmatprep.mubr.bf16.mxu0 0
      %1260 = vmatmul.mubr.bf16.gmra.mrb[0].mxu0 %v782
      %v1261 = vpop.f32.mrb[0].mxu0
      %v1262 = vadd.f32 %v1053, %v1261
      %v1263 = vpop.f32.mrb[0].mxu0
      %v1264 = vpop.f32.mrb[0].mxu0
      %v1265 = vadd.f32 %v1056, %v1264
      %v1266 = vpop.f32.mrb[0].mxu0
      %1267 = vmatprep.mubr.bf16.mxu0 0
      %1268 = vmatmul.mubr.bf16.gmra.mrb[0].mxu0 %v783
      %v1269 = vpop.f32.mrb[0].mxu0
      %v1270 = vadd.f32 %v1061, %v1269
      %v1271 = vpop.f32.mrb[0].mxu0
      %v1272 = vpop.f32.mrb[0].mxu0
      %v1273 = vadd.f32 %v1064, %v1272
      %v1274 = vpop.f32.mrb[0].mxu0
      %1275 = vmatprep.mubr.bf16.mxu0 0
      %1276 = vmatmul.mubr.bf16.gmra.mrb[0].mxu0 %v784
      %v1277 = vpop.f32.mrb[0].mxu0
      %v1278 = vadd.f32 %v1069, %v1277
      %v1279 = vpop.f32.mrb[0].mxu0
      %v1280 = vpop.f32.mrb[0].mxu0
      %v1281 = vadd.f32 %v1072, %v1280
      %v1282 = vpop.f32.mrb[0].mxu0
      %1283 = vdwg.mxu0
      %v1284 = vld [vmem:[#allocation2 + $0x2] sm:$0xff]
      %v1285 = vld [vmem:[#allocation2 + $0xa] sm:$0xff]
      %v1286 = vld [vmem:[#allocation2 + $0x1a] sm:$0xff]
      %v1287 = vld [vmem:[#allocation2 + $0x22] sm:$0xff]
      %v1288 = vld [vmem:[#allocation2 + $0x32] sm:$0xff]
      %v1289 = vld [vmem:[#allocation2 + $0x3a] sm:$0xff]
      %v1290 = vld [vmem:[#allocation2 + $0x4a] sm:$0xff]
      %v1291 = vld [vmem:[#allocation2 + $0x52] sm:$0xff]
      %v1292 = vld [vmem:[#allocation2 + $0x62] sm:$0xff]
      %v1293 = vld [vmem:[#allocation2 + $0x6a] sm:$0xff]
      %v1294 = vld [vmem:[#allocation2 + $0x7a] sm:$0xff]
      %v1295 = vld [vmem:[#allocation2 + $0x82] sm:$0xff]
      %v1296 = vld [vmem:[#allocation2 + $0x92] sm:$0xff]
      %v1297 = vld [vmem:[#allocation2 + $0x9a] sm:$0xff]
      %v1298 = vld [vmem:[#allocation2 + $0xaa] sm:$0xff]
      %v1299 = vld [vmem:[#allocation2 + $0xb2] sm:$0xff]
      %v1300 = vld [vmem:[#allocation2 + $0xc2] sm:$0xff]
      %v1301 = vld [vmem:[#allocation2 + $0xca] sm:$0xff]
      %v1302 = vld [vmem:[#allocation2 + $0xda] sm:$0xff]
      %v1303 = vld [vmem:[#allocation2 + $0xe2] sm:$0xff]
      %v1304 = vld [vmem:[#allocation2 + $0xf2] sm:$0xff]
      %v1305 = vld [vmem:[#allocation2 + $0xfa] sm:$0xff]
      %v1306 = vld [vmem:[#allocation2 + $0x10a] sm:$0xff]
      %v1307 = vld [vmem:[#allocation2 + $0x112] sm:$0xff]
      %v1308 = vld [vmem:[#allocation2 + $0x122] sm:$0xff]
      %v1309 = vld [vmem:[#allocation2 + $0x12a] sm:$0xff]
      %v1310 = vld [vmem:[#allocation2 + $0x13a] sm:$0xff]
      %v1311 = vld [vmem:[#allocation2 + $0x142] sm:$0xff]
      %v1312 = vld [vmem:[#allocation2 + $0x152] sm:$0xff]
      %v1313 = vld [vmem:[#allocation2 + $0x15a] sm:$0xff]
      %v1314 = vld [vmem:[#allocation2 + $0x16a] sm:$0xff]
      %v1315 = vld [vmem:[#allocation2 + $0x172] sm:$0xff]
      %v1316 = vpack.c.bf16 %v1285, %v1284
      %v1317 = vpack.c.bf16 %v1287, %v1286
      %v1318 = vpack.c.bf16 %v1289, %v1288
      %v1319 = vpack.c.bf16 %v1291, %v1290
      %v1320 = vpack.c.bf16 %v1293, %v1292
      %v1321 = vpack.c.bf16 %v1295, %v1294
      %v1322 = vpack.c.bf16 %v1297, %v1296
      %v1323 = vpack.c.bf16 %v1299, %v1298
      %v1324 = vpack.c.bf16 %v1301, %v1300
      %v1325 = vpack.c.bf16 %v1303, %v1302
      %v1326 = vpack.c.bf16 %v1305, %v1304
      %v1327 = vpack.c.bf16 %v1307, %v1306
      %v1328 = vpack.c.bf16 %v1309, %v1308
      %v1329 = vpack.c.bf16 %v1311, %v1310
      %v1330 = vpack.c.bf16 %v1313, %v1312
      %v1331 = vpack.c.bf16 %v1315, %v1314
      %s1332 = scalar_lea.vmem %s4, 128
      %v1333 = vld [vmem:[%s1332] sm:$0xf]
      %v1334 = vld [vmem:[%s1332 + $0x4] sm:$0xf]
      %v1335 = vld [vmem:[%s1332 + $0x8] sm:$0xf]
      %v1336 = vld [vmem:[%s1332 + $0xc] sm:$0xf]
      %v1337 = vld [vmem:[%s1332 + $0x10] sm:$0xf]
      %v1338 = vld [vmem:[%s1332 + $0x14] sm:$0xf]
      %v1339 = vld [vmem:[%s1332 + $0x18] sm:$0xf]
      %v1340 = vld [vmem:[%s1332 + $0x1c] sm:$0xf]
      %v1341 = vld [vmem:[%s1332 + $0x20] sm:$0xf]
      %v1342 = vld [vmem:[%s1332 + $0x24] sm:$0xf]
      %v1343 = vld [vmem:[%s1332 + $0x28] sm:$0xf]
      %v1344 = vld [vmem:[%s1332 + $0x2c] sm:$0xf]
      %v1345 = vld [vmem:[%s1332 + $0x30] sm:$0xf]
      %v1346 = vld [vmem:[%s1332 + $0x34] sm:$0xf]
      %v1347 = vld [vmem:[%s1332 + $0x38] sm:$0xf]
      %v1348 = vld [vmem:[%s1332 + $0x3c] sm:$0xf]
      %v1365 = vunpack.c.l.b16 %v1333
      %v1366 = vunpack.c.l.b16 %v1334
      %v1367 = vunpack.c.l.b16 %v1335
      %v1368 = vunpack.c.l.b16 %v1336
      %v1369 = vunpack.c.l.b16 %v1337
      %v1370 = vunpack.c.l.b16 %v1338
      %v1371 = vunpack.c.l.b16 %v1339
      %v1372 = vunpack.c.l.b16 %v1340
      %v1373 = vunpack.c.l.b16 %v1341
      %v1374 = vunpack.c.l.b16 %v1342
      %v1375 = vunpack.c.l.b16 %v1343
      %v1376 = vunpack.c.l.b16 %v1344
      %v1377 = vunpack.c.l.b16 %v1345
      %v1378 = vunpack.c.l.b16 %v1346
      %v1379 = vunpack.c.l.b16 %v1347
      %v1380 = vunpack.c.l.b16 %v1348
      %v1381 = vpack.c.b16 %v1366, %v1365
      %v1382 = vpack.c.b16 %v1368, %v1367
      %v1383 = vpack.c.b16 %v1370, %v1369
      %v1384 = vpack.c.b16 %v1372, %v1371
      %v1385 = vpack.c.b16 %v1374, %v1373
      %v1386 = vpack.c.b16 %v1376, %v1375
      %v1387 = vpack.c.b16 %v1378, %v1377
      %v1388 = vpack.c.b16 %v1380, %v1379
      %1397 = vmatprep.subr.bf16.mxu0 0
      %1398 = vmatpush1.bf16.msra.mxu0 %v1381
      %1399 = vmatprep.subr.bf16.mxu0 0
      %1400 = vmatpush1.bf16.msra.mxu0 %v1382
      %1401 = vmatprep.subr.bf16.mxu0 0
      %1402 = vmatpush1.bf16.msra.mxu0 %v1383
      %1403 = vmatprep.subr.bf16.mxu0 0
      %1404 = vmatpush1.bf16.msra.mxu0 %v1384
      %1405 = vmatprep.subr.bf16.mxu0 0
      %1406 = vmatpush1.bf16.msra.mxu0 %v1385
      %1407 = vmatprep.subr.bf16.mxu0 0
      %1408 = vmatpush1.bf16.msra.mxu0 %v1386
      %1409 = vmatprep.subr.bf16.mxu0 0
      %1410 = vmatpush1.bf16.msra.mxu0 %v1387
      %1411 = vmatprep.subr.bf16.mxu0 0
      %1412 = vmatpush1.bf16.msra.mxu0 %v1388
      %1413 = vmatprep.subr.bf16.mxu0 0
      %1414 = vmatpush1.bf16.msra.mxu0 0
      %1415 = vmatprep.subr.bf16.mxu0 0
      %1416 = vmatpush1.bf16.msra.mxu0 0
      %1417 = vmatprep.subr.bf16.mxu0 0
      %1418 = vmatpush1.bf16.msra.mxu0 0
      %1419 = vmatprep.subr.bf16.mxu0 0
      %1420 = vmatpush1.bf16.msra.mxu0 0
      %1421 = vmatprep.subr.bf16.mxu0 0
      %1422 = vmatpush1.bf16.msra.mxu0 0
      %1423 = vmatprep.subr.bf16.mxu0 0
      %1424 = vmatpush1.bf16.msra.mxu0 0
      %1425 = vmatprep.subr.bf16.mxu0 0
      %1426 = vmatpush1.bf16.msra.mxu0 0
      %1427 = vmatprep.subr.bf16.mxu0 0
      %1428 = vmatpush1.bf16.msra.mxu0 0
      %1429 = vmatprep.mubr.bf16.mxu0 0
      %1430 = vmatmul.mubr.bf16.gmra.mrb[0].mxu0 %v1316
      %v1431 = vpop.f32.mrb[0].mxu0
      %v1432 = vadd.f32 0.0, %v1431
      %v1433 = vpop.f32.mrb[0].mxu0
      %v1434 = vpop.f32.mrb[0].mxu0
      %v1435 = vadd.f32 0.0, %v1434
      %v1436 = vpop.f32.mrb[0].mxu0
      %1437 = vmatprep.mubr.bf16.mxu0 0
      %1438 = vmatmul.mubr.bf16.gmra.mrb[0].mxu0 %v1317
      %v1439 = vpop.f32.mrb[0].mxu0
      %v1440 = vadd.f32 0.0, %v1439
      %v1441 = vpop.f32.mrb[0].mxu0
      %v1442 = vpop.f32.mrb[0].mxu0
      %v1443 = vadd.f32 0.0, %v1442
      %v1444 = vpop.f32.mrb[0].mxu0
      %1445 = vmatprep.mubr.bf16.mxu0 0
      %1446 = vmatmul.mubr.bf16.gmra.mrb[0].mxu0 %v1318
      %v1447 = vpop.f32.mrb[0].mxu0
      %v1448 = vadd.f32 0.0, %v1447
      %v1449 = vpop.f32.mrb[0].mxu0
      %v1450 = vpop.f32.mrb[0].mxu0
      %v1451 = vadd.f32 0.0, %v1450
      %v1452 = vpop.f32.mrb[0].mxu0
      %1453 = vmatprep.mubr.bf16.mxu0 0
      %1454 = vmatmul.mubr.bf16.gmra.mrb[0].mxu0 %v1319
      %v1455 = vpop.f32.mrb[0].mxu0
      %v1456 = vadd.f32 0.0, %v1455
      %v1457 = vpop.f32.mrb[0].mxu0
      %v1458 = vpop.f32.mrb[0].mxu0
      %v1459 = vadd.f32 0.0, %v1458
      %v1460 = vpop.f32.mrb[0].mxu0
      %1461 = vmatprep.mubr.bf16.mxu0 0
      %1462 = vmatmul.mubr.bf16.gmra.mrb[0].mxu0 %v1320
      %v1463 = vpop.f32.mrb[0].mxu0
      %v1464 = vadd.f32 0.0, %v1463
      %v1465 = vpop.f32.mrb[0].mxu0
      %v1466 = vpop.f32.mrb[0].mxu0
      %v1467 = vadd.f32 0.0, %v1466
      %v1468 = vpop.f32.mrb[0].mxu0
      %1469 = vmatprep.mubr.bf16.mxu0 0
      %1470 = vmatmul.mubr.bf16.gmra.mrb[0].mxu0 %v1321
      %v1471 = vpop.f32.mrb[0].mxu0
      %v1472 = vadd.f32 0.0, %v1471
      %v1473 = vpop.f32.mrb[0].mxu0
      %v1474 = vpop.f32.mrb[0].mxu0
      %v1475 = vadd.f32 0.0, %v1474
      %v1476 = vpop.f32.mrb[0].mxu0
      %1477 = vmatprep.mubr.bf16.mxu0 0
      %1478 = vmatmul.mubr.bf16.gmra.mrb[0].mxu0 %v1322
      %v1479 = vpop.f32.mrb[0].mxu0
      %v1480 = vadd.f32 0.0, %v1479
      %v1481 = vpop.f32.mrb[0].mxu0
      %v1482 = vpop.f32.mrb[0].mxu0
      %v1483 = vadd.f32 0.0, %v1482
      %v1484 = vpop.f32.mrb[0].mxu0
      %1485 = vmatprep.mubr.bf16.mxu0 0
      %1486 = vmatmul.mubr.bf16.gmra.mrb[0].mxu0 %v1323
      %v1487 = vpop.f32.mrb[0].mxu0
      %v1488 = vadd.f32 0.0, %v1487
      %v1489 = vpop.f32.mrb[0].mxu0
      %v1490 = vpop.f32.mrb[0].mxu0
      %v1491 = vadd.f32 0.0, %v1490
      %v1492 = vpop.f32.mrb[0].mxu0
      %1493 = vmatprep.mubr.bf16.mxu0 0
      %1494 = vmatmul.mubr.bf16.gmra.mrb[0].mxu0 %v1324
      %v1495 = vpop.f32.mrb[0].mxu0
      %v1496 = vadd.f32 0.0, %v1495
      %v1497 = vpop.f32.mrb[0].mxu0
      %v1498 = vpop.f32.mrb[0].mxu0
      %v1499 = vadd.f32 0.0, %v1498
      %v1500 = vpop.f32.mrb[0].mxu0
      %1501 = vmatprep.mubr.bf16.mxu0 0
      %1502 = vmatmul.mubr.bf16.gmra.mrb[0].mxu0 %v1325
      %v1503 = vpop.f32.mrb[0].mxu0
      %v1504 = vadd.f32 0.0, %v1503
      %v1505 = vpop.f32.mrb[0].mxu0
      %v1506 = vpop.f32.mrb[0].mxu0
      %v1507 = vadd.f32 0.0, %v1506
      %v1508 = vpop.f32.mrb[0].mxu0
      %1509 = vmatprep.mubr.bf16.mxu0 0
      %1510 = vmatmul.mubr.bf16.gmra.mrb[0].mxu0 %v1326
      %v1511 = vpop.f32.mrb[0].mxu0
      %v1512 = vadd.f32 0.0, %v1511
      %v1513 = vpop.f32.mrb[0].mxu0
      %v1514 = vpop.f32.mrb[0].mxu0
      %v1515 = vadd.f32 0.0, %v1514
      %v1516 = vpop.f32.mrb[0].mxu0
      %1517 = vmatprep.mubr.bf16.mxu0 0
      %1518 = vmatmul.mubr.bf16.gmra.mrb[0].mxu0 %v1327
      %v1519 = vpop.f32.mrb[0].mxu0
      %v1520 = vadd.f32 0.0, %v1519
      %v1521 = vpop.f32.mrb[0].mxu0
      %v1522 = vpop.f32.mrb[0].mxu0
      %v1523 = vadd.f32 0.0, %v1522
      %v1524 = vpop.f32.mrb[0].mxu0
      %1525 = vmatprep.mubr.bf16.mxu0 0
      %1526 = vmatmul.mubr.bf16.gmra.mrb[0].mxu0 %v1328
      %v1527 = vpop.f32.mrb[0].mxu0
      %v1528 = vadd.f32 0.0, %v1527
      %v1529 = vpop.f32.mrb[0].mxu0
      %v1530 = vpop.f32.mrb[0].mxu0
      %v1531 = vadd.f32 0.0, %v1530
      %v1532 = vpop.f32.mrb[0].mxu0
      %1533 = vmatprep.mubr.bf16.mxu0 0
      %1534 = vmatmul.mubr.bf16.gmra.mrb[0].mxu0 %v1329
      %v1535 = vpop.f32.mrb[0].mxu0
      %v1536 = vadd.f32 0.0, %v1535
      %v1537 = vpop.f32.mrb[0].mxu0
      %v1538 = vpop.f32.mrb[0].mxu0
      %v1539 = vadd.f32 0.0, %v1538
      %v1540 = vpop.f32.mrb[0].mxu0
      %1541 = vmatprep.mubr.bf16.mxu0 0
      %1542 = vmatmul.mubr.bf16.gmra.mrb[0].mxu0 %v1330
      %v1543 = vpop.f32.mrb[0].mxu0
      %v1544 = vadd.f32 0.0, %v1543
      %v1545 = vpop.f32.mrb[0].mxu0
      %v1546 = vpop.f32.mrb[0].mxu0
      %v1547 = vadd.f32 0.0, %v1546
      %v1548 = vpop.f32.mrb[0].mxu0
      %1549 = vmatprep.mubr.bf16.mxu0 0
      %1550 = vmatmul.mubr.bf16.gmra.mrb[0].mxu0 %v1331
      %v1551 = vpop.f32.mrb[0].mxu0
      %v1552 = vadd.f32 0.0, %v1551
      %v1553 = vpop.f32.mrb[0].mxu0
      %v1554 = vpop.f32.mrb[0].mxu0
      %v1555 = vadd.f32 0.0, %v1554
      %v1556 = vpop.f32.mrb[0].mxu0
      %1557 = vdwg.mxu0
      %v1558 = vadd.f32 %v1158, %v1432
      %v1559 = vadd.f32 %v1161, %v1435
      %v1560 = vadd.f32 %v1166, %v1440
      %v1561 = vadd.f32 %v1169, %v1443
      %v1562 = vadd.f32 %v1174, %v1448
      %v1563 = vadd.f32 %v1177, %v1451
      %v1564 = vadd.f32 %v1182, %v1456
      %v1565 = vadd.f32 %v1185, %v1459
      %v1566 = vadd.f32 %v1190, %v1464
      %v1567 = vadd.f32 %v1193, %v1467
      %v1568 = vadd.f32 %v1198, %v1472
      %v1569 = vadd.f32 %v1201, %v1475
      %v1570 = vadd.f32 %v1206, %v1480
      %v1571 = vadd.f32 %v1209, %v1483
      %v1572 = vadd.f32 %v1214, %v1488
      %v1573 = vadd.f32 %v1217, %v1491
      %v1574 = vadd.f32 %v1222, %v1496
      %v1575 = vadd.f32 %v1225, %v1499
      %v1576 = vadd.f32 %v1230, %v1504
      %v1577 = vadd.f32 %v1233, %v1507
      %v1578 = vadd.f32 %v1238, %v1512
      %v1579 = vadd.f32 %v1241, %v1515
      %v1580 = vadd.f32 %v1246, %v1520
      %v1581 = vadd.f32 %v1249, %v1523
      %v1582 = vadd.f32 %v1254, %v1528
      %v1583 = vadd.f32 %v1257, %v1531
      %v1584 = vadd.f32 %v1262, %v1536
      %v1585 = vadd.f32 %v1265, %v1539
      %v1586 = vadd.f32 %v1270, %v1544
      %v1587 = vadd.f32 %v1273, %v1547
      %v1588 = vadd.f32 %v1278, %v1552
      %v1589 = vadd.f32 %v1281, %v1555
      %v1590 = vld [vmem:[%s704] sm:$0xff]
      %v1591 = vld [vmem:[%s704 + $0x8] sm:$0xff]
      %v1592 = vld [vmem:[%s704 + $0x18] sm:$0xff]
      %v1593 = vld [vmem:[%s704 + $0x20] sm:$0xff]
      %v1594 = vld [vmem:[%s704 + $0x30] sm:$0xff]
      %v1595 = vld [vmem:[%s704 + $0x38] sm:$0xff]
      %v1596 = vld [vmem:[%s704 + $0x48] sm:$0xff]
      %v1597 = vld [vmem:[%s704 + $0x50] sm:$0xff]
      %v1598 = vld [vmem:[%s704 + $0x60] sm:$0xff]
      %v1599 = vld [vmem:[%s704 + $0x68] sm:$0xff]
      %v1600 = vld [vmem:[%s704 + $0x78] sm:$0xff]
      %v1601 = vld [vmem:[%s704 + $0x80] sm:$0xff]
      %v1602 = vld [vmem:[%s704 + $0x90] sm:$0xff]
      %v1603 = vld [vmem:[%s704 + $0x98] sm:$0xff]
      %v1604 = vld [vmem:[%s704 + $0xa8] sm:$0xff]
      %v1605 = vld [vmem:[%s704 + $0xb0] sm:$0xff]
      %v1606 = vld [vmem:[%s704 + $0xc0] sm:$0xff]
      %v1607 = vld [vmem:[%s704 + $0xc8] sm:$0xff]
      %v1608 = vld [vmem:[%s704 + $0xd8] sm:$0xff]
      %v1609 = vld [vmem:[%s704 + $0xe0] sm:$0xff]
      %v1610 = vld [vmem:[%s704 + $0xf0] sm:$0xff]
      %v1611 = vld [vmem:[%s704 + $0xf8] sm:$0xff]
      %v1612 = vld [vmem:[%s704 + $0x108] sm:$0xff]
      %v1613 = vld [vmem:[%s704 + $0x110] sm:$0xff]
      %v1614 = vld [vmem:[%s704 + $0x120] sm:$0xff]
      %v1615 = vld [vmem:[%s704 + $0x128] sm:$0xff]
      %v1616 = vld [vmem:[%s704 + $0x138] sm:$0xff]
      %v1617 = vld [vmem:[%s704 + $0x140] sm:$0xff]
      %v1618 = vld [vmem:[%s704 + $0x150] sm:$0xff]
      %v1619 = vld [vmem:[%s704 + $0x158] sm:$0xff]
      %v1620 = vld [vmem:[%s704 + $0x168] sm:$0xff]
      %v1621 = vld [vmem:[%s704 + $0x170] sm:$0xff]
      %v1622 = vpack.c.bf16 %v1591, %v1590
      %v1623 = vpack.c.bf16 %v1593, %v1592
      %v1624 = vpack.c.bf16 %v1595, %v1594
      %v1625 = vpack.c.bf16 %v1597, %v1596
      %v1626 = vpack.c.bf16 %v1599, %v1598
      %v1627 = vpack.c.bf16 %v1601, %v1600
      %v1628 = vpack.c.bf16 %v1603, %v1602
      %v1629 = vpack.c.bf16 %v1605, %v1604
      %v1630 = vpack.c.bf16 %v1607, %v1606
      %v1631 = vpack.c.bf16 %v1609, %v1608
      %v1632 = vpack.c.bf16 %v1611, %v1610
      %v1633 = vpack.c.bf16 %v1613, %v1612
      %v1634 = vpack.c.bf16 %v1615, %v1614
      %v1635 = vpack.c.bf16 %v1617, %v1616
      %v1636 = vpack.c.bf16 %v1619, %v1618
      %v1637 = vpack.c.bf16 %v1621, %v1620
      %s1638 = scalar_lea.vmem %s4, 192
      %v1639 = vld [vmem:[%s1638] sm:$0xf]
      %v1640 = vld [vmem:[%s1638 + $0x4] sm:$0xf]
      %v1641 = vld [vmem:[%s1638 + $0x8] sm:$0xf]
      %v1642 = vld [vmem:[%s1638 + $0xc] sm:$0xf]
      %v1643 = vld [vmem:[%s1638 + $0x10] sm:$0xf]
      %v1644 = vld [vmem:[%s1638 + $0x14] sm:$0xf]
      %v1645 = vld [vmem:[%s1638 + $0x18] sm:$0xf]
      %v1646 = vld [vmem:[%s1638 + $0x1c] sm:$0xf]
      %v1647 = vld [vmem:[%s1638 + $0x20] sm:$0xf]
      %v1648 = vld [vmem:[%s1638 + $0x24] sm:$0xf]
      %v1649 = vld [vmem:[%s1638 + $0x28] sm:$0xf]
      %v1650 = vld [vmem:[%s1638 + $0x2c] sm:$0xf]
      %v1651 = vld [vmem:[%s1638 + $0x30] sm:$0xf]
      %v1652 = vld [vmem:[%s1638 + $0x34] sm:$0xf]
      %v1653 = vld [vmem:[%s1638 + $0x38] sm:$0xf]
      %v1654 = vld [vmem:[%s1638 + $0x3c] sm:$0xf]
      %v1671 = vunpack.c.l.b16 %v1639
      %v1672 = vunpack.c.l.b16 %v1640
      %v1673 = vunpack.c.l.b16 %v1641
      %v1674 = vunpack.c.l.b16 %v1642
      %v1675 = vunpack.c.l.b16 %v1643
      %v1676 = vunpack.c.l.b16 %v1644
      %v1677 = vunpack.c.l.b16 %v1645
      %v1678 = vunpack.c.l.b16 %v1646
      %v1679 = vunpack.c.l.b16 %v1647
      %v1680 = vunpack.c.l.b16 %v1648
      %v1681 = vunpack.c.l.b16 %v1649
      %v1682 = vunpack.c.l.b16 %v1650
      %v1683 = vunpack.c.l.b16 %v1651
      %v1684 = vunpack.c.l.b16 %v1652
      %v1685 = vunpack.c.l.b16 %v1653
      %v1686 = vunpack.c.l.b16 %v1654
      %v1687 = vpack.c.b16 %v1672, %v1671
      %v1688 = vpack.c.b16 %v1674, %v1673
      %v1689 = vpack.c.b16 %v1676, %v1675
      %v1690 = vpack.c.b16 %v1678, %v1677
      %v1691 = vpack.c.b16 %v1680, %v1679
      %v1692 = vpack.c.b16 %v1682, %v1681
      %v1693 = vpack.c.b16 %v1684, %v1683
      %v1694 = vpack.c.b16 %v1686, %v1685
      %1703 = vmatprep.subr.bf16.mxu0 0
      %1704 = vmatpush1.bf16.msra.mxu0 %v1687
      %1705 = vmatprep.subr.bf16.mxu0 0
      %1706 = vmatpush1.bf16.msra.mxu0 %v1688
      %1707 = vmatprep.subr.bf16.mxu0 0
      %1708 = vmatpush1.bf16.msra.mxu0 %v1689
      %1709 = vmatprep.subr.bf16.mxu0 0
      %1710 = vmatpush1.bf16.msra.mxu0 %v1690
      %1711 = vmatprep.subr.bf16.mxu0 0
      %1712 = vmatpush1.bf16.msra.mxu0 %v1691
      %1713 = vmatprep.subr.bf16.mxu0 0
      %1714 = vmatpush1.bf16.msra.mxu0 %v1692
      %1715 = vmatprep.subr.bf16.mxu0 0
      %1716 = vmatpush1.bf16.msra.mxu0 %v1693
      %1717 = vmatprep.subr.bf16.mxu0 0
      %1718 = vmatpush1.bf16.msra.mxu0 %v1694
      %1719 = vmatprep.subr.bf16.mxu0 0
      %1720 = vmatpush1.bf16.msra.mxu0 0
      %1721 = vmatprep.subr.bf16.mxu0 0
      %1722 = vmatpush1.bf16.msra.mxu0 0
      %1723 = vmatprep.subr.bf16.mxu0 0
      %1724 = vmatpush1.bf16.msra.mxu0 0
      %1725 = vmatprep.subr.bf16.mxu0 0
      %1726 = vmatpush1.bf16.msra.mxu0 0
      %1727 = vmatprep.subr.bf16.mxu0 0
      %1728 = vmatpush1.bf16.msra.mxu0 0
      %1729 = vmatprep.subr.bf16.mxu0 0
      %1730 = vmatpush1.bf16.msra.mxu0 0
      %1731 = vmatprep.subr.bf16.mxu0 0
      %1732 = vmatpush1.bf16.msra.mxu0 0
      %1733 = vmatprep.subr.bf16.mxu0 0
      %1734 = vmatpush1.bf16.msra.mxu0 0
      %1735 = vmatprep.mubr.bf16.mxu0 0
      %1736 = vmatmul.mubr.bf16.gmra.mrb[0].mxu0 %v1622
      %v1737 = vpop.f32.mrb[0].mxu0
      %v1738 = vadd.f32 0.0, %v1737
      %v1739 = vpop.f32.mrb[0].mxu0
      %v1740 = vpop.f32.mrb[0].mxu0
      %v1741 = vadd.f32 0.0, %v1740
      %v1742 = vpop.f32.mrb[0].mxu0
      %1743 = vmatprep.mubr.bf16.mxu0 0
      %1744 = vmatmul.mubr.bf16.gmra.mrb[0].mxu0 %v1623
      %v1745 = vpop.f32.mrb[0].mxu0
      %v1746 = vadd.f32 0.0, %v1745
      %v1747 = vpop.f32.mrb[0].mxu0
      %v1748 = vpop.f32.mrb[0].mxu0
      %v1749 = vadd.f32 0.0, %v1748
      %v1750 = vpop.f32.mrb[0].mxu0
      %1751 = vmatprep.mubr.bf16.mxu0 0
      %1752 = vmatmul.mubr.bf16.gmra.mrb[0].mxu0 %v1624
      %v1753 = vpop.f32.mrb[0].mxu0
      %v1754 = vadd.f32 0.0, %v1753
      %v1755 = vpop.f32.mrb[0].mxu0
      %v1756 = vpop.f32.mrb[0].mxu0
      %v1757 = vadd.f32 0.0, %v1756
      %v1758 = vpop.f32.mrb[0].mxu0
      %1759 = vmatprep.mubr.bf16.mxu0 0
      %1760 = vmatmul.mubr.bf16.gmra.mrb[0].mxu0 %v1625
      %v1761 = vpop.f32.mrb[0].mxu0
      %v1762 = vadd.f32 0.0, %v1761
      %v1763 = vpop.f32.mrb[0].mxu0
      %v1764 = vpop.f32.mrb[0].mxu0
      %v1765 = vadd.f32 0.0, %v1764
      %v1766 = vpop.f32.mrb[0].mxu0
      %1767 = vmatprep.mubr.bf16.mxu0 0
      %1768 = vmatmul.mubr.bf16.gmra.mrb[0].mxu0 %v1626
      %v1769 = vpop.f32.mrb[0].mxu0
      %v1770 = vadd.f32 0.0, %v1769
      %v1771 = vpop.f32.mrb[0].mxu0
      %v1772 = vpop.f32.mrb[0].mxu0
      %v1773 = vadd.f32 0.0, %v1772
      %v1774 = vpop.f32.mrb[0].mxu0
      %1775 = vmatprep.mubr.bf16.mxu0 0
      %1776 = vmatmul.mubr.bf16.gmra.mrb[0].mxu0 %v1627
      %v1777 = vpop.f32.mrb[0].mxu0
      %v1778 = vadd.f32 0.0, %v1777
      %v1779 = vpop.f32.mrb[0].mxu0
      %v1780 = vpop.f32.mrb[0].mxu0
      %v1781 = vadd.f32 0.0, %v1780
      %v1782 = vpop.f32.mrb[0].mxu0
      %1783 = vmatprep.mubr.bf16.mxu0 0
      %1784 = vmatmul.mubr.bf16.gmra.mrb[0].mxu0 %v1628
      %v1785 = vpop.f32.mrb[0].mxu0
      %v1786 = vadd.f32 0.0, %v1785
      %v1787 = vpop.f32.mrb[0].mxu0
      %v1788 = vpop.f32.mrb[0].mxu0
      %v1789 = vadd.f32 0.0, %v1788
      %v1790 = vpop.f32.mrb[0].mxu0
      %1791 = vmatprep.mubr.bf16.mxu0 0
      %1792 = vmatmul.mubr.bf16.gmra.mrb[0].mxu0 %v1629
      %v1793 = vpop.f32.mrb[0].mxu0
      %v1794 = vadd.f32 0.0, %v1793
      %v1795 = vpop.f32.mrb[0].mxu0
      %v1796 = vpop.f32.mrb[0].mxu0
      %v1797 = vadd.f32 0.0, %v1796
      %v1798 = vpop.f32.mrb[0].mxu0
      %1799 = vmatprep.mubr.bf16.mxu0 0
      %1800 = vmatmul.mubr.bf16.gmra.mrb[0].mxu0 %v1630
      %v1801 = vpop.f32.mrb[0].mxu0
      %v1802 = vadd.f32 0.0, %v1801
      %v1803 = vpop.f32.mrb[0].mxu0
      %v1804 = vpop.f32.mrb[0].mxu0
      %v1805 = vadd.f32 0.0, %v1804
      %v1806 = vpop.f32.mrb[0].mxu0
      %1807 = vmatprep.mubr.bf16.mxu0 0
      %1808 = vmatmul.mubr.bf16.gmra.mrb[0].mxu0 %v1631
      %v1809 = vpop.f32.mrb[0].mxu0
      %v1810 = vadd.f32 0.0, %v1809
      %v1811 = vpop.f32.mrb[0].mxu0
      %v1812 = vpop.f32.mrb[0].mxu0
      %v1813 = vadd.f32 0.0, %v1812
      %v1814 = vpop.f32.mrb[0].mxu0
      %1815 = vmatprep.mubr.bf16.mxu0 0
      %1816 = vmatmul.mubr.bf16.gmra.mrb[0].mxu0 %v1632
      %v1817 = vpop.f32.mrb[0].mxu0
      %v1818 = vadd.f32 0.0, %v1817
      %v1819 = vpop.f32.mrb[0].mxu0
      %v1820 = vpop.f32.mrb[0].mxu0
      %v1821 = vadd.f32 0.0, %v1820
      %v1822 = vpop.f32.mrb[0].mxu0
      %1823 = vmatprep.mubr.bf16.mxu0 0
      %1824 = vmatmul.mubr.bf16.gmra.mrb[0].mxu0 %v1633
      %v1825 = vpop.f32.mrb[0].mxu0
      %v1826 = vadd.f32 0.0, %v1825
      %v1827 = vpop.f32.mrb[0].mxu0
      %v1828 = vpop.f32.mrb[0].mxu0
      %v1829 = vadd.f32 0.0, %v1828
      %v1830 = vpop.f32.mrb[0].mxu0
      %1831 = vmatprep.mubr.bf16.mxu0 0
      %1832 = vmatmul.mubr.bf16.gmra.mrb[0].mxu0 %v1634
      %v1833 = vpop.f32.mrb[0].mxu0
      %v1834 = vadd.f32 0.0, %v1833
      %v1835 = vpop.f32.mrb[0].mxu0
      %v1836 = vpop.f32.mrb[0].mxu0
      %v1837 = vadd.f32 0.0, %v1836
      %v1838 = vpop.f32.mrb[0].mxu0
      %1839 = vmatprep.mubr.bf16.mxu0 0
      %1840 = vmatmul.mubr.bf16.gmra.mrb[0].mxu0 %v1635
      %v1841 = vpop.f32.mrb[0].mxu0
      %v1842 = vadd.f32 0.0, %v1841
      %v1843 = vpop.f32.mrb[0].mxu0
      %v1844 = vpop.f32.mrb[0].mxu0
      %v1845 = vadd.f32 0.0, %v1844
      %v1846 = vpop.f32.mrb[0].mxu0
      %1847 = vmatprep.mubr.bf16.mxu0 0
      %1848 = vmatmul.mubr.bf16.gmra.mrb[0].mxu0 %v1636
      %v1849 = vpop.f32.mrb[0].mxu0
      %v1850 = vadd.f32 0.0, %v1849
      %v1851 = vpop.f32.mrb[0].mxu0
      %v1852 = vpop.f32.mrb[0].mxu0
      %v1853 = vadd.f32 0.0, %v1852
      %v1854 = vpop.f32.mrb[0].mxu0
      %1855 = vmatprep.mubr.bf16.mxu0 0
      %1856 = vmatmul.mubr.bf16.gmra.mrb[0].mxu0 %v1637
      %v1857 = vpop.f32.mrb[0].mxu0
      %v1858 = vadd.f32 0.0, %v1857
      %v1859 = vpop.f32.mrb[0].mxu0
      %v1860 = vpop.f32.mrb[0].mxu0
      %v1861 = vadd.f32 0.0, %v1860
      %v1862 = vpop.f32.mrb[0].mxu0
      %1863 = vdwg.mxu0
      %v1864 = vadd.f32 %v1558, %v1738
      %v1865 = vadd.f32 %v1559, %v1741
      %v1866 = vadd.f32 %v1560, %v1746
      %v1867 = vadd.f32 %v1561, %v1749
      %v1868 = vadd.f32 %v1562, %v1754
      %v1869 = vadd.f32 %v1563, %v1757
      %v1870 = vadd.f32 %v1564, %v1762
      %v1871 = vadd.f32 %v1565, %v1765
      %v1872 = vadd.f32 %v1566, %v1770
      %v1873 = vadd.f32 %v1567, %v1773
      %v1874 = vadd.f32 %v1568, %v1778
      %v1875 = vadd.f32 %v1569, %v1781
      %v1876 = vadd.f32 %v1570, %v1786
      %v1877 = vadd.f32 %v1571, %v1789
      %v1878 = vadd.f32 %v1572, %v1794
      %v1879 = vadd.f32 %v1573, %v1797
      %v1880 = vadd.f32 %v1574, %v1802
      %v1881 = vadd.f32 %v1575, %v1805
      %v1882 = vadd.f32 %v1576, %v1810
      %v1883 = vadd.f32 %v1577, %v1813
      %v1884 = vadd.f32 %v1578, %v1818
      %v1885 = vadd.f32 %v1579, %v1821
      %v1886 = vadd.f32 %v1580, %v1826
      %v1887 = vadd.f32 %v1581, %v1829
      %v1888 = vadd.f32 %v1582, %v1834
      %v1889 = vadd.f32 %v1583, %v1837
      %v1890 = vadd.f32 %v1584, %v1842
      %v1891 = vadd.f32 %v1585, %v1845
      %v1892 = vadd.f32 %v1586, %v1850
      %v1893 = vadd.f32 %v1587, %v1853
      %v1894 = vadd.f32 %v1588, %v1858
      %v1895 = vadd.f32 %v1589, %v1861
      %v1896 = vld [vmem:[%s704 + $0x1] sm:$0xff]
      %v1897 = vld [vmem:[%s704 + $0x9] sm:$0xff]
      %v1898 = vld [vmem:[%s704 + $0x19] sm:$0xff]
      %v1899 = vld [vmem:[%s704 + $0x21] sm:$0xff]
      %v1900 = vld [vmem:[%s704 + $0x31] sm:$0xff]
      %v1901 = vld [vmem:[%s704 + $0x39] sm:$0xff]
      %v1902 = vld [vmem:[%s704 + $0x49] sm:$0xff]
      %v1903 = vld [vmem:[%s704 + $0x51] sm:$0xff]
      %v1904 = vld [vmem:[%s704 + $0x61] sm:$0xff]
      %v1905 = vld [vmem:[%s704 + $0x69] sm:$0xff]
      %v1906 = vld [vmem:[%s704 + $0x79] sm:$0xff]
      %v1907 = vld [vmem:[%s704 + $0x81] sm:$0xff]
      %v1908 = vld [vmem:[%s704 + $0x91] sm:$0xff]
      %v1909 = vld [vmem:[%s704 + $0x99] sm:$0xff]
      %v1910 = vld [vmem:[%s704 + $0xa9] sm:$0xff]
      %v1911 = vld [vmem:[%s704 + $0xb1] sm:$0xff]
      %v1912 = vld [vmem:[%s704 + $0xc1] sm:$0xff]
      %v1913 = vld [vmem:[%s704 + $0xc9] sm:$0xff]
      %v1914 = vld [vmem:[%s704 + $0xd9] sm:$0xff]
      %v1915 = vld [vmem:[%s704 + $0xe1] sm:$0xff]
      %v1916 = vld [vmem:[%s704 + $0xf1] sm:$0xff]
      %v1917 = vld [vmem:[%s704 + $0xf9] sm:$0xff]
      %v1918 = vld [vmem:[%s704 + $0x109] sm:$0xff]
      %v1919 = vld [vmem:[%s704 + $0x111] sm:$0xff]
      %v1920 = vld [vmem:[%s704 + $0x121] sm:$0xff]
      %v1921 = vld [vmem:[%s704 + $0x129] sm:$0xff]
      %v1922 = vld [vmem:[%s704 + $0x139] sm:$0xff]
      %v1923 = vld [vmem:[%s704 + $0x141] sm:$0xff]
      %v1924 = vld [vmem:[%s704 + $0x151] sm:$0xff]
      %v1925 = vld [vmem:[%s704 + $0x159] sm:$0xff]
      %v1926 = vld [vmem:[%s704 + $0x169] sm:$0xff]
      %v1927 = vld [vmem:[%s704 + $0x171] sm:$0xff]
      %v1928 = vpack.c.bf16 %v1897, %v1896
      %v1929 = vpack.c.bf16 %v1899, %v1898
      %v1930 = vpack.c.bf16 %v1901, %v1900
      %v1931 = vpack.c.bf16 %v1903, %v1902
      %v1932 = vpack.c.bf16 %v1905, %v1904
      %v1933 = vpack.c.bf16 %v1907, %v1906
      %v1934 = vpack.c.bf16 %v1909, %v1908
      %v1935 = vpack.c.bf16 %v1911, %v1910
      %v1936 = vpack.c.bf16 %v1913, %v1912
      %v1937 = vpack.c.bf16 %v1915, %v1914
      %v1938 = vpack.c.bf16 %v1917, %v1916
      %v1939 = vpack.c.bf16 %v1919, %v1918
      %v1940 = vpack.c.bf16 %v1921, %v1920
      %v1941 = vpack.c.bf16 %v1923, %v1922
      %v1942 = vpack.c.bf16 %v1925, %v1924
      %v1943 = vpack.c.bf16 %v1927, %v1926
      %s1944 = scalar_lea.vmem %s4, 256
      %v1945 = vld [vmem:[%s1944] sm:$0xf]
      %v1946 = vld [vmem:[%s1944 + $0x4] sm:$0xf]
      %v1947 = vld [vmem:[%s1944 + $0x8] sm:$0xf]
      %v1948 = vld [vmem:[%s1944 + $0xc] sm:$0xf]
      %v1949 = vld [vmem:[%s1944 + $0x10] sm:$0xf]
      %v1950 = vld [vmem:[%s1944 + $0x14] sm:$0xf]
      %v1951 = vld [vmem:[%s1944 + $0x18] sm:$0xf]
      %v1952 = vld [vmem:[%s1944 + $0x1c] sm:$0xf]
      %v1953 = vld [vmem:[%s1944 + $0x20] sm:$0xf]
      %v1954 = vld [vmem:[%s1944 + $0x24] sm:$0xf]
      %v1955 = vld [vmem:[%s1944 + $0x28] sm:$0xf]
      %v1956 = vld [vmem:[%s1944 + $0x2c] sm:$0xf]
      %v1957 = vld [vmem:[%s1944 + $0x30] sm:$0xf]
      %v1958 = vld [vmem:[%s1944 + $0x34] sm:$0xf]
      %v1959 = vld [vmem:[%s1944 + $0x38] sm:$0xf]
      %v1960 = vld [vmem:[%s1944 + $0x3c] sm:$0xf]
      %v1977 = vunpack.c.l.b16 %v1945
      %v1978 = vunpack.c.l.b16 %v1946
      %v1979 = vunpack.c.l.b16 %v1947
      %v1980 = vunpack.c.l.b16 %v1948
      %v1981 = vunpack.c.l.b16 %v1949
      %v1982 = vunpack.c.l.b16 %v1950
      %v1983 = vunpack.c.l.b16 %v1951
      %v1984 = vunpack.c.l.b16 %v1952
      %v1985 = vunpack.c.l.b16 %v1953
      %v1986 = vunpack.c.l.b16 %v1954
      %v1987 = vunpack.c.l.b16 %v1955
      %v1988 = vunpack.c.l.b16 %v1956
      %v1989 = vunpack.c.l.b16 %v1957
      %v1990 = vunpack.c.l.b16 %v1958
      %v1991 = vunpack.c.l.b16 %v1959
      %v1992 = vunpack.c.l.b16 %v1960
      %v1993 = vpack.c.b16 %v1978, %v1977
      %v1994 = vpack.c.b16 %v1980, %v1979
      %v1995 = vpack.c.b16 %v1982, %v1981
      %v1996 = vpack.c.b16 %v1984, %v1983
      %v1997 = vpack.c.b16 %v1986, %v1985
      %v1998 = vpack.c.b16 %v1988, %v1987
      %v1999 = vpack.c.b16 %v1990, %v1989
      %v2000 = vpack.c.b16 %v1992, %v1991
      %2009 = vmatprep.subr.bf16.mxu0 0
      %2010 = vmatpush1.bf16.msra.mxu0 %v1993
      %2011 = vmatprep.subr.bf16.mxu0 0
      %2012 = vmatpush1.bf16.msra.mxu0 %v1994
      %2013 = vmatprep.subr.bf16.mxu0 0
      %2014 = vmatpush1.bf16.msra.mxu0 %v1995
      %2015 = vmatprep.subr.bf16.mxu0 0
      %2016 = vmatpush1.bf16.msra.mxu0 %v1996
      %2017 = vmatprep.subr.bf16.mxu0 0
      %2018 = vmatpush1.bf16.msra.mxu0 %v1997
      %2019 = vmatprep.subr.bf16.mxu0 0
      %2020 = vmatpush1.bf16.msra.mxu0 %v1998
      %2021 = vmatprep.subr.bf16.mxu0 0
      %2022 = vmatpush1.bf16.msra.mxu0 %v1999
      %2023 = vmatprep.subr.bf16.mxu0 0
      %2024 = vmatpush1.bf16.msra.mxu0 %v2000
      %2025 = vmatprep.subr.bf16.mxu0 0
      %2026 = vmatpush1.bf16.msra.mxu0 0
      %2027 = vmatprep.subr.bf16.mxu0 0
      %2028 = vmatpush1.bf16.msra.mxu0 0
      %2029 = vmatprep.subr.bf16.mxu0 0
      %2030 = vmatpush1.bf16.msra.mxu0 0
      %2031 = vmatprep.subr.bf16.mxu0 0
      %2032 = vmatpush1.bf16.msra.mxu0 0
      %2033 = vmatprep.subr.bf16.mxu0 0
      %2034 = vmatpush1.bf16.msra.mxu0 0
      %2035 = vmatprep.subr.bf16.mxu0 0
      %2036 = vmatpush1.bf16.msra.mxu0 0
      %2037 = vmatprep.subr.bf16.mxu0 0
      %2038 = vmatpush1.bf16.msra.mxu0 0
      %2039 = vmatprep.subr.bf16.mxu0 0
      %2040 = vmatpush1.bf16.msra.mxu0 0
      %2041 = vmatprep.mubr.bf16.mxu0 0
      %2042 = vmatmul.mubr.bf16.gmra.mrb[0].mxu0 %v1928
      %v2043 = vpop.f32.mrb[0].mxu0
      %v2044 = vadd.f32 0.0, %v2043
      %v2045 = vpop.f32.mrb[0].mxu0
      %v2046 = vpop.f32.mrb[0].mxu0
      %v2047 = vadd.f32 0.0, %v2046
      %v2048 = vpop.f32.mrb[0].mxu0
      %2049 = vmatprep.mubr.bf16.mxu0 0
      %2050 = vmatmul.mubr.bf16.gmra.mrb[0].mxu0 %v1929
      %v2051 = vpop.f32.mrb[0].mxu0
      %v2052 = vadd.f32 0.0, %v2051
      %v2053 = vpop.f32.mrb[0].mxu0
      %v2054 = vpop.f32.mrb[0].mxu0
      %v2055 = vadd.f32 0.0, %v2054
      %v2056 = vpop.f32.mrb[0].mxu0
      %2057 = vmatprep.mubr.bf16.mxu0 0
      %2058 = vmatmul.mubr.bf16.gmra.mrb[0].mxu0 %v1930
      %v2059 = vpop.f32.mrb[0].mxu0
      %v2060 = vadd.f32 0.0, %v2059
      %v2061 = vpop.f32.mrb[0].mxu0
      %v2062 = vpop.f32.mrb[0].mxu0
      %v2063 = vadd.f32 0.0, %v2062
      %v2064 = vpop.f32.mrb[0].mxu0
      %2065 = vmatprep.mubr.bf16.mxu0 0
      %2066 = vmatmul.mubr.bf16.gmra.mrb[0].mxu0 %v1931
      %v2067 = vpop.f32.mrb[0].mxu0
      %v2068 = vadd.f32 0.0, %v2067
      %v2069 = vpop.f32.mrb[0].mxu0
      %v2070 = vpop.f32.mrb[0].mxu0
      %v2071 = vadd.f32 0.0, %v2070
      %v2072 = vpop.f32.mrb[0].mxu0
      %2073 = vmatprep.mubr.bf16.mxu0 0
      %2074 = vmatmul.mubr.bf16.gmra.mrb[0].mxu0 %v1932
      %v2075 = vpop.f32.mrb[0].mxu0
      %v2076 = vadd.f32 0.0, %v2075
      %v2077 = vpop.f32.mrb[0].mxu0
      %v2078 = vpop.f32.mrb[0].mxu0
      %v2079 = vadd.f32 0.0, %v2078
      %v2080 = vpop.f32.mrb[0].mxu0
      %2081 = vmatprep.mubr.bf16.mxu0 0
      %2082 = vmatmul.mubr.bf16.gmra.mrb[0].mxu0 %v1933
      %v2083 = vpop.f32.mrb[0].mxu0
      %v2084 = vadd.f32 0.0, %v2083
      %v2085 = vpop.f32.mrb[0].mxu0
      %v2086 = vpop.f32.mrb[0].mxu0
      %v2087 = vadd.f32 0.0, %v2086
      %v2088 = vpop.f32.mrb[0].mxu0
      %2089 = vmatprep.mubr.bf16.mxu0 0
      %2090 = vmatmul.mubr.bf16.gmra.mrb[0].mxu0 %v1934
      %v2091 = vpop.f32.mrb[0].mxu0
      %v2092 = vadd.f32 0.0, %v2091
      %v2093 = vpop.f32.mrb[0].mxu0
      %v2094 = vpop.f32.mrb[0].mxu0
      %v2095 = vadd.f32 0.0, %v2094
      %v2096 = vpop.f32.mrb[0].mxu0
      %2097 = vmatprep.mubr.bf16.mxu0 0
      %2098 = vmatmul.mubr.bf16.gmra.mrb[0].mxu0 %v1935
      %v2099 = vpop.f32.mrb[0].mxu0
      %v2100 = vadd.f32 0.0, %v2099
      %v2101 = vpop.f32.mrb[0].mxu0
      %v2102 = vpop.f32.mrb[0].mxu0
      %v2103 = vadd.f32 0.0, %v2102
      %v2104 = vpop.f32.mrb[0].mxu0
      %2105 = vmatprep.mubr.bf16.mxu0 0
      %2106 = vmatmul.mubr.bf16.gmra.mrb[0].mxu0 %v1936
      %v2107 = vpop.f32.mrb[0].mxu0
      %v2108 = vadd.f32 0.0, %v2107
      %v2109 = vpop.f32.mrb[0].mxu0
      %v2110 = vpop.f32.mrb[0].mxu0
      %v2111 = vadd.f32 0.0, %v2110
      %v2112 = vpop.f32.mrb[0].mxu0
      %2113 = vmatprep.mubr.bf16.mxu0 0
      %2114 = vmatmul.mubr.bf16.gmra.mrb[0].mxu0 %v1937
      %v2115 = vpop.f32.mrb[0].mxu0
      %v2116 = vadd.f32 0.0, %v2115
      %v2117 = vpop.f32.mrb[0].mxu0
      %v2118 = vpop.f32.mrb[0].mxu0
      %v2119 = vadd.f32 0.0, %v2118
      %v2120 = vpop.f32.mrb[0].mxu0
      %2121 = vmatprep.mubr.bf16.mxu0 0
      %2122 = vmatmul.mubr.bf16.gmra.mrb[0].mxu0 %v1938
      %v2123 = vpop.f32.mrb[0].mxu0
      %v2124 = vadd.f32 0.0, %v2123
      %v2125 = vpop.f32.mrb[0].mxu0
      %v2126 = vpop.f32.mrb[0].mxu0
      %v2127 = vadd.f32 0.0, %v2126
      %v2128 = vpop.f32.mrb[0].mxu0
      %2129 = vmatprep.mubr.bf16.mxu0 0
      %2130 = vmatmul.mubr.bf16.gmra.mrb[0].mxu0 %v1939
      %v2131 = vpop.f32.mrb[0].mxu0
      %v2132 = vadd.f32 0.0, %v2131
      %v2133 = vpop.f32.mrb[0].mxu0
      %v2134 = vpop.f32.mrb[0].mxu0
      %v2135 = vadd.f32 0.0, %v2134
      %v2136 = vpop.f32.mrb[0].mxu0
      %2137 = vmatprep.mubr.bf16.mxu0 0
      %2138 = vmatmul.mubr.bf16.gmra.mrb[0].mxu0 %v1940
      %v2139 = vpop.f32.mrb[0].mxu0
      %v2140 = vadd.f32 0.0, %v2139
      %v2141 = vpop.f32.mrb[0].mxu0
      %v2142 = vpop.f32.mrb[0].mxu0
      %v2143 = vadd.f32 0.0, %v2142
      %v2144 = vpop.f32.mrb[0].mxu0
      %2145 = vmatprep.mubr.bf16.mxu0 0
      %2146 = vmatmul.mubr.bf16.gmra.mrb[0].mxu0 %v1941
      %v2147 = vpop.f32.mrb[0].mxu0
      %v2148 = vadd.f32 0.0, %v2147
      %v2149 = vpop.f32.mrb[0].mxu0
      %v2150 = vpop.f32.mrb[0].mxu0
      %v2151 = vadd.f32 0.0, %v2150
      %v2152 = vpop.f32.mrb[0].mxu0
      %2153 = vmatprep.mubr.bf16.mxu0 0
      %2154 = vmatmul.mubr.bf16.gmra.mrb[0].mxu0 %v1942
      %v2155 = vpop.f32.mrb[0].mxu0
      %v2156 = vadd.f32 0.0, %v2155
      %v2157 = vpop.f32.mrb[0].mxu0
      %v2158 = vpop.f32.mrb[0].mxu0
      %v2159 = vadd.f32 0.0, %v2158
      %v2160 = vpop.f32.mrb[0].mxu0
      %2161 = vmatprep.mubr.bf16.mxu0 0
      %2162 = vmatmul.mubr.bf16.gmra.mrb[0].mxu0 %v1943
      %v2163 = vpop.f32.mrb[0].mxu0
      %v2164 = vadd.f32 0.0, %v2163
      %v2165 = vpop.f32.mrb[0].mxu0
      %v2166 = vpop.f32.mrb[0].mxu0
      %v2167 = vadd.f32 0.0, %v2166
      %v2168 = vpop.f32.mrb[0].mxu0
      %2169 = vdwg.mxu0
      %v2170 = vadd.f32 %v1864, %v2044
      %v2171 = vadd.f32 %v1865, %v2047
      %v2172 = vadd.f32 %v1866, %v2052
      %v2173 = vadd.f32 %v1867, %v2055
      %v2174 = vadd.f32 %v1868, %v2060
      %v2175 = vadd.f32 %v1869, %v2063
      %v2176 = vadd.f32 %v1870, %v2068
      %v2177 = vadd.f32 %v1871, %v2071
      %v2178 = vadd.f32 %v1872, %v2076
      %v2179 = vadd.f32 %v1873, %v2079
      %v2180 = vadd.f32 %v1874, %v2084
      %v2181 = vadd.f32 %v1875, %v2087
      %v2182 = vadd.f32 %v1876, %v2092
      %v2183 = vadd.f32 %v1877, %v2095
      %v2184 = vadd.f32 %v1878, %v2100
      %v2185 = vadd.f32 %v1879, %v2103
      %v2186 = vadd.f32 %v1880, %v2108
      %v2187 = vadd.f32 %v1881, %v2111
      %v2188 = vadd.f32 %v1882, %v2116
      %v2189 = vadd.f32 %v1883, %v2119
      %v2190 = vadd.f32 %v1884, %v2124
      %v2191 = vadd.f32 %v1885, %v2127
      %v2192 = vadd.f32 %v1886, %v2132
      %v2193 = vadd.f32 %v1887, %v2135
      %v2194 = vadd.f32 %v1888, %v2140
      %v2195 = vadd.f32 %v1889, %v2143
      %v2196 = vadd.f32 %v1890, %v2148
      %v2197 = vadd.f32 %v1891, %v2151
      %v2198 = vadd.f32 %v1892, %v2156
      %v2199 = vadd.f32 %v1893, %v2159
      %v2200 = vadd.f32 %v1894, %v2164
      %v2201 = vadd.f32 %v1895, %v2167
      %v2202 = vld [vmem:[%s704 + $0x2] sm:$0xff]
      %v2203 = vld [vmem:[%s704 + $0xa] sm:$0xff]
      %v2204 = vld [vmem:[%s704 + $0x1a] sm:$0xff]
      %v2205 = vld [vmem:[%s704 + $0x22] sm:$0xff]
      %v2206 = vld [vmem:[%s704 + $0x32] sm:$0xff]
      %v2207 = vld [vmem:[%s704 + $0x3a] sm:$0xff]
      %v2208 = vld [vmem:[%s704 + $0x4a] sm:$0xff]
      %v2209 = vld [vmem:[%s704 + $0x52] sm:$0xff]
      %v2210 = vld [vmem:[%s704 + $0x62] sm:$0xff]
      %v2211 = vld [vmem:[%s704 + $0x6a] sm:$0xff]
      %v2212 = vld [vmem:[%s704 + $0x7a] sm:$0xff]
      %v2213 = vld [vmem:[%s704 + $0x82] sm:$0xff]
      %v2214 = vld [vmem:[%s704 + $0x92] sm:$0xff]
      %v2215 = vld [vmem:[%s704 + $0x9a] sm:$0xff]
      %v2216 = vld [vmem:[%s704 + $0xaa] sm:$0xff]
      %v2217 = vld [vmem:[%s704 + $0xb2] sm:$0xff]
      %v2218 = vld [vmem:[%s704 + $0xc2] sm:$0xff]
      %v2219 = vld [vmem:[%s704 + $0xca] sm:$0xff]
      %v2220 = vld [vmem:[%s704 + $0xda] sm:$0xff]
      %v2221 = vld [vmem:[%s704 + $0xe2] sm:$0xff]
      %v2222 = vld [vmem:[%s704 + $0xf2] sm:$0xff]
      %v2223 = vld [vmem:[%s704 + $0xfa] sm:$0xff]
      %v2224 = vld [vmem:[%s704 + $0x10a] sm:$0xff]
      %v2225 = vld [vmem:[%s704 + $0x112] sm:$0xff]
      %v2226 = vld [vmem:[%s704 + $0x122] sm:$0xff]
      %v2227 = vld [vmem:[%s704 + $0x12a] sm:$0xff]
      %v2228 = vld [vmem:[%s704 + $0x13a] sm:$0xff]
      %v2229 = vld [vmem:[%s704 + $0x142] sm:$0xff]
      %v2230 = vld [vmem:[%s704 + $0x152] sm:$0xff]
      %v2231 = vld [vmem:[%s704 + $0x15a] sm:$0xff]
      %v2232 = vld [vmem:[%s704 + $0x16a] sm:$0xff]
      %v2233 = vld [vmem:[%s704 + $0x172] sm:$0xff]
      %v2234 = vpack.c.bf16 %v2203, %v2202
      %v2235 = vpack.c.bf16 %v2205, %v2204
      %v2236 = vpack.c.bf16 %v2207, %v2206
      %v2237 = vpack.c.bf16 %v2209, %v2208
      %v2238 = vpack.c.bf16 %v2211, %v2210
      %v2239 = vpack.c.bf16 %v2213, %v2212
      %v2240 = vpack.c.bf16 %v2215, %v2214
      %v2241 = vpack.c.bf16 %v2217, %v2216
      %v2242 = vpack.c.bf16 %v2219, %v2218
      %v2243 = vpack.c.bf16 %v2221, %v2220
      %v2244 = vpack.c.bf16 %v2223, %v2222
      %v2245 = vpack.c.bf16 %v2225, %v2224
      %v2246 = vpack.c.bf16 %v2227, %v2226
      %v2247 = vpack.c.bf16 %v2229, %v2228
      %v2248 = vpack.c.bf16 %v2231, %v2230
      %v2249 = vpack.c.bf16 %v2233, %v2232
      %s2250 = scalar_lea.vmem %s4, 320
      %v2251 = vld [vmem:[%s2250] sm:$0xf]
      %v2252 = vld [vmem:[%s2250 + $0x4] sm:$0xf]
      %v2253 = vld [vmem:[%s2250 + $0x8] sm:$0xf]
      %v2254 = vld [vmem:[%s2250 + $0xc] sm:$0xf]
      %v2255 = vld [vmem:[%s2250 + $0x10] sm:$0xf]
      %v2256 = vld [vmem:[%s2250 + $0x14] sm:$0xf]
      %v2257 = vld [vmem:[%s2250 + $0x18] sm:$0xf]
      %v2258 = vld [vmem:[%s2250 + $0x1c] sm:$0xf]
      %v2259 = vld [vmem:[%s2250 + $0x20] sm:$0xf]
      %v2260 = vld [vmem:[%s2250 + $0x24] sm:$0xf]
      %v2261 = vld [vmem:[%s2250 + $0x28] sm:$0xf]
      %v2262 = vld [vmem:[%s2250 + $0x2c] sm:$0xf]
      %v2263 = vld [vmem:[%s2250 + $0x30] sm:$0xf]
      %v2264 = vld [vmem:[%s2250 + $0x34] sm:$0xf]
      %v2265 = vld [vmem:[%s2250 + $0x38] sm:$0xf]
      %v2266 = vld [vmem:[%s2250 + $0x3c] sm:$0xf]
      %v2283 = vunpack.c.l.b16 %v2251
      %v2284 = vunpack.c.l.b16 %v2252
      %v2285 = vunpack.c.l.b16 %v2253
      %v2286 = vunpack.c.l.b16 %v2254
      %v2287 = vunpack.c.l.b16 %v2255
      %v2288 = vunpack.c.l.b16 %v2256
      %v2289 = vunpack.c.l.b16 %v2257
      %v2290 = vunpack.c.l.b16 %v2258
      %v2291 = vunpack.c.l.b16 %v2259
      %v2292 = vunpack.c.l.b16 %v2260
      %v2293 = vunpack.c.l.b16 %v2261
      %v2294 = vunpack.c.l.b16 %v2262
      %v2295 = vunpack.c.l.b16 %v2263
      %v2296 = vunpack.c.l.b16 %v2264
      %v2297 = vunpack.c.l.b16 %v2265
      %v2298 = vunpack.c.l.b16 %v2266
      %v2299 = vpack.c.b16 %v2284, %v2283
      %v2300 = vpack.c.b16 %v2286, %v2285
      %v2301 = vpack.c.b16 %v2288, %v2287
      %v2302 = vpack.c.b16 %v2290, %v2289
      %v2303 = vpack.c.b16 %v2292, %v2291
      %v2304 = vpack.c.b16 %v2294, %v2293
      %v2305 = vpack.c.b16 %v2296, %v2295
      %v2306 = vpack.c.b16 %v2298, %v2297
      %2315 = vmatprep.subr.bf16.mxu0 0
      %2316 = vmatpush1.bf16.msra.mxu0 %v2299
      %2317 = vmatprep.subr.bf16.mxu0 0
      %2318 = vmatpush1.bf16.msra.mxu0 %v2300
      %2319 = vmatprep.subr.bf16.mxu0 0
      %2320 = vmatpush1.bf16.msra.mxu0 %v2301
      %2321 = vmatprep.subr.bf16.mxu0 0
      %2322 = vmatpush1.bf16.msra.mxu0 %v2302
      %2323 = vmatprep.subr.bf16.mxu0 0
      %2324 = vmatpush1.bf16.msra.mxu0 %v2303
      %2325 = vmatprep.subr.bf16.mxu0 0
      %2326 = vmatpush1.bf16.msra.mxu0 %v2304
      %2327 = vmatprep.subr.bf16.mxu0 0
      %2328 = vmatpush1.bf16.msra.mxu0 %v2305
      %2329 = vmatprep.subr.bf16.mxu0 0
      %2330 = vmatpush1.bf16.msra.mxu0 %v2306
      %2331 = vmatprep.subr.bf16.mxu0 0
      %2332 = vmatpush1.bf16.msra.mxu0 0
      %2333 = vmatprep.subr.bf16.mxu0 0
      %2334 = vmatpush1.bf16.msra.mxu0 0
      %2335 = vmatprep.subr.bf16.mxu0 0
      %2336 = vmatpush1.bf16.msra.mxu0 0
      %2337 = vmatprep.subr.bf16.mxu0 0
      %2338 = vmatpush1.bf16.msra.mxu0 0
      %2339 = vmatprep.subr.bf16.mxu0 0
      %2340 = vmatpush1.bf16.msra.mxu0 0
      %2341 = vmatprep.subr.bf16.mxu0 0
      %2342 = vmatpush1.bf16.msra.mxu0 0
      %2343 = vmatprep.subr.bf16.mxu0 0
      %2344 = vmatpush1.bf16.msra.mxu0 0
      %2345 = vmatprep.subr.bf16.mxu0 0
      %2346 = vmatpush1.bf16.msra.mxu0 0
      %2347 = vmatprep.mubr.bf16.mxu0 0
      %2348 = vmatmul.mubr.bf16.gmra.mrb[0].mxu0 %v2234
      %v2349 = vpop.f32.mrb[0].mxu0
      %v2350 = vadd.f32 0.0, %v2349
      %v2351 = vpop.f32.mrb[0].mxu0
      %v2352 = vpop.f32.mrb[0].mxu0
      %v2353 = vadd.f32 0.0, %v2352
      %v2354 = vpop.f32.mrb[0].mxu0
      %2355 = vmatprep.mubr.bf16.mxu0 0
      %2356 = vmatmul.mubr.bf16.gmra.mrb[0].mxu0 %v2235
      %v2357 = vpop.f32.mrb[0].mxu0
      %v2358 = vadd.f32 0.0, %v2357
      %v2359 = vpop.f32.mrb[0].mxu0
      %v2360 = vpop.f32.mrb[0].mxu0
      %v2361 = vadd.f32 0.0, %v2360
      %v2362 = vpop.f32.mrb[0].mxu0
      %2363 = vmatprep.mubr.bf16.mxu0 0
      %2364 = vmatmul.mubr.bf16.gmra.mrb[0].mxu0 %v2236
      %v2365 = vpop.f32.mrb[0].mxu0
      %v2366 = vadd.f32 0.0, %v2365
      %v2367 = vpop.f32.mrb[0].mxu0
      %v2368 = vpop.f32.mrb[0].mxu0
      %v2369 = vadd.f32 0.0, %v2368
      %v2370 = vpop.f32.mrb[0].mxu0
      %2371 = vmatprep.mubr.bf16.mxu0 0
      %2372 = vmatmul.mubr.bf16.gmra.mrb[0].mxu0 %v2237
      %v2373 = vpop.f32.mrb[0].mxu0
      %v2374 = vadd.f32 0.0, %v2373
      %v2375 = vpop.f32.mrb[0].mxu0
      %v2376 = vpop.f32.mrb[0].mxu0
      %v2377 = vadd.f32 0.0, %v2376
      %v2378 = vpop.f32.mrb[0].mxu0
      %2379 = vmatprep.mubr.bf16.mxu0 0
      %2380 = vmatmul.mubr.bf16.gmra.mrb[0].mxu0 %v2238
      %v2381 = vpop.f32.mrb[0].mxu0
      %v2382 = vadd.f32 0.0, %v2381
      %v2383 = vpop.f32.mrb[0].mxu0
      %v2384 = vpop.f32.mrb[0].mxu0
      %v2385 = vadd.f32 0.0, %v2384
      %v2386 = vpop.f32.mrb[0].mxu0
      %2387 = vmatprep.mubr.bf16.mxu0 0
      %2388 = vmatmul.mubr.bf16.gmra.mrb[0].mxu0 %v2239
      %v2389 = vpop.f32.mrb[0].mxu0
      %v2390 = vadd.f32 0.0, %v2389
      %v2391 = vpop.f32.mrb[0].mxu0
      %v2392 = vpop.f32.mrb[0].mxu0
      %v2393 = vadd.f32 0.0, %v2392
      %v2394 = vpop.f32.mrb[0].mxu0
      %2395 = vmatprep.mubr.bf16.mxu0 0
      %2396 = vmatmul.mubr.bf16.gmra.mrb[0].mxu0 %v2240
      %v2397 = vpop.f32.mrb[0].mxu0
      %v2398 = vadd.f32 0.0, %v2397
      %v2399 = vpop.f32.mrb[0].mxu0
      %v2400 = vpop.f32.mrb[0].mxu0
      %v2401 = vadd.f32 0.0, %v2400
      %v2402 = vpop.f32.mrb[0].mxu0
      %2403 = vmatprep.mubr.bf16.mxu0 0
      %2404 = vmatmul.mubr.bf16.gmra.mrb[0].mxu0 %v2241
      %v2405 = vpop.f32.mrb[0].mxu0
      %v2406 = vadd.f32 0.0, %v2405
      %v2407 = vpop.f32.mrb[0].mxu0
      %v2408 = vpop.f32.mrb[0].mxu0
      %v2409 = vadd.f32 0.0, %v2408
      %v2410 = vpop.f32.mrb[0].mxu0
      %2411 = vmatprep.mubr.bf16.mxu0 0
      %2412 = vmatmul.mubr.bf16.gmra.mrb[0].mxu0 %v2242
      %v2413 = vpop.f32.mrb[0].mxu0
      %v2414 = vadd.f32 0.0, %v2413
      %v2415 = vpop.f32.mrb[0].mxu0
      %v2416 = vpop.f32.mrb[0].mxu0
      %v2417 = vadd.f32 0.0, %v2416
      %v2418 = vpop.f32.mrb[0].mxu0
      %2419 = vmatprep.mubr.bf16.mxu0 0
      %2420 = vmatmul.mubr.bf16.gmra.mrb[0].mxu0 %v2243
      %v2421 = vpop.f32.mrb[0].mxu0
      %v2422 = vadd.f32 0.0, %v2421
      %v2423 = vpop.f32.mrb[0].mxu0
      %v2424 = vpop.f32.mrb[0].mxu0
      %v2425 = vadd.f32 0.0, %v2424
      %v2426 = vpop.f32.mrb[0].mxu0
      %2427 = vmatprep.mubr.bf16.mxu0 0
      %2428 = vmatmul.mubr.bf16.gmra.mrb[0].mxu0 %v2244
      %v2429 = vpop.f32.mrb[0].mxu0
      %v2430 = vadd.f32 0.0, %v2429
      %v2431 = vpop.f32.mrb[0].mxu0
      %v2432 = vpop.f32.mrb[0].mxu0
      %v2433 = vadd.f32 0.0, %v2432
      %v2434 = vpop.f32.mrb[0].mxu0
      %2435 = vmatprep.mubr.bf16.mxu0 0
      %2436 = vmatmul.mubr.bf16.gmra.mrb[0].mxu0 %v2245
      %v2437 = vpop.f32.mrb[0].mxu0
      %v2438 = vadd.f32 0.0, %v2437
      %v2439 = vpop.f32.mrb[0].mxu0
      %v2440 = vpop.f32.mrb[0].mxu0
      %v2441 = vadd.f32 0.0, %v2440
      %v2442 = vpop.f32.mrb[0].mxu0
      %2443 = vmatprep.mubr.bf16.mxu0 0
      %2444 = vmatmul.mubr.bf16.gmra.mrb[0].mxu0 %v2246
      %v2445 = vpop.f32.mrb[0].mxu0
      %v2446 = vadd.f32 0.0, %v2445
      %v2447 = vpop.f32.mrb[0].mxu0
      %v2448 = vpop.f32.mrb[0].mxu0
      %v2449 = vadd.f32 0.0, %v2448
      %v2450 = vpop.f32.mrb[0].mxu0
      %2451 = vmatprep.mubr.bf16.mxu0 0
      %2452 = vmatmul.mubr.bf16.gmra.mrb[0].mxu0 %v2247
      %v2453 = vpop.f32.mrb[0].mxu0
      %v2454 = vadd.f32 0.0, %v2453
      %v2455 = vpop.f32.mrb[0].mxu0
      %v2456 = vpop.f32.mrb[0].mxu0
      %v2457 = vadd.f32 0.0, %v2456
      %v2458 = vpop.f32.mrb[0].mxu0
      %2459 = vmatprep.mubr.bf16.mxu0 0
      %2460 = vmatmul.mubr.bf16.gmra.mrb[0].mxu0 %v2248
      %v2461 = vpop.f32.mrb[0].mxu0
      %v2462 = vadd.f32 0.0, %v2461
      %v2463 = vpop.f32.mrb[0].mxu0
      %v2464 = vpop.f32.mrb[0].mxu0
      %v2465 = vadd.f32 0.0, %v2464
      %v2466 = vpop.f32.mrb[0].mxu0
      %2467 = vmatprep.mubr.bf16.mxu0 0
      %2468 = vmatmul.mubr.bf16.gmra.mrb[0].mxu0 %v2249
      %v2469 = vpop.f32.mrb[0].mxu0
      %v2470 = vadd.f32 0.0, %v2469
      %v2471 = vpop.f32.mrb[0].mxu0
      %v2472 = vpop.f32.mrb[0].mxu0
      %v2473 = vadd.f32 0.0, %v2472
      %v2474 = vpop.f32.mrb[0].mxu0
      %2475 = vdwg.mxu0
      %v2476 = vadd.f32 %v2170, %v2350
      %v2477 = vadd.f32 %v2171, %v2353
      %v2478 = vadd.f32 %v2172, %v2358
      %v2479 = vadd.f32 %v2173, %v2361
      %v2480 = vadd.f32 %v2174, %v2366
      %v2481 = vadd.f32 %v2175, %v2369
      %v2482 = vadd.f32 %v2176, %v2374
      %v2483 = vadd.f32 %v2177, %v2377
      %v2484 = vadd.f32 %v2178, %v2382
      %v2485 = vadd.f32 %v2179, %v2385
      %v2486 = vadd.f32 %v2180, %v2390
      %v2487 = vadd.f32 %v2181, %v2393
      %v2488 = vadd.f32 %v2182, %v2398
      %v2489 = vadd.f32 %v2183, %v2401
      %v2490 = vadd.f32 %v2184, %v2406
      %v2491 = vadd.f32 %v2185, %v2409
      %v2492 = vadd.f32 %v2186, %v2414
      %v2493 = vadd.f32 %v2187, %v2417
      %v2494 = vadd.f32 %v2188, %v2422
      %v2495 = vadd.f32 %v2189, %v2425
      %v2496 = vadd.f32 %v2190, %v2430
      %v2497 = vadd.f32 %v2191, %v2433
      %v2498 = vadd.f32 %v2192, %v2438
      %v2499 = vadd.f32 %v2193, %v2441
      %v2500 = vadd.f32 %v2194, %v2446
      %v2501 = vadd.f32 %v2195, %v2449
      %v2502 = vadd.f32 %v2196, %v2454
      %v2503 = vadd.f32 %v2197, %v2457
      %v2504 = vadd.f32 %v2198, %v2462
      %v2505 = vadd.f32 %v2199, %v2465
      %v2506 = vadd.f32 %v2200, %v2470
      %v2507 = vadd.f32 %v2201, %v2473
      %s2508 = scalar_lea.vmem [#allocation2], 48
      %v2509 = vld [vmem:[%s2508] sm:$0xff]
      %v2510 = vld [vmem:[%s2508 + $0x8] sm:$0xff]
      %v2511 = vld [vmem:[%s2508 + $0x18] sm:$0xff]
      %v2512 = vld [vmem:[%s2508 + $0x20] sm:$0xff]
      %v2513 = vld [vmem:[%s2508 + $0x30] sm:$0xff]
      %v2514 = vld [vmem:[%s2508 + $0x38] sm:$0xff]
      %v2515 = vld [vmem:[%s2508 + $0x48] sm:$0xff]
      %v2516 = vld [vmem:[%s2508 + $0x50] sm:$0xff]
      %v2517 = vld [vmem:[%s2508 + $0x60] sm:$0xff]
      %v2518 = vld [vmem:[%s2508 + $0x68] sm:$0xff]
      %v2519 = vld [vmem:[%s2508 + $0x78] sm:$0xff]
      %v2520 = vld [vmem:[%s2508 + $0x80] sm:$0xff]
      %v2521 = vld [vmem:[%s2508 + $0x90] sm:$0xff]
      %v2522 = vld [vmem:[%s2508 + $0x98] sm:$0xff]
      %v2523 = vld [vmem:[%s2508 + $0xa8] sm:$0xff]
      %v2524 = vld [vmem:[%s2508 + $0xb0] sm:$0xff]
      %v2525 = vld [vmem:[%s2508 + $0xc0] sm:$0xff]
      %v2526 = vld [vmem:[%s2508 + $0xc8] sm:$0xff]
      %v2527 = vld [vmem:[%s2508 + $0xd8] sm:$0xff]
      %v2528 = vld [vmem:[%s2508 + $0xe0] sm:$0xff]
      %v2529 = vld [vmem:[%s2508 + $0xf0] sm:$0xff]
      %v2530 = vld [vmem:[%s2508 + $0xf8] sm:$0xff]
      %v2531 = vld [vmem:[%s2508 + $0x108] sm:$0xff]
      %v2532 = vld [vmem:[%s2508 + $0x110] sm:$0xff]
      %v2533 = vld [vmem:[%s2508 + $0x120] sm:$0xff]
      %v2534 = vld [vmem:[%s2508 + $0x128] sm:$0xff]
      %v2535 = vld [vmem:[%s2508 + $0x138] sm:$0xff]
      %v2536 = vld [vmem:[%s2508 + $0x140] sm:$0xff]
      %v2537 = vld [vmem:[%s2508 + $0x150] sm:$0xff]
      %v2538 = vld [vmem:[%s2508 + $0x158] sm:$0xff]
      %v2539 = vld [vmem:[%s2508 + $0x168] sm:$0xff]
      %v2540 = vld [vmem:[%s2508 + $0x170] sm:$0xff]
      %v2541 = vpack.c.bf16 %v2510, %v2509
      %v2542 = vpack.c.bf16 %v2512, %v2511
      %v2543 = vpack.c.bf16 %v2514, %v2513
      %v2544 = vpack.c.bf16 %v2516, %v2515
      %v2545 = vpack.c.bf16 %v2518, %v2517
      %v2546 = vpack.c.bf16 %v2520, %v2519
      %v2547 = vpack.c.bf16 %v2522, %v2521
      %v2548 = vpack.c.bf16 %v2524, %v2523
      %v2549 = vpack.c.bf16 %v2526, %v2525
      %v2550 = vpack.c.bf16 %v2528, %v2527
      %v2551 = vpack.c.bf16 %v2530, %v2529
      %v2552 = vpack.c.bf16 %v2532, %v2531
      %v2553 = vpack.c.bf16 %v2534, %v2533
      %v2554 = vpack.c.bf16 %v2536, %v2535
      %v2555 = vpack.c.bf16 %v2538, %v2537
      %v2556 = vpack.c.bf16 %v2540, %v2539
      %s2557 = scalar_lea.vmem %s4, 384
      %v2558 = vld [vmem:[%s2557] sm:$0xf]
      %v2559 = vld [vmem:[%s2557 + $0x4] sm:$0xf]
      %v2560 = vld [vmem:[%s2557 + $0x8] sm:$0xf]
      %v2561 = vld [vmem:[%s2557 + $0xc] sm:$0xf]
      %v2562 = vld [vmem:[%s2557 + $0x10] sm:$0xf]
      %v2563 = vld [vmem:[%s2557 + $0x14] sm:$0xf]
      %v2564 = vld [vmem:[%s2557 + $0x18] sm:$0xf]
      %v2565 = vld [vmem:[%s2557 + $0x1c] sm:$0xf]
      %v2566 = vld [vmem:[%s2557 + $0x20] sm:$0xf]
      %v2567 = vld [vmem:[%s2557 + $0x24] sm:$0xf]
      %v2568 = vld [vmem:[%s2557 + $0x28] sm:$0xf]
      %v2569 = vld [vmem:[%s2557 + $0x2c] sm:$0xf]
      %v2570 = vld [vmem:[%s2557 + $0x30] sm:$0xf]
      %v2571 = vld [vmem:[%s2557 + $0x34] sm:$0xf]
      %v2572 = vld [vmem:[%s2557 + $0x38] sm:$0xf]
      %v2573 = vld [vmem:[%s2557 + $0x3c] sm:$0xf]
      %v2590 = vunpack.c.l.b16 %v2558
      %v2591 = vunpack.c.l.b16 %v2559
      %v2592 = vunpack.c.l.b16 %v2560
      %v2593 = vunpack.c.l.b16 %v2561
      %v2594 = vunpack.c.l.b16 %v2562
      %v2595 = vunpack.c.l.b16 %v2563
      %v2596 = vunpack.c.l.b16 %v2564
      %v2597 = vunpack.c.l.b16 %v2565
      %v2598 = vunpack.c.l.b16 %v2566
      %v2599 = vunpack.c.l.b16 %v2567
      %v2600 = vunpack.c.l.b16 %v2568
      %v2601 = vunpack.c.l.b16 %v2569
      %v2602 = vunpack.c.l.b16 %v2570
      %v2603 = vunpack.c.l.b16 %v2571
      %v2604 = vunpack.c.l.b16 %v2572
      %v2605 = vunpack.c.l.b16 %v2573
      %v2606 = vpack.c.b16 %v2591, %v2590
      %v2607 = vpack.c.b16 %v2593, %v2592
      %v2608 = vpack.c.b16 %v2595, %v2594
      %v2609 = vpack.c.b16 %v2597, %v2596
      %v2610 = vpack.c.b16 %v2599, %v2598
      %v2611 = vpack.c.b16 %v2601, %v2600
      %v2612 = vpack.c.b16 %v2603, %v2602
      %v2613 = vpack.c.b16 %v2605, %v2604
      %2622 = vmatprep.subr.bf16.mxu0 0
      %2623 = vmatpush1.bf16.msra.mxu0 %v2606
      %2624 = vmatprep.subr.bf16.mxu0 0
      %2625 = vmatpush1.bf16.msra.mxu0 %v2607
      %2626 = vmatprep.subr.bf16.mxu0 0
      %2627 = vmatpush1.bf16.msra.mxu0 %v2608
      %2628 = vmatprep.subr.bf16.mxu0 0
      %2629 = vmatpush1.bf16.msra.mxu0 %v2609
      %2630 = vmatprep.subr.bf16.mxu0 0
      %2631 = vmatpush1.bf16.msra.mxu0 %v2610
      %2632 = vmatprep.subr.bf16.mxu0 0
      %2633 = vmatpush1.bf16.msra.mxu0 %v2611
      %2634 = vmatprep.subr.bf16.mxu0 0
      %2635 = vmatpush1.bf16.msra.mxu0 %v2612
      %2636 = vmatprep.subr.bf16.mxu0 0
      %2637 = vmatpush1.bf16.msra.mxu0 %v2613
      %2638 = vmatprep.subr.bf16.mxu0 0
      %2639 = vmatpush1.bf16.msra.mxu0 0
      %2640 = vmatprep.subr.bf16.mxu0 0
      %2641 = vmatpush1.bf16.msra.mxu0 0
      %2642 = vmatprep.subr.bf16.mxu0 0
      %2643 = vmatpush1.bf16.msra.mxu0 0
      %2644 = vmatprep.subr.bf16.mxu0 0
      %2645 = vmatpush1.bf16.msra.mxu0 0
      %2646 = vmatprep.subr.bf16.mxu0 0
      %2647 = vmatpush1.bf16.msra.mxu0 0
      %2648 = vmatprep.subr.bf16.mxu0 0
      %2649 = vmatpush1.bf16.msra.mxu0 0
      %2650 = vmatprep.subr.bf16.mxu0 0
      %2651 = vmatpush1.bf16.msra.mxu0 0
      %2652 = vmatprep.subr.bf16.mxu0 0
      %2653 = vmatpush1.bf16.msra.mxu0 0
      %2654 = vmatprep.mubr.bf16.mxu0 0
      %2655 = vmatmul.mubr.bf16.gmra.mrb[0].mxu0 %v2541
      %v2656 = vpop.f32.mrb[0].mxu0
      %v2657 = vadd.f32 0.0, %v2656
      %v2658 = vpop.f32.mrb[0].mxu0
      %v2659 = vpop.f32.mrb[0].mxu0
      %v2660 = vadd.f32 0.0, %v2659
      %v2661 = vpop.f32.mrb[0].mxu0
      %2662 = vmatprep.mubr.bf16.mxu0 0
      %2663 = vmatmul.mubr.bf16.gmra.mrb[0].mxu0 %v2542
      %v2664 = vpop.f32.mrb[0].mxu0
      %v2665 = vadd.f32 0.0, %v2664
      %v2666 = vpop.f32.mrb[0].mxu0
      %v2667 = vpop.f32.mrb[0].mxu0
      %v2668 = vadd.f32 0.0, %v2667
      %v2669 = vpop.f32.mrb[0].mxu0
      %2670 = vmatprep.mubr.bf16.mxu0 0
      %2671 = vmatmul.mubr.bf16.gmra.mrb[0].mxu0 %v2543
      %v2672 = vpop.f32.mrb[0].mxu0
      %v2673 = vadd.f32 0.0, %v2672
      %v2674 = vpop.f32.mrb[0].mxu0
      %v2675 = vpop.f32.mrb[0].mxu0
      %v2676 = vadd.f32 0.0, %v2675
      %v2677 = vpop.f32.mrb[0].mxu0
      %2678 = vmatprep.mubr.bf16.mxu0 0
      %2679 = vmatmul.mubr.bf16.gmra.mrb[0].mxu0 %v2544
      %v2680 = vpop.f32.mrb[0].mxu0
      %v2681 = vadd.f32 0.0, %v2680
      %v2682 = vpop.f32.mrb[0].mxu0
      %v2683 = vpop.f32.mrb[0].mxu0
      %v2684 = vadd.f32 0.0, %v2683
      %v2685 = vpop.f32.mrb[0].mxu0
      %2686 = vmatprep.mubr.bf16.mxu0 0
      %2687 = vmatmul.mubr.bf16.gmra.mrb[0].mxu0 %v2545
      %v2688 = vpop.f32.mrb[0].mxu0
      %v2689 = vadd.f32 0.0, %v2688
      %v2690 = vpop.f32.mrb[0].mxu0
      %v2691 = vpop.f32.mrb[0].mxu0
      %v2692 = vadd.f32 0.0, %v2691
      %v2693 = vpop.f32.mrb[0].mxu0
      %2694 = vmatprep.mubr.bf16.mxu0 0
      %2695 = vmatmul.mubr.bf16.gmra.mrb[0].mxu0 %v2546
      %v2696 = vpop.f32.mrb[0].mxu0
      %v2697 = vadd.f32 0.0, %v2696
      %v2698 = vpop.f32.mrb[0].mxu0
      %v2699 = vpop.f32.mrb[0].mxu0
      %v2700 = vadd.f32 0.0, %v2699
      %v2701 = vpop.f32.mrb[0].mxu0
      %2702 = vmatprep.mubr.bf16.mxu0 0
      %2703 = vmatmul.mubr.bf16.gmra.mrb[0].mxu0 %v2547
      %v2704 = vpop.f32.mrb[0].mxu0
      %v2705 = vadd.f32 0.0, %v2704
      %v2706 = vpop.f32.mrb[0].mxu0
      %v2707 = vpop.f32.mrb[0].mxu0
      %v2708 = vadd.f32 0.0, %v2707
      %v2709 = vpop.f32.mrb[0].mxu0
      %2710 = vmatprep.mubr.bf16.mxu0 0
      %2711 = vmatmul.mubr.bf16.gmra.mrb[0].mxu0 %v2548
      %v2712 = vpop.f32.mrb[0].mxu0
      %v2713 = vadd.f32 0.0, %v2712
      %v2714 = vpop.f32.mrb[0].mxu0
      %v2715 = vpop.f32.mrb[0].mxu0
      %v2716 = vadd.f32 0.0, %v2715
      %v2717 = vpop.f32.mrb[0].mxu0
      %2718 = vmatprep.mubr.bf16.mxu0 0
      %2719 = vmatmul.mubr.bf16.gmra.mrb[0].mxu0 %v2549
      %v2720 = vpop.f32.mrb[0].mxu0
      %v2721 = vadd.f32 0.0, %v2720
      %v2722 = vpop.f32.mrb[0].mxu0
      %v2723 = vpop.f32.mrb[0].mxu0
      %v2724 = vadd.f32 0.0, %v2723
      %v2725 = vpop.f32.mrb[0].mxu0
      %2726 = vmatprep.mubr.bf16.mxu0 0
      %2727 = vmatmul.mubr.bf16.gmra.mrb[0].mxu0 %v2550
      %v2728 = vpop.f32.mrb[0].mxu0
      %v2729 = vadd.f32 0.0, %v2728
      %v2730 = vpop.f32.mrb[0].mxu0
      %v2731 = vpop.f32.mrb[0].mxu0
      %v2732 = vadd.f32 0.0, %v2731
      %v2733 = vpop.f32.mrb[0].mxu0
      %2734 = vmatprep.mubr.bf16.mxu0 0
      %2735 = vmatmul.mubr.bf16.gmra.mrb[0].mxu0 %v2551
      %v2736 = vpop.f32.mrb[0].mxu0
      %v2737 = vadd.f32 0.0, %v2736
      %v2738 = vpop.f32.mrb[0].mxu0
      %v2739 = vpop.f32.mrb[0].mxu0
      %v2740 = vadd.f32 0.0, %v2739
      %v2741 = vpop.f32.mrb[0].mxu0
      %2742 = vmatprep.mubr.bf16.mxu0 0
      %2743 = vmatmul.mubr.bf16.gmra.mrb[0].mxu0 %v2552
      %v2744 = vpop.f32.mrb[0].mxu0
      %v2745 = vadd.f32 0.0, %v2744
      %v2746 = vpop.f32.mrb[0].mxu0
      %v2747 = vpop.f32.mrb[0].mxu0
      %v2748 = vadd.f32 0.0, %v2747
      %v2749 = vpop.f32.mrb[0].mxu0
      %2750 = vmatprep.mubr.bf16.mxu0 0
      %2751 = vmatmul.mubr.bf16.gmra.mrb[0].mxu0 %v2553
      %v2752 = vpop.f32.mrb[0].mxu0
      %v2753 = vadd.f32 0.0, %v2752
      %v2754 = vpop.f32.mrb[0].mxu0
      %v2755 = vpop.f32.mrb[0].mxu0
      %v2756 = vadd.f32 0.0, %v2755
      %v2757 = vpop.f32.mrb[0].mxu0
      %2758 = vmatprep.mubr.bf16.mxu0 0
      %2759 = vmatmul.mubr.bf16.gmra.mrb[0].mxu0 %v2554
      %v2760 = vpop.f32.mrb[0].mxu0
      %v2761 = vadd.f32 0.0, %v2760
      %v2762 = vpop.f32.mrb[0].mxu0
      %v2763 = vpop.f32.mrb[0].mxu0
      %v2764 = vadd.f32 0.0, %v2763
      %v2765 = vpop.f32.mrb[0].mxu0
      %2766 = vmatprep.mubr.bf16.mxu0 0
      %2767 = vmatmul.mubr.bf16.gmra.mrb[0].mxu0 %v2555
      %v2768 = vpop.f32.mrb[0].mxu0
      %v2769 = vadd.f32 0.0, %v2768
      %v2770 = vpop.f32.mrb[0].mxu0
      %v2771 = vpop.f32.mrb[0].mxu0
      %v2772 = vadd.f32 0.0, %v2771
      %v2773 = vpop.f32.mrb[0].mxu0
      %2774 = vmatprep.mubr.bf16.mxu0 0
      %2775 = vmatmul.mubr.bf16.gmra.mrb[0].mxu0 %v2556
      %v2776 = vpop.f32.mrb[0].mxu0
      %v2777 = vadd.f32 0.0, %v2776
      %v2778 = vpop.f32.mrb[0].mxu0
      %v2779 = vpop.f32.mrb[0].mxu0
      %v2780 = vadd.f32 0.0, %v2779
      %v2781 = vpop.f32.mrb[0].mxu0
      %2782 = vdwg.mxu0
      %v2783 = vadd.f32 %v2476, %v2657
      %v2784 = vadd.f32 %v2477, %v2660
      %v2785 = vadd.f32 %v2478, %v2665
      %v2786 = vadd.f32 %v2479, %v2668
      %v2787 = vadd.f32 %v2480, %v2673
      %v2788 = vadd.f32 %v2481, %v2676
      %v2789 = vadd.f32 %v2482, %v2681
      %v2790 = vadd.f32 %v2483, %v2684
      %v2791 = vadd.f32 %v2484, %v2689
      %v2792 = vadd.f32 %v2485, %v2692
      %v2793 = vadd.f32 %v2486, %v2697
      %v2794 = vadd.f32 %v2487, %v2700
      %v2795 = vadd.f32 %v2488, %v2705
      %v2796 = vadd.f32 %v2489, %v2708
      %v2797 = vadd.f32 %v2490, %v2713
      %v2798 = vadd.f32 %v2491, %v2716
      %v2799 = vadd.f32 %v2492, %v2721
      %v2800 = vadd.f32 %v2493, %v2724
      %v2801 = vadd.f32 %v2494, %v2729
      %v2802 = vadd.f32 %v2495, %v2732
      %v2803 = vadd.f32 %v2496, %v2737
      %v2804 = vadd.f32 %v2497, %v2740
      %v2805 = vadd.f32 %v2498, %v2745
      %v2806 = vadd.f32 %v2499, %v2748
      %v2807 = vadd.f32 %v2500, %v2753
      %v2808 = vadd.f32 %v2501, %v2756
      %v2809 = vadd.f32 %v2502, %v2761
      %v2810 = vadd.f32 %v2503, %v2764
      %v2811 = vadd.f32 %v2504, %v2769
      %v2812 = vadd.f32 %v2505, %v2772
      %v2813 = vadd.f32 %v2506, %v2777
      %v2814 = vadd.f32 %v2507, %v2780
      %v2815 = vld [vmem:[%s2508 + $0x1] sm:$0xff]
      %v2816 = vld [vmem:[%s2508 + $0x9] sm:$0xff]
      %v2817 = vld [vmem:[%s2508 + $0x19] sm:$0xff]
      %v2818 = vld [vmem:[%s2508 + $0x21] sm:$0xff]
      %v2819 = vld [vmem:[%s2508 + $0x31] sm:$0xff]
      %v2820 = vld [vmem:[%s2508 + $0x39] sm:$0xff]
      %v2821 = vld [vmem:[%s2508 + $0x49] sm:$0xff]
      %v2822 = vld [vmem:[%s2508 + $0x51] sm:$0xff]
      %v2823 = vld [vmem:[%s2508 + $0x61] sm:$0xff]
      %v2824 = vld [vmem:[%s2508 + $0x69] sm:$0xff]
      %v2825 = vld [vmem:[%s2508 + $0x79] sm:$0xff]
      %v2826 = vld [vmem:[%s2508 + $0x81] sm:$0xff]
      %v2827 = vld [vmem:[%s2508 + $0x91] sm:$0xff]
      %v2828 = vld [vmem:[%s2508 + $0x99] sm:$0xff]
      %v2829 = vld [vmem:[%s2508 + $0xa9] sm:$0xff]
      %v2830 = vld [vmem:[%s2508 + $0xb1] sm:$0xff]
      %v2831 = vld [vmem:[%s2508 + $0xc1] sm:$0xff]
      %v2832 = vld [vmem:[%s2508 + $0xc9] sm:$0xff]
      %v2833 = vld [vmem:[%s2508 + $0xd9] sm:$0xff]
      %v2834 = vld [vmem:[%s2508 + $0xe1] sm:$0xff]
      %v2835 = vld [vmem:[%s2508 + $0xf1] sm:$0xff]
      %v2836 = vld [vmem:[%s2508 + $0xf9] sm:$0xff]
      %v2837 = vld [vmem:[%s2508 + $0x109] sm:$0xff]
      %v2838 = vld [vmem:[%s2508 + $0x111] sm:$0xff]
      %v2839 = vld [vmem:[%s2508 + $0x121] sm:$0xff]
      %v2840 = vld [vmem:[%s2508 + $0x129] sm:$0xff]
      %v2841 = vld [vmem:[%s2508 + $0x139] sm:$0xff]
      %v2842 = vld [vmem:[%s2508 + $0x141] sm:$0xff]
      %v2843 = vld [vmem:[%s2508 + $0x151] sm:$0xff]
      %v2844 = vld [vmem:[%s2508 + $0x159] sm:$0xff]
      %v2845 = vld [vmem:[%s2508 + $0x169] sm:$0xff]
      %v2846 = vld [vmem:[%s2508 + $0x171] sm:$0xff]
      %v2847 = vpack.c.bf16 %v2816, %v2815
      %v2848 = vpack.c.bf16 %v2818, %v2817
      %v2849 = vpack.c.bf16 %v2820, %v2819
      %v2850 = vpack.c.bf16 %v2822, %v2821
      %v2851 = vpack.c.bf16 %v2824, %v2823
      %v2852 = vpack.c.bf16 %v2826, %v2825
      %v2853 = vpack.c.bf16 %v2828, %v2827
      %v2854 = vpack.c.bf16 %v2830, %v2829
      %v2855 = vpack.c.bf16 %v2832, %v2831
      %v2856 = vpack.c.bf16 %v2834, %v2833
      %v2857 = vpack.c.bf16 %v2836, %v2835
      %v2858 = vpack.c.bf16 %v2838, %v2837
      %v2859 = vpack.c.bf16 %v2840, %v2839
      %v2860 = vpack.c.bf16 %v2842, %v2841
      %v2861 = vpack.c.bf16 %v2844, %v2843
      %v2862 = vpack.c.bf16 %v2846, %v2845
      %s2863 = scalar_lea.vmem %s4, 448
      %v2864 = vld [vmem:[%s2863] sm:$0xf]
      %v2865 = vld [vmem:[%s2863 + $0x4] sm:$0xf]
      %v2866 = vld [vmem:[%s2863 + $0x8] sm:$0xf]
      %v2867 = vld [vmem:[%s2863 + $0xc] sm:$0xf]
      %v2868 = vld [vmem:[%s2863 + $0x10] sm:$0xf]
      %v2869 = vld [vmem:[%s2863 + $0x14] sm:$0xf]
      %v2870 = vld [vmem:[%s2863 + $0x18] sm:$0xf]
      %v2871 = vld [vmem:[%s2863 + $0x1c] sm:$0xf]
      %v2872 = vld [vmem:[%s2863 + $0x20] sm:$0xf]
      %v2873 = vld [vmem:[%s2863 + $0x24] sm:$0xf]
      %v2874 = vld [vmem:[%s2863 + $0x28] sm:$0xf]
      %v2875 = vld [vmem:[%s2863 + $0x2c] sm:$0xf]
      %v2876 = vld [vmem:[%s2863 + $0x30] sm:$0xf]
      %v2877 = vld [vmem:[%s2863 + $0x34] sm:$0xf]
      %v2878 = vld [vmem:[%s2863 + $0x38] sm:$0xf]
      %v2879 = vld [vmem:[%s2863 + $0x3c] sm:$0xf]
      %v2896 = vunpack.c.l.b16 %v2864
      %v2897 = vunpack.c.l.b16 %v2865
      %v2898 = vunpack.c.l.b16 %v2866
      %v2899 = vunpack.c.l.b16 %v2867
      %v2900 = vunpack.c.l.b16 %v2868
      %v2901 = vunpack.c.l.b16 %v2869
      %v2902 = vunpack.c.l.b16 %v2870
      %v2903 = vunpack.c.l.b16 %v2871
      %v2904 = vunpack.c.l.b16 %v2872
      %v2905 = vunpack.c.l.b16 %v2873
      %v2906 = vunpack.c.l.b16 %v2874
      %v2907 = vunpack.c.l.b16 %v2875
      %v2908 = vunpack.c.l.b16 %v2876
      %v2909 = vunpack.c.l.b16 %v2877
      %v2910 = vunpack.c.l.b16 %v2878
      %v2911 = vunpack.c.l.b16 %v2879
      %v2912 = vpack.c.b16 %v2897, %v2896
      %v2913 = vpack.c.b16 %v2899, %v2898
      %v2914 = vpack.c.b16 %v2901, %v2900
      %v2915 = vpack.c.b16 %v2903, %v2902
      %v2916 = vpack.c.b16 %v2905, %v2904
      %v2917 = vpack.c.b16 %v2907, %v2906
      %v2918 = vpack.c.b16 %v2909, %v2908
      %v2919 = vpack.c.b16 %v2911, %v2910
      %2928 = vmatprep.subr.bf16.mxu0 0
      %2929 = vmatpush1.bf16.msra.mxu0 %v2912
      %2930 = vmatprep.subr.bf16.mxu0 0
      %2931 = vmatpush1.bf16.msra.mxu0 %v2913
      %2932 = vmatprep.subr.bf16.mxu0 0
      %2933 = vmatpush1.bf16.msra.mxu0 %v2914
      %2934 = vmatprep.subr.bf16.mxu0 0
      %2935 = vmatpush1.bf16.msra.mxu0 %v2915
      %2936 = vmatprep.subr.bf16.mxu0 0
      %2937 = vmatpush1.bf16.msra.mxu0 %v2916
      %2938 = vmatprep.subr.bf16.mxu0 0
      %2939 = vmatpush1.bf16.msra.mxu0 %v2917
      %2940 = vmatprep.subr.bf16.mxu0 0
      %2941 = vmatpush1.bf16.msra.mxu0 %v2918
      %2942 = vmatprep.subr.bf16.mxu0 0
      %2943 = vmatpush1.bf16.msra.mxu0 %v2919
      %2944 = vmatprep.subr.bf16.mxu0 0
      %2945 = vmatpush1.bf16.msra.mxu0 0
      %2946 = vmatprep.subr.bf16.mxu0 0
      %2947 = vmatpush1.bf16.msra.mxu0 0
      %2948 = vmatprep.subr.bf16.mxu0 0
      %2949 = vmatpush1.bf16.msra.mxu0 0
      %2950 = vmatprep.subr.bf16.mxu0 0
      %2951 = vmatpush1.bf16.msra.mxu0 0
      %2952 = vmatprep.subr.bf16.mxu0 0
      %2953 = vmatpush1.bf16.msra.mxu0 0
      %2954 = vmatprep.subr.bf16.mxu0 0
      %2955 = vmatpush1.bf16.msra.mxu0 0
      %2956 = vmatprep.subr.bf16.mxu0 0
      %2957 = vmatpush1.bf16.msra.mxu0 0
      %2958 = vmatprep.subr.bf16.mxu0 0
      %2959 = vmatpush1.bf16.msra.mxu0 0
      %2960 = vmatprep.mubr.bf16.mxu0 0
      %2961 = vmatmul.mubr.bf16.gmra.mrb[0].mxu0 %v2847
      %v2962 = vpop.f32.mrb[0].mxu0
      %v2963 = vadd.f32 0.0, %v2962
      %v2964 = vpop.f32.mrb[0].mxu0
      %v2965 = vpop.f32.mrb[0].mxu0
      %v2966 = vadd.f32 0.0, %v2965
      %v2967 = vpop.f32.mrb[0].mxu0
      %2968 = vmatprep.mubr.bf16.mxu0 0
      %2969 = vmatmul.mubr.bf16.gmra.mrb[0].mxu0 %v2848
      %v2970 = vpop.f32.mrb[0].mxu0
      %v2971 = vadd.f32 0.0, %v2970
      %v2972 = vpop.f32.mrb[0].mxu0
      %v2973 = vpop.f32.mrb[0].mxu0
      %v2974 = vadd.f32 0.0, %v2973
      %v2975 = vpop.f32.mrb[0].mxu0
      %2976 = vmatprep.mubr.bf16.mxu0 0
      %2977 = vmatmul.mubr.bf16.gmra.mrb[0].mxu0 %v2849
      %v2978 = vpop.f32.mrb[0].mxu0
      %v2979 = vadd.f32 0.0, %v2978
      %v2980 = vpop.f32.mrb[0].mxu0
      %v2981 = vpop.f32.mrb[0].mxu0
      %v2982 = vadd.f32 0.0, %v2981
      %v2983 = vpop.f32.mrb[0].mxu0
      %2984 = vmatprep.mubr.bf16.mxu0 0
      %2985 = vmatmul.mubr.bf16.gmra.mrb[0].mxu0 %v2850
      %v2986 = vpop.f32.mrb[0].mxu0
      %v2987 = vadd.f32 0.0, %v2986
      %v2988 = vpop.f32.mrb[0].mxu0
      %v2989 = vpop.f32.mrb[0].mxu0
      %v2990 = vadd.f32 0.0, %v2989
      %v2991 = vpop.f32.mrb[0].mxu0
      %2992 = vmatprep.mubr.bf16.mxu0 0
      %2993 = vmatmul.mubr.bf16.gmra.mrb[0].mxu0 %v2851
      %v2994 = vpop.f32.mrb[0].mxu0
      %v2995 = vadd.f32 0.0, %v2994
      %v2996 = vpop.f32.mrb[0].mxu0
      %v2997 = vpop.f32.mrb[0].mxu0
      %v2998 = vadd.f32 0.0, %v2997
      %v2999 = vpop.f32.mrb[0].mxu0
      %3000 = vmatprep.mubr.bf16.mxu0 0
      %3001 = vmatmul.mubr.bf16.gmra.mrb[0].mxu0 %v2852
      %v3002 = vpop.f32.mrb[0].mxu0
      %v3003 = vadd.f32 0.0, %v3002
      %v3004 = vpop.f32.mrb[0].mxu0
      %v3005 = vpop.f32.mrb[0].mxu0
      %v3006 = vadd.f32 0.0, %v3005
      %v3007 = vpop.f32.mrb[0].mxu0
      %3008 = vmatprep.mubr.bf16.mxu0 0
      %3009 = vmatmul.mubr.bf16.gmra.mrb[0].mxu0 %v2853
      %v3010 = vpop.f32.mrb[0].mxu0
      %v3011 = vadd.f32 0.0, %v3010
      %v3012 = vpop.f32.mrb[0].mxu0
      %v3013 = vpop.f32.mrb[0].mxu0
      %v3014 = vadd.f32 0.0, %v3013
      %v3015 = vpop.f32.mrb[0].mxu0
      %3016 = vmatprep.mubr.bf16.mxu0 0
      %3017 = vmatmul.mubr.bf16.gmra.mrb[0].mxu0 %v2854
      %v3018 = vpop.f32.mrb[0].mxu0
      %v3019 = vadd.f32 0.0, %v3018
      %v3020 = vpop.f32.mrb[0].mxu0
      %v3021 = vpop.f32.mrb[0].mxu0
      %v3022 = vadd.f32 0.0, %v3021
      %v3023 = vpop.f32.mrb[0].mxu0
      %3024 = vmatprep.mubr.bf16.mxu0 0
      %3025 = vmatmul.mubr.bf16.gmra.mrb[0].mxu0 %v2855
      %v3026 = vpop.f32.mrb[0].mxu0
      %v3027 = vadd.f32 0.0, %v3026
      %v3028 = vpop.f32.mrb[0].mxu0
      %v3029 = vpop.f32.mrb[0].mxu0
      %v3030 = vadd.f32 0.0, %v3029
      %v3031 = vpop.f32.mrb[0].mxu0
      %3032 = vmatprep.mubr.bf16.mxu0 0
      %3033 = vmatmul.mubr.bf16.gmra.mrb[0].mxu0 %v2856
      %v3034 = vpop.f32.mrb[0].mxu0
      %v3035 = vadd.f32 0.0, %v3034
      %v3036 = vpop.f32.mrb[0].mxu0
      %v3037 = vpop.f32.mrb[0].mxu0
      %v3038 = vadd.f32 0.0, %v3037
      %v3039 = vpop.f32.mrb[0].mxu0
      %3040 = vmatprep.mubr.bf16.mxu0 0
      %3041 = vmatmul.mubr.bf16.gmra.mrb[0].mxu0 %v2857
      %v3042 = vpop.f32.mrb[0].mxu0
      %v3043 = vadd.f32 0.0, %v3042
      %v3044 = vpop.f32.mrb[0].mxu0
      %v3045 = vpop.f32.mrb[0].mxu0
      %v3046 = vadd.f32 0.0, %v3045
      %v3047 = vpop.f32.mrb[0].mxu0
      %3048 = vmatprep.mubr.bf16.mxu0 0
      %3049 = vmatmul.mubr.bf16.gmra.mrb[0].mxu0 %v2858
      %v3050 = vpop.f32.mrb[0].mxu0
      %v3051 = vadd.f32 0.0, %v3050
      %v3052 = vpop.f32.mrb[0].mxu0
      %v3053 = vpop.f32.mrb[0].mxu0
      %v3054 = vadd.f32 0.0, %v3053
      %v3055 = vpop.f32.mrb[0].mxu0
      %3056 = vmatprep.mubr.bf16.mxu0 0
      %3057 = vmatmul.mubr.bf16.gmra.mrb[0].mxu0 %v2859
      %v3058 = vpop.f32.mrb[0].mxu0
      %v3059 = vadd.f32 0.0, %v3058
      %v3060 = vpop.f32.mrb[0].mxu0
      %v3061 = vpop.f32.mrb[0].mxu0
      %v3062 = vadd.f32 0.0, %v3061
      %v3063 = vpop.f32.mrb[0].mxu0
      %3064 = vmatprep.mubr.bf16.mxu0 0
      %3065 = vmatmul.mubr.bf16.gmra.mrb[0].mxu0 %v2860
      %v3066 = vpop.f32.mrb[0].mxu0
      %v3067 = vadd.f32 0.0, %v3066
      %v3068 = vpop.f32.mrb[0].mxu0
      %v3069 = vpop.f32.mrb[0].mxu0
      %v3070 = vadd.f32 0.0, %v3069
      %v3071 = vpop.f32.mrb[0].mxu0
      %3072 = vmatprep.mubr.bf16.mxu0 0
      %3073 = vmatmul.mubr.bf16.gmra.mrb[0].mxu0 %v2861
      %v3074 = vpop.f32.mrb[0].mxu0
      %v3075 = vadd.f32 0.0, %v3074
      %v3076 = vpop.f32.mrb[0].mxu0
      %v3077 = vpop.f32.mrb[0].mxu0
      %v3078 = vadd.f32 0.0, %v3077
      %v3079 = vpop.f32.mrb[0].mxu0
      %3080 = vmatprep.mubr.bf16.mxu0 0
      %3081 = vmatmul.mubr.bf16.gmra.mrb[0].mxu0 %v2862
      %v3082 = vpop.f32.mrb[0].mxu0
      %v3083 = vadd.f32 0.0, %v3082
      %v3084 = vpop.f32.mrb[0].mxu0
      %v3085 = vpop.f32.mrb[0].mxu0
      %v3086 = vadd.f32 0.0, %v3085
      %v3087 = vpop.f32.mrb[0].mxu0
      %3088 = vdwg.mxu0
      %v3089 = vadd.f32 %v2783, %v2963
      %v3090 = vadd.f32 %v2784, %v2966
      %v3091 = vadd.f32 %v2785, %v2971
      %v3092 = vadd.f32 %v2786, %v2974
      %v3093 = vadd.f32 %v2787, %v2979
      %v3094 = vadd.f32 %v2788, %v2982
      %v3095 = vadd.f32 %v2789, %v2987
      %v3096 = vadd.f32 %v2790, %v2990
      %v3097 = vadd.f32 %v2791, %v2995
      %v3098 = vadd.f32 %v2792, %v2998
      %v3099 = vadd.f32 %v2793, %v3003
      %v3100 = vadd.f32 %v2794, %v3006
      %v3101 = vadd.f32 %v2795, %v3011
      %v3102 = vadd.f32 %v2796, %v3014
      %v3103 = vadd.f32 %v2797, %v3019
      %v3104 = vadd.f32 %v2798, %v3022
      %v3105 = vadd.f32 %v2799, %v3027
      %v3106 = vadd.f32 %v2800, %v3030
      %v3107 = vadd.f32 %v2801, %v3035
      %v3108 = vadd.f32 %v2802, %v3038
      %v3109 = vadd.f32 %v2803, %v3043
      %v3110 = vadd.f32 %v2804, %v3046
      %v3111 = vadd.f32 %v2805, %v3051
      %v3112 = vadd.f32 %v2806, %v3054
      %v3113 = vadd.f32 %v2807, %v3059
      %v3114 = vadd.f32 %v2808, %v3062
      %v3115 = vadd.f32 %v2809, %v3067
      %v3116 = vadd.f32 %v2810, %v3070
      %v3117 = vadd.f32 %v2811, %v3075
      %v3118 = vadd.f32 %v2812, %v3078
      %v3119 = vadd.f32 %v2813, %v3083
      %v3120 = vadd.f32 %v2814, %v3086
      %v3121 = vld [vmem:[%s2508 + $0x2] sm:$0xff]
      %v3122 = vld [vmem:[%s2508 + $0xa] sm:$0xff]
      %v3123 = vld [vmem:[%s2508 + $0x1a] sm:$0xff]
      %v3124 = vld [vmem:[%s2508 + $0x22] sm:$0xff]
      %v3125 = vld [vmem:[%s2508 + $0x32] sm:$0xff]
      %v3126 = vld [vmem:[%s2508 + $0x3a] sm:$0xff]
      %v3127 = vld [vmem:[%s2508 + $0x4a] sm:$0xff]
      %v3128 = vld [vmem:[%s2508 + $0x52] sm:$0xff]
      %v3129 = vld [vmem:[%s2508 + $0x62] sm:$0xff]
      %v3130 = vld [vmem:[%s2508 + $0x6a] sm:$0xff]
      %v3131 = vld [vmem:[%s2508 + $0x7a] sm:$0xff]
      %v3132 = vld [vmem:[%s2508 + $0x82] sm:$0xff]
      %v3133 = vld [vmem:[%s2508 + $0x92] sm:$0xff]
      %v3134 = vld [vmem:[%s2508 + $0x9a] sm:$0xff]
      %v3135 = vld [vmem:[%s2508 + $0xaa] sm:$0xff]
      %v3136 = vld [vmem:[%s2508 + $0xb2] sm:$0xff]
      %v3137 = vld [vmem:[%s2508 + $0xc2] sm:$0xff]
      %v3138 = vld [vmem:[%s2508 + $0xca] sm:$0xff]
      %v3139 = vld [vmem:[%s2508 + $0xda] sm:$0xff]
      %v3140 = vld [vmem:[%s2508 + $0xe2] sm:$0xff]
      %v3141 = vld [vmem:[%s2508 + $0xf2] sm:$0xff]
      %v3142 = vld [vmem:[%s2508 + $0xfa] sm:$0xff]
      %v3143 = vld [vmem:[%s2508 + $0x10a] sm:$0xff]
      %v3144 = vld [vmem:[%s2508 + $0x112] sm:$0xff]
      %v3145 = vld [vmem:[%s2508 + $0x122] sm:$0xff]
      %v3146 = vld [vmem:[%s2508 + $0x12a] sm:$0xff]
      %v3147 = vld [vmem:[%s2508 + $0x13a] sm:$0xff]
      %v3148 = vld [vmem:[%s2508 + $0x142] sm:$0xff]
      %v3149 = vld [vmem:[%s2508 + $0x152] sm:$0xff]
      %v3150 = vld [vmem:[%s2508 + $0x15a] sm:$0xff]
      %v3151 = vld [vmem:[%s2508 + $0x16a] sm:$0xff]
      %v3152 = vld [vmem:[%s2508 + $0x172] sm:$0xff]
      %v3153 = vpack.c.bf16 %v3122, %v3121
      %v3154 = vpack.c.bf16 %v3124, %v3123
      %v3155 = vpack.c.bf16 %v3126, %v3125
      %v3156 = vpack.c.bf16 %v3128, %v3127
      %v3157 = vpack.c.bf16 %v3130, %v3129
      %v3158 = vpack.c.bf16 %v3132, %v3131
      %v3159 = vpack.c.bf16 %v3134, %v3133
      %v3160 = vpack.c.bf16 %v3136, %v3135
      %v3161 = vpack.c.bf16 %v3138, %v3137
      %v3162 = vpack.c.bf16 %v3140, %v3139
      %v3163 = vpack.c.bf16 %v3142, %v3141
      %v3164 = vpack.c.bf16 %v3144, %v3143
      %v3165 = vpack.c.bf16 %v3146, %v3145
      %v3166 = vpack.c.bf16 %v3148, %v3147
      %v3167 = vpack.c.bf16 %v3150, %v3149
      %v3168 = vpack.c.bf16 %v3152, %v3151
      %s3169 = scalar_lea.vmem %s4, 512
      %v3170 = vld [vmem:[%s3169] sm:$0xf]
      %v3171 = vld [vmem:[%s3169 + $0x4] sm:$0xf]
      %v3172 = vld [vmem:[%s3169 + $0x8] sm:$0xf]
      %v3173 = vld [vmem:[%s3169 + $0xc] sm:$0xf]
      %v3174 = vld [vmem:[%s3169 + $0x10] sm:$0xf]
      %v3175 = vld [vmem:[%s3169 + $0x14] sm:$0xf]
      %v3176 = vld [vmem:[%s3169 + $0x18] sm:$0xf]
      %v3177 = vld [vmem:[%s3169 + $0x1c] sm:$0xf]
      %v3178 = vld [vmem:[%s3169 + $0x20] sm:$0xf]
      %v3179 = vld [vmem:[%s3169 + $0x24] sm:$0xf]
      %v3180 = vld [vmem:[%s3169 + $0x28] sm:$0xf]
      %v3181 = vld [vmem:[%s3169 + $0x2c] sm:$0xf]
      %v3182 = vld [vmem:[%s3169 + $0x30] sm:$0xf]
      %v3183 = vld [vmem:[%s3169 + $0x34] sm:$0xf]
      %v3184 = vld [vmem:[%s3169 + $0x38] sm:$0xf]
      %v3185 = vld [vmem:[%s3169 + $0x3c] sm:$0xf]
      %v3202 = vunpack.c.l.b16 %v3170
      %v3203 = vunpack.c.l.b16 %v3171
      %v3204 = vunpack.c.l.b16 %v3172
      %v3205 = vunpack.c.l.b16 %v3173
      %v3206 = vunpack.c.l.b16 %v3174
      %v3207 = vunpack.c.l.b16 %v3175
      %v3208 = vunpack.c.l.b16 %v3176
      %v3209 = vunpack.c.l.b16 %v3177
      %v3210 = vunpack.c.l.b16 %v3178
      %v3211 = vunpack.c.l.b16 %v3179
      %v3212 = vunpack.c.l.b16 %v3180
      %v3213 = vunpack.c.l.b16 %v3181
      %v3214 = vunpack.c.l.b16 %v3182
      %v3215 = vunpack.c.l.b16 %v3183
      %v3216 = vunpack.c.l.b16 %v3184
      %v3217 = vunpack.c.l.b16 %v3185
      %v3218 = vpack.c.b16 %v3203, %v3202
      %v3219 = vpack.c.b16 %v3205, %v3204
      %v3220 = vpack.c.b16 %v3207, %v3206
      %v3221 = vpack.c.b16 %v3209, %v3208
      %v3222 = vpack.c.b16 %v3211, %v3210
      %v3223 = vpack.c.b16 %v3213, %v3212
      %v3224 = vpack.c.b16 %v3215, %v3214
      %v3225 = vpack.c.b16 %v3217, %v3216
      %3234 = vmatprep.subr.bf16.mxu0 0
      %3235 = vmatpush1.bf16.msra.mxu0 %v3218
      %3236 = vmatprep.subr.bf16.mxu0 0
      %3237 = vmatpush1.bf16.msra.mxu0 %v3219
      %3238 = vmatprep.subr.bf16.mxu0 0
      %3239 = vmatpush1.bf16.msra.mxu0 %v3220
      %3240 = vmatprep.subr.bf16.mxu0 0
      %3241 = vmatpush1.bf16.msra.mxu0 %v3221
      %3242 = vmatprep.subr.bf16.mxu0 0
      %3243 = vmatpush1.bf16.msra.mxu0 %v3222
      %3244 = vmatprep.subr.bf16.mxu0 0
      %3245 = vmatpush1.bf16.msra.mxu0 %v3223
      %3246 = vmatprep.subr.bf16.mxu0 0
      %3247 = vmatpush1.bf16.msra.mxu0 %v3224
      %3248 = vmatprep.subr.bf16.mxu0 0
      %3249 = vmatpush1.bf16.msra.mxu0 %v3225
      %3250 = vmatprep.subr.bf16.mxu0 0
      %3251 = vmatpush1.bf16.msra.mxu0 0
      %3252 = vmatprep.subr.bf16.mxu0 0
      %3253 = vmatpush1.bf16.msra.mxu0 0
      %3254 = vmatprep.subr.bf16.mxu0 0
      %3255 = vmatpush1.bf16.msra.mxu0 0
      %3256 = vmatprep.subr.bf16.mxu0 0
      %3257 = vmatpush1.bf16.msra.mxu0 0
      %3258 = vmatprep.subr.bf16.mxu0 0
      %3259 = vmatpush1.bf16.msra.mxu0 0
      %3260 = vmatprep.subr.bf16.mxu0 0
      %3261 = vmatpush1.bf16.msra.mxu0 0
      %3262 = vmatprep.subr.bf16.mxu0 0
      %3263 = vmatpush1.bf16.msra.mxu0 0
      %3264 = vmatprep.subr.bf16.mxu0 0
      %3265 = vmatpush1.bf16.msra.mxu0 0
      %3266 = vmatprep.mubr.bf16.mxu0 0
      %3267 = vmatmul.mubr.bf16.gmra.mrb[0].mxu0 %v3153
      %v3268 = vpop.f32.mrb[0].mxu0
      %v3269 = vadd.f32 0.0, %v3268
      %v3270 = vpop.f32.mrb[0].mxu0
      %v3271 = vpop.f32.mrb[0].mxu0
      %v3272 = vadd.f32 0.0, %v3271
      %v3273 = vpop.f32.mrb[0].mxu0
      %3274 = vmatprep.mubr.bf16.mxu0 0
      %3275 = vmatmul.mubr.bf16.gmra.mrb[0].mxu0 %v3154
      %v3276 = vpop.f32.mrb[0].mxu0
      %v3277 = vadd.f32 0.0, %v3276
      %v3278 = vpop.f32.mrb[0].mxu0
      %v3279 = vpop.f32.mrb[0].mxu0
      %v3280 = vadd.f32 0.0, %v3279
      %v3281 = vpop.f32.mrb[0].mxu0
      %3282 = vmatprep.mubr.bf16.mxu0 0
      %3283 = vmatmul.mubr.bf16.gmra.mrb[0].mxu0 %v3155
      %v3284 = vpop.f32.mrb[0].mxu0
      %v3285 = vadd.f32 0.0, %v3284
      %v3286 = vpop.f32.mrb[0].mxu0
      %v3287 = vpop.f32.mrb[0].mxu0
      %v3288 = vadd.f32 0.0, %v3287
      %v3289 = vpop.f32.mrb[0].mxu0
      %3290 = vmatprep.mubr.bf16.mxu0 0
      %3291 = vmatmul.mubr.bf16.gmra.mrb[0].mxu0 %v3156
      %v3292 = vpop.f32.mrb[0].mxu0
      %v3293 = vadd.f32 0.0, %v3292
      %v3294 = vpop.f32.mrb[0].mxu0
      %v3295 = vpop.f32.mrb[0].mxu0
      %v3296 = vadd.f32 0.0, %v3295
      %v3297 = vpop.f32.mrb[0].mxu0
      %3298 = vmatprep.mubr.bf16.mxu0 0
      %3299 = vmatmul.mubr.bf16.gmra.mrb[0].mxu0 %v3157
      %v3300 = vpop.f32.mrb[0].mxu0
      %v3301 = vadd.f32 0.0, %v3300
      %v3302 = vpop.f32.mrb[0].mxu0
      %v3303 = vpop.f32.mrb[0].mxu0
      %v3304 = vadd.f32 0.0, %v3303
      %v3305 = vpop.f32.mrb[0].mxu0
      %3306 = vmatprep.mubr.bf16.mxu0 0
      %3307 = vmatmul.mubr.bf16.gmra.mrb[0].mxu0 %v3158
      %v3308 = vpop.f32.mrb[0].mxu0
      %v3309 = vadd.f32 0.0, %v3308
      %v3310 = vpop.f32.mrb[0].mxu0
      %v3311 = vpop.f32.mrb[0].mxu0
      %v3312 = vadd.f32 0.0, %v3311
      %v3313 = vpop.f32.mrb[0].mxu0
      %3314 = vmatprep.mubr.bf16.mxu0 0
      %3315 = vmatmul.mubr.bf16.gmra.mrb[0].mxu0 %v3159
      %v3316 = vpop.f32.mrb[0].mxu0
      %v3317 = vadd.f32 0.0, %v3316
      %v3318 = vpop.f32.mrb[0].mxu0
      %v3319 = vpop.f32.mrb[0].mxu0
      %v3320 = vadd.f32 0.0, %v3319
      %v3321 = vpop.f32.mrb[0].mxu0
      %3322 = vmatprep.mubr.bf16.mxu0 0
      %3323 = vmatmul.mubr.bf16.gmra.mrb[0].mxu0 %v3160
      %v3324 = vpop.f32.mrb[0].mxu0
      %v3325 = vadd.f32 0.0, %v3324
      %v3326 = vpop.f32.mrb[0].mxu0
      %v3327 = vpop.f32.mrb[0].mxu0
      %v3328 = vadd.f32 0.0, %v3327
      %v3329 = vpop.f32.mrb[0].mxu0
      %3330 = vmatprep.mubr.bf16.mxu0 0
      %3331 = vmatmul.mubr.bf16.gmra.mrb[0].mxu0 %v3161
      %v3332 = vpop.f32.mrb[0].mxu0
      %v3333 = vadd.f32 0.0, %v3332
      %v3334 = vpop.f32.mrb[0].mxu0
      %v3335 = vpop.f32.mrb[0].mxu0
      %v3336 = vadd.f32 0.0, %v3335
      %v3337 = vpop.f32.mrb[0].mxu0
      %3338 = vmatprep.mubr.bf16.mxu0 0
      %3339 = vmatmul.mubr.bf16.gmra.mrb[0].mxu0 %v3162
      %v3340 = vpop.f32.mrb[0].mxu0
      %v3341 = vadd.f32 0.0, %v3340
      %v3342 = vpop.f32.mrb[0].mxu0
      %v3343 = vpop.f32.mrb[0].mxu0
      %v3344 = vadd.f32 0.0, %v3343
      %v3345 = vpop.f32.mrb[0].mxu0
      %3346 = vmatprep.mubr.bf16.mxu0 0
      %3347 = vmatmul.mubr.bf16.gmra.mrb[0].mxu0 %v3163
      %v3348 = vpop.f32.mrb[0].mxu0
      %v3349 = vadd.f32 0.0, %v3348
      %v3350 = vpop.f32.mrb[0].mxu0
      %v3351 = vpop.f32.mrb[0].mxu0
      %v3352 = vadd.f32 0.0, %v3351
      %v3353 = vpop.f32.mrb[0].mxu0
      %3354 = vmatprep.mubr.bf16.mxu0 0
      %3355 = vmatmul.mubr.bf16.gmra.mrb[0].mxu0 %v3164
      %v3356 = vpop.f32.mrb[0].mxu0
      %v3357 = vadd.f32 0.0, %v3356
      %v3358 = vpop.f32.mrb[0].mxu0
      %v3359 = vpop.f32.mrb[0].mxu0
      %v3360 = vadd.f32 0.0, %v3359
      %v3361 = vpop.f32.mrb[0].mxu0
      %3362 = vmatprep.mubr.bf16.mxu0 0
      %3363 = vmatmul.mubr.bf16.gmra.mrb[0].mxu0 %v3165
      %v3364 = vpop.f32.mrb[0].mxu0
      %v3365 = vadd.f32 0.0, %v3364
      %v3366 = vpop.f32.mrb[0].mxu0
      %v3367 = vpop.f32.mrb[0].mxu0
      %v3368 = vadd.f32 0.0, %v3367
      %v3369 = vpop.f32.mrb[0].mxu0
      %3370 = vmatprep.mubr.bf16.mxu0 0
      %3371 = vmatmul.mubr.bf16.gmra.mrb[0].mxu0 %v3166
      %v3372 = vpop.f32.mrb[0].mxu0
      %v3373 = vadd.f32 0.0, %v3372
      %v3374 = vpop.f32.mrb[0].mxu0
      %v3375 = vpop.f32.mrb[0].mxu0
      %v3376 = vadd.f32 0.0, %v3375
      %v3377 = vpop.f32.mrb[0].mxu0
      %3378 = vmatprep.mubr.bf16.mxu0 0
      %3379 = vmatmul.mubr.bf16.gmra.mrb[0].mxu0 %v3167
      %v3380 = vpop.f32.mrb[0].mxu0
      %v3381 = vadd.f32 0.0, %v3380
      %v3382 = vpop.f32.mrb[0].mxu0
      %v3383 = vpop.f32.mrb[0].mxu0
      %v3384 = vadd.f32 0.0, %v3383
      %v3385 = vpop.f32.mrb[0].mxu0
      %3386 = vmatprep.mubr.bf16.mxu0 0
      %3387 = vmatmul.mubr.bf16.gmra.mrb[0].mxu0 %v3168
      %v3388 = vpop.f32.mrb[0].mxu0
      %v3389 = vadd.f32 0.0, %v3388
      %v3390 = vpop.f32.mrb[0].mxu0
      %v3391 = vpop.f32.mrb[0].mxu0
      %v3392 = vadd.f32 0.0, %v3391
      %v3393 = vpop.f32.mrb[0].mxu0
      %3394 = vdwg.mxu0
      %v3395 = vadd.f32 %v3089, %v3269
      %v3396 = vadd.f32 %v3090, %v3272
      %v3397 = vadd.f32 %v3091, %v3277
      %v3398 = vadd.f32 %v3092, %v3280
      %v3399 = vadd.f32 %v3093, %v3285
      %v3400 = vadd.f32 %v3094, %v3288
      %v3401 = vadd.f32 %v3095, %v3293
      %v3402 = vadd.f32 %v3096, %v3296
      %v3403 = vadd.f32 %v3097, %v3301
      %v3404 = vadd.f32 %v3098, %v3304
      %v3405 = vadd.f32 %v3099, %v3309
      %v3406 = vadd.f32 %v3100, %v3312
      %v3407 = vadd.f32 %v3101, %v3317
      %v3408 = vadd.f32 %v3102, %v3320
      %v3409 = vadd.f32 %v3103, %v3325
      %v3410 = vadd.f32 %v3104, %v3328
      %v3411 = vadd.f32 %v3105, %v3333
      %v3412 = vadd.f32 %v3106, %v3336
      %v3413 = vadd.f32 %v3107, %v3341
      %v3414 = vadd.f32 %v3108, %v3344
      %v3415 = vadd.f32 %v3109, %v3349
      %v3416 = vadd.f32 %v3110, %v3352
      %v3417 = vadd.f32 %v3111, %v3357
      %v3418 = vadd.f32 %v3112, %v3360
      %v3419 = vadd.f32 %v3113, %v3365
      %v3420 = vadd.f32 %v3114, %v3368
      %v3421 = vadd.f32 %v3115, %v3373
      %v3422 = vadd.f32 %v3116, %v3376
      %v3423 = vadd.f32 %v3117, %v3381
      %v3424 = vadd.f32 %v3118, %v3384
      %v3425 = vadd.f32 %v3119, %v3389
      %v3426 = vadd.f32 %v3120, %v3392
      %3427 = vxpose.xlu0.b32.start [1/16] %v3395, 128
      %3428 = vxpose.xlu0.b32.cont [2/16] %v3396, 128
      %3429 = vxpose.xlu0.b32.cont [3/16] %v3397, 128
      %3430 = vxpose.xlu0.b32.cont [4/16] %v3398, 128
      %3431 = vxpose.xlu0.b32.cont [5/16] %v3399, 128
      %3432 = vxpose.xlu0.b32.cont [6/16] %v3400, 128
      %3433 = vxpose.xlu0.b32.cont [7/16] %v3401, 128
      %3434 = vxpose.xlu0.b32.cont [8/16] %v3402, 128
      %3435 = vxpose.xlu0.b32.cont [9/16] %v3403, 128
      %3436 = vxpose.xlu0.b32.cont [10/16] %v3404, 128
      %3437 = vxpose.xlu0.b32.cont [11/16] %v3405, 128
      %3438 = vxpose.xlu0.b32.cont [12/16] %v3406, 128
      %3439 = vxpose.xlu0.b32.cont [13/16] %v3407, 128
      %3440 = vxpose.xlu0.b32.cont [14/16] %v3408, 128
      %3441 = vxpose.xlu0.b32.cont [15/16] %v3409, 128
      %3442 = vxpose.xlu0.b32.end [16/16] %v3410, 128
      %v3443 = vpop.trf.xlu0
      %v3444 = vpop.trf.xlu0
      %v3445 = vpop.trf.xlu0
      %v3446 = vpop.trf.xlu0
      %v3447 = vpop.trf.xlu0
      %v3448 = vpop.trf.xlu0
      %v3449 = vpop.trf.xlu0
      %v3450 = vpop.trf.xlu0
      %v3451 = vpop.trf.xlu0
      %v3452 = vpop.trf.xlu0
      %v3453 = vpop.trf.xlu0
      %v3454 = vpop.trf.xlu0
      %v3455 = vpop.trf.xlu0
      %v3456 = vpop.trf.xlu0
      %v3457 = vpop.trf.xlu0
      %v3458 = vpop.trf.xlu0
      %3459 = vxpose.xlu0.b32.start [1/16] %v3411, 128
      %3460 = vxpose.xlu0.b32.cont [2/16] %v3412, 128
      %3461 = vxpose.xlu0.b32.cont [3/16] %v3413, 128
      %3462 = vxpose.xlu0.b32.cont [4/16] %v3414, 128
      %3463 = vxpose.xlu0.b32.cont [5/16] %v3415, 128
      %3464 = vxpose.xlu0.b32.cont [6/16] %v3416, 128
      %3465 = vxpose.xlu0.b32.cont [7/16] %v3417, 128
      %3466 = vxpose.xlu0.b32.cont [8/16] %v3418, 128
      %3467 = vxpose.xlu0.b32.cont [9/16] %v3419, 128
      %3468 = vxpose.xlu0.b32.cont [10/16] %v3420, 128
      %3469 = vxpose.xlu0.b32.cont [11/16] %v3421, 128
      %3470 = vxpose.xlu0.b32.cont [12/16] %v3422, 128
      %3471 = vxpose.xlu0.b32.cont [13/16] %v3423, 128
      %3472 = vxpose.xlu0.b32.cont [14/16] %v3424, 128
      %3473 = vxpose.xlu0.b32.cont [15/16] %v3425, 128
      %3474 = vxpose.xlu0.b32.end [16/16] %v3426, 128
      %v3475 = vpop.trf.xlu0
      %v3476 = vpop.trf.xlu0
      %v3477 = vpop.trf.xlu0
      %v3478 = vpop.trf.xlu0
      %v3479 = vpop.trf.xlu0
      %v3480 = vpop.trf.xlu0
      %v3481 = vpop.trf.xlu0
      %v3482 = vpop.trf.xlu0
      %v3483 = vpop.trf.xlu0
      %v3484 = vpop.trf.xlu0
      %v3485 = vpop.trf.xlu0
      %v3486 = vpop.trf.xlu0
      %v3487 = vpop.trf.xlu0
      %v3488 = vpop.trf.xlu0
      %v3489 = vpop.trf.xlu0
      %v3490 = vpop.trf.xlu0
      %v3491 = vld [vmem:[%s5] sm:$0xff]
      %3493 = vset.pattern.permute.xlu0 0
      %3494 = vperm.xlu0 %3493, %v3491
      %v3495 = vpop.permute.xlu0 %3494
      %v3497 = vadd.f32 %v3443, %v3495
      %v3498 = vadd.f32 %v3475, %v3495
      %v3499 = vld [vmem:[%s261] sm:$0xff]
      %v3501 = vcombine.high %v3499, %v3499
      %vm3503 = vcmask 1043456
      %v3504 = vsel %vm3503, %v3499, 0.0
      %v3505 = vsel %vm3503, %v3501, 0.0
      %v3506 = vadd.f32 %v3504, %v3505
      %3507 = vadd.xlane.f32.xlu0 %v3506
      %v3508 = vpop.xlane.xlu0 %3507
      %v3509 = vrcp.pop 256.0
      %v3510 = vmul.f32 %v3508, %v3509
      %v3511 = vmul.f32 %v3499, %v3499
      %v3513 = vcombine.high %v3511, %v3511
      %v3515 = vsel %vm3503, %v3511, 0.0
      %v3516 = vsel %vm3503, %v3513, 0.0
      %v3517 = vadd.f32 %v3515, %v3516
      %3518 = vadd.xlane.f32.xlu0 %v3517
      %v3519 = vpop.xlane.xlu0 %3518
      %v3520 = vmul.f32 %v3519, %v3509
      %v3521 = vmul.f32 %v3510, %v3510
      %v3522 = vsub.f32 %v3520, %v3521
      %v3523 = vadd.f32 %v3522, 1e-05
      %v3524 = vrsqrt.pop %v3523
      %v3527 = vunpack.c.l.s4 839922192
      %v3528 = vunpack.c.0.s8 %v3527
      %v3529 = vlaneseq
      %v3530 = vshrl.u32 %v3529, 7
      %v3531 = vsub.s32 %v3528, %v3530
      %v3532 = vrot.slane %v3510, %v3531
      %v3534 = vsub.f32 %v3499, %v3532
      %v3537 = vunpack.c.l.s4 839922192
      %v3538 = vunpack.c.0.s8 %v3537
      %v3539 = vlaneseq
      %v3540 = vshrl.u32 %v3539, 7
      %v3541 = vsub.s32 %v3538, %v3540
      %v3542 = vrot.slane %v3524, %v3541
      %v3544 = vmul.f32 %v3534, %v3542
      %v3547 = vcombine.low %v3497, %v3498
      %v3549 = vmul.f32 %v3544, %v3547
      %v3550 = vcombine.high %v3497, %v3498
      %v3552 = vadd.f32 %v3549, %v3550
      %3553 = vst [vmem:[%s271] sm:$0xff] %v3552
      %p3554 = scmp.lt.s32.totalorder %s17, 1
      %s3555 = scalar_select %p3554, %s17, 1
      %s3556 = smul.addr %s3555, 2
      %s3557 = smul.addr %s3556, 4
      %s3558 = scalar_lea.vmem %s6, %s3557
      // Predicated region
      $region45: #{a_call__.1} parent=43 // pred_check
        %p3559 = pneg %p171
      $region46: #{a_call__.1} parent=43 // pred_check_branch
        %3561 = sbr.rel (%p3559) target = $region48
      $region47: #{a_call__.1} parent=43 // pred_region
        _
      $region48: #{a_call__.1} parent=43 // pred_fallthru
        _
    $region44: #{a_call__.1} parent=5 // pred_fallthru
      _
    %p3562 = scmp.le.s32.totalorder 2, %s12
    // Predicated region
    $region49: #{a_call__.1} parent=5 // pred_check
      %p3563 = pneg %p3562
    $region50: #{a_call__.1} parent=5 // pred_check_branch
      %3565 = sbr.rel (%p3563) target = $region52
    $region51: #{a_call__.1} parent=5 // pred_region
      %s3566 = ssub.s32 %s12, 2
      // Predicated region
      $region53: #{a_call__.1} parent=51 // pred_check
        %p3567 = pneg %p177
      $region54: #{a_call__.1} parent=51 // pred_check_branch
        %3569 = sbr.rel (%p3567) target = $region56
      $region55: #{a_call__.1} parent=51 // pred_region
        %p3570 = scmp.lt.s32.totalorder %s18, 1
        %s3571 = scalar_select %p3570, %s18, 1
        %s3572 = smul.addr %s3571, 2
        %s3573 = smul.addr %s3572, 4
        %s3574 = scalar_lea.vmem %s6, %s3573
      $region56: #{a_call__.1} parent=51 // pred_fallthru
        _
    $region52: #{a_call__.1} parent=5 // pred_fallthru
      _
  $region6: #{a_call__.1} parent=0 // loop_footer
    %s16 = sadd.s32 1, %s12
  $region7: #{a_call__.1} parent=0 // loop_footer_branch
    %11 = sbr.rel target = $region3
  $region8: #{a_call__.1} parent=0 // loop_exit
    _

</llo_original>
